<compile_context>
chip_gen: v6e
topology: v6e:2x2x1
jax: 0.10.0
libtpu: 0.0.40
codegen_flags: <defaults>
</compile_context>

<pallas_src>
import functools

import jax
import jax.numpy as jnp
from jax.experimental import pallas as pl
from jax.experimental.pallas import tpu as pltpu


def _zero_frame(ref, th, w, c):
    """Zero the 1-pixel border of a (th+2, w+2, c) VMEM scratch (= SAME padding)."""
    ref[0:1, :, :] = jnp.zeros((1, w + 2, c), ref.dtype)
    ref[th + 1:th + 2, :, :] = jnp.zeros((1, w + 2, c), ref.dtype)
    ref[:, 0:1, :] = jnp.zeros((th + 2, 1, c), ref.dtype)
    ref[:, w + 1:w + 2, :] = jnp.zeros((th + 2, 1, c), ref.dtype)


def _conv3x3(src_ref, w_ref, b_ref, th, w, c):
    """SAME 3x3 conv as ONE matmul: im2col patch (M, 9C) @ (9C, C), f32 accumulate."""
    patch = jnp.concatenate(
        [src_ref[dy:dy + th, dx:dx + w, :] for dy in range(3) for dx in range(3)],
        axis=-1).reshape(th * w, 9 * c)
    acc = jnp.dot(patch.astype(w_ref.dtype), w_ref[...],
                  preferred_element_type=jnp.float32)
    return acc + b_ref[...]                                   # (M, C) f32


def fused_residual_block_kernel(x_ref, w1_ref, b1_ref, w2_ref, b2_ref, o_ref,
                                xpad_ref, ypad_ref, *, scale, fast_math):
    """out = x + scale * conv2(mish(conv1(x)))   for one (TH, W, C) image tile."""
    th, w, c = o_ref.shape[1], o_ref.shape[2], o_ref.shape[3]
    m = th * w

    # Zero the 1-px frames (cheap: 8 thin slice stores); interiors are rewritten
    # below, so the frames provide the SAME-padding zeros for both convs.
    _zero_frame(xpad_ref, th, w, c)
    _zero_frame(ypad_ref, th, w, c)

    x = x_ref[0]                                              # (TH, W, C) f32
    xpad_ref[1:1 + th, 1:1 + w, :] = x

    # ---- conv1 (+ bias), then Mish -----------------------------------------
    z = _conv3x3(xpad_ref, w1_ref, b1_ref, th, w, c)
    # Single-exp identity: tanh(softplus(z)) = (u^2 - 1) / (u^2 + 1), u = 1 + e^z.
    u = jnp.exp(jnp.minimum(z, 20.0)) + 1.0
    u2 = u * u
    if fast_math:
        y = z * (u2 - 1.0) * pl.reciprocal(u2 + 1.0, approx=True)   # EUP slot
    else:
        y = z * ((u2 - 1.0) / (u2 + 1.0))                           # exact
    ypad_ref[1:1 + th, 1:1 + w, :] = y.reshape(th, w, c)

    # ---- conv2 (+ bias), scale, residual add --------------------------------
    res = _conv3x3(ypad_ref, w2_ref, b2_ref, th, w, c)
    out = x.reshape(m, c) + scale * res
    o_ref[0] = out.reshape(th, w, c).astype(o_ref.dtype)


@functools.partial(jax.jit, static_argnames=("residual_scale", "fast_math"))
def residual_block_forward(x_nchw, w1, b1, w2, b2, residual_scale=1.0,
                           fast_math=False):
    """Pallas implementation of ResidualBlock.forward (bn=False).

    x_nchw: (N, C, H, W) f32;  w1, w2: (3, 3, C, C) HWIO;  b1, b2: (C,)
    fast_math=True: bf16 MXU operands + approx reciprocal (v6e/v7x fast path).
    """
    N, C, H, W = x_nchw.shape
    TH = H  # full-image tile; grid over batch only (see TODOs in header).

    # TODO(synk): fold NCHW<->NHWC into the kernel / keep the model NHWC.
    x = jnp.transpose(x_nchw, (0, 2, 3, 1))                   # NHWC

    w_dtype = jnp.bfloat16 if fast_math else jnp.float32
    w1r = w1.reshape(9 * C, C).astype(w_dtype)                # row-major (ky,kx,i) -> o
    w2r = w2.reshape(9 * C, C).astype(w_dtype)
    b1r = b1.reshape(1, C).astype(jnp.float32)
    b2r = b2.reshape(1, C).astype(jnp.float32)

    kernel = functools.partial(fused_residual_block_kernel,
                               scale=float(residual_scale),
                               fast_math=fast_math)

    # VMEM budget from the actual working set (clamped so it is valid on v7x).
    w_item = jnp.dtype(w_dtype).itemsize
    block_bytes = TH * W * C * 4                              # one x / out block
    scratch_bytes = 2 * (TH + 2) * (W + 2) * C * 4            # xpad + ypad
    weight_bytes = 2 * 9 * C * C * w_item                     # w1 + w2
    interm_bytes = TH * W * (9 * C + 4 * C) * 4               # patch + z/u/y live values
    vmem_limit = int(min(64 * 1024 * 1024,
                         max(4 * 1024 * 1024,
                             2 * (4 * block_bytes + scratch_bytes +
                                  2 * weight_bytes + interm_bytes))))

    cost = pl.CostEstimate(
        flops=int(2 * 2 * 9 * N * H * W * C * C),             # two 3x3 convs
        transcendentals=int(N * H * W * C),                   # one exp per element
        bytes_accessed=int(2 * 4 * x.size                      # read x + write out
                           + (w1r.size + w2r.size) * w_item
                           + 4 * (b1r.size + b2r.size)),
    )

    out = pl.pallas_call(
        kernel,
        out_shape=jax.ShapeDtypeStruct((N, H, W, C), jnp.float32),
        grid_spec=pltpu.PrefetchScalarGridSpec(
            num_scalar_prefetch=0,
            grid=(N,),
            in_specs=[
                pl.BlockSpec((1, TH, W, C), lambda n: (n, 0, 0, 0)),  # x (auto double-buffered)
                pl.BlockSpec((9 * C, C), lambda n: (0, 0)),           # w1 (VMEM resident)
                pl.BlockSpec((1, C), lambda n: (0, 0)),               # b1
                pl.BlockSpec((9 * C, C), lambda n: (0, 0)),           # w2
                pl.BlockSpec((1, C), lambda n: (0, 0)),               # b2
            ],
            out_specs=pl.BlockSpec((1, TH, W, C), lambda n: (n, 0, 0, 0)),
            scratch_shapes=[
                pltpu.VMEM((TH + 2, W + 2, C), jnp.float32),          # zero-framed x
                pltpu.VMEM((TH + 2, W + 2, C), jnp.float32),          # zero-framed mish(conv1)
            ],
        ),
        compiler_params=pltpu.CompilerParams(
            dimension_semantics=("parallel",),        # batch across v7x TensorCores
            vmem_limit_bytes=vmem_limit,
        ),
        input_output_aliases={0: 0},                  # reuse NHWC x buffer for the output
        cost_estimate=cost,
    )(x, w1r, b1r, w2r, b2r)

    return jnp.transpose(out, (0, 3, 1, 2))           # back to NCHW


def _reference_forward(x_nchw, w1, b1, w2, b2, residual_scale=1.0):
    """Pure-JAX reference (lax conv) for correctness checking."""
    x = jnp.transpose(x_nchw, (0, 2, 3, 1))
    dn = jax.lax.conv_dimension_numbers(x.shape, w1.shape, ("NHWC", "HWIO", "NHWC"))
    r = jax.lax.conv_general_dilated(x, w1, (1, 1), "SAME", dimension_numbers=dn) + b1
    r = r * jnp.tanh(jax.nn.softplus(r))
    r = jax.lax.conv_general_dilated(r, w2, (1, 1), "SAME", dimension_numbers=dn) + b2
    out = x + r * residual_scale
    return jnp.transpose(out, (0, 3, 1, 2))


if __name__ == "__main__":
    key = jax.random.PRNGKey(0)
    N, C, H, W = 2, 4, 16, 16
    residual_scale = 0.5

    kx, k1, k2, kb1, kb2 = jax.random.split(key, 5)
    x = jax.random.normal(kx, (N, C, H, W), dtype=jnp.float32)

    # Deterministic synthetic Conv2d parameters (HWIO), roughly kaiming-scaled.
    fan_in = C * 3 * 3
    w1 = jax.random.normal(k1, (3, 3, C, C), dtype=jnp.float32) / jnp.sqrt(fan_in)
    w2 = jax.random.normal(k2, (3, 3, C, C), dtype=jnp.float32) / jnp.sqrt(fan_in)
    b1 = jax.random.normal(kb1, (C,), dtype=jnp.float32) * 0.1
    b2 = jax.random.normal(kb2, (C,), dtype=jnp.float32) * 0.1

    ref = jax.block_until_ready(
        _reference_forward(x, w1, b1, w2, b2, residual_scale))

    # Exact path (f32 MXU operands, exact divide in Mish).
    out = jax.block_until_ready(
        residual_block_forward(x, w1, b1, w2, b2, residual_scale=residual_scale))
    assert out.shape == (N, C, H, W)
    assert jnp.allclose(out, ref, atol=2e-4, rtol=2e-4), "exact path mismatch"

    # Fast path (bf16 MXU operands + approx reciprocal; v6e/v7x recommendation).
    # Looser tolerance accounts for bf16 operand rounding of both convs.
    out_fast = jax.block_until_ready(
        residual_block_forward(x, w1, b1, w2, b2, residual_scale=residual_scale,
                               fast_math=True))
    assert jnp.allclose(out_fast, ref, atol=5e-2, rtol=5e-2), "fast path mismatch"

    print("KERNEL_OK")
</pallas_src>

<mosaic_0001>
module attributes {stable_mosaic.version = 11 : i64} {
  func.func @fused_residual_block_kernel(%arg0: i32, %arg1: memref<1x16x16x4xf32, #tpu.memory_space<vmem>>, %arg2: memref<36x4xf32, #tpu.memory_space<vmem>>, %arg3: memref<1x4xf32, #tpu.memory_space<vmem>>, %arg4: memref<36x4xf32, #tpu.memory_space<vmem>>, %arg5: memref<1x4xf32, #tpu.memory_space<vmem>>, %arg6: memref<1x16x16x4xf32, #tpu.memory_space<vmem>>, %arg7: memref<18x18x4xf32, #tpu.memory_space<vmem>>, %arg8: memref<18x18x4xf32, #tpu.memory_space<vmem>>) attributes {dimension_semantics = [#tpu.dimension_semantics<parallel>], iteration_bounds = array<i64: 2>, scalar_prefetch = 0 : i64, scratch_operands = 2 : i64, tpu.core_type = #tpu.core_type<tc>, window_params = [{transform_indices = @transform_0, window_bounds = array<i64: 1, 16, 16, 4>}, {pipeline_mode = #tpu.pipeline_mode<synchronous>, transform_indices = @transform_1, window_bounds = array<i64: 36, 4>}, {pipeline_mode = #tpu.pipeline_mode<synchronous>, transform_indices = @transform_2, window_bounds = array<i64: 1, 4>}, {pipeline_mode = #tpu.pipeline_mode<synchronous>, transform_indices = @transform_3, window_bounds = array<i64: 36, 4>}, {pipeline_mode = #tpu.pipeline_mode<synchronous>, transform_indices = @transform_4, window_bounds = array<i64: 1, 4>}, {transform_indices = @transform_5, window_bounds = array<i64: 1, 16, 16, 4>}]} {
    %cst = arith.constant 0.000000e+00 : f32
    %0 = vector.broadcast %cst : f32 to vector<1x18x4xf32>
    %c0 = arith.constant 0 : index
    %c0_0 = arith.constant 0 : index
    %c0_1 = arith.constant 0 : index
    %1 = vector.load %arg7[%c0, %c0_0, %c0_1] : memref<18x18x4xf32, #tpu.memory_space<vmem>>, vector<1x18x4xf32>
    tpu.vector_store %arg7[%c0, %c0_0, %c0_1], %0 {strides = array<i32>} : memref<18x18x4xf32, #tpu.memory_space<vmem>>, vector<1x18x4xf32>,
    %cst_2 = arith.constant 0.000000e+00 : f32
    %2 = vector.broadcast %cst_2 : f32 to vector<1x18x4xf32>
    %c17 = arith.constant 17 : index
    %c0_3 = arith.constant 0 : index
    %c0_4 = arith.constant 0 : index
    %3 = vector.load %arg7[%c17, %c0_3, %c0_4] : memref<18x18x4xf32, #tpu.memory_space<vmem>>, vector<1x18x4xf32>
    tpu.vector_store %arg7[%c17, %c0_3, %c0_4], %2 {strides = array<i32>} : memref<18x18x4xf32, #tpu.memory_space<vmem>>, vector<1x18x4xf32>,
    %cst_5 = arith.constant 0.000000e+00 : f32
    %4 = vector.broadcast %cst_5 : f32 to vector<18x1x4xf32>
    %c0_6 = arith.constant 0 : index
    %c0_7 = arith.constant 0 : index
    %c0_8 = arith.constant 0 : index
    %5 = vector.load %arg7[%c0_6, %c0_7, %c0_8] : memref<18x18x4xf32, #tpu.memory_space<vmem>>, vector<18x1x4xf32>
    tpu.vector_store %arg7[%c0_6, %c0_7, %c0_8], %4 {strides = array<i32>} : memref<18x18x4xf32, #tpu.memory_space<vmem>>, vector<18x1x4xf32>,
    %cst_9 = arith.constant 0.000000e+00 : f32
    %6 = vector.broadcast %cst_9 : f32 to vector<18x1x4xf32>
    %c0_10 = arith.constant 0 : index
    %c17_11 = arith.constant 17 : index
    %c0_12 = arith.constant 0 : index
    %7 = vector.load %arg7[%c0_10, %c17_11, %c0_12] : memref<18x18x4xf32, #tpu.memory_space<vmem>>, vector<18x1x4xf32>
    tpu.vector_store %arg7[%c0_10, %c17_11, %c0_12], %6 {strides = array<i32>} : memref<18x18x4xf32, #tpu.memory_space<vmem>>, vector<18x1x4xf32>,
    %cst_13 = arith.constant 0.000000e+00 : f32
    %8 = vector.broadcast %cst_13 : f32 to vector<1x18x4xf32>
    %c0_14 = arith.constant 0 : index
    %c0_15 = arith.constant 0 : index
    %c0_16 = arith.constant 0 : index
    %9 = vector.load %arg8[%c0_14, %c0_15, %c0_16] : memref<18x18x4xf32, #tpu.memory_space<vmem>>, vector<1x18x4xf32>
    tpu.vector_store %arg8[%c0_14, %c0_15, %c0_16], %8 {strides = array<i32>} : memref<18x18x4xf32, #tpu.memory_space<vmem>>, vector<1x18x4xf32>,
    %cst_17 = arith.constant 0.000000e+00 : f32
    %10 = vector.broadcast %cst_17 : f32 to vector<1x18x4xf32>
    %c17_18 = arith.constant 17 : index
    %c0_19 = arith.constant 0 : index
    %c0_20 = arith.constant 0 : index
    %11 = vector.load %arg8[%c17_18, %c0_19, %c0_20] : memref<18x18x4xf32, #tpu.memory_space<vmem>>, vector<1x18x4xf32>
    tpu.vector_store %arg8[%c17_18, %c0_19, %c0_20], %10 {strides = array<i32>} : memref<18x18x4xf32, #tpu.memory_space<vmem>>, vector<1x18x4xf32>,
    %cst_21 = arith.constant 0.000000e+00 : f32
    %12 = vector.broadcast %cst_21 : f32 to vector<18x1x4xf32>
    %c0_22 = arith.constant 0 : index
    %c0_23 = arith.constant 0 : index
    %c0_24 = arith.constant 0 : index
    %13 = vector.load %arg8[%c0_22, %c0_23, %c0_24] : memref<18x18x4xf32, #tpu.memory_space<vmem>>, vector<18x1x4xf32>
    tpu.vector_store %arg8[%c0_22, %c0_23, %c0_24], %12 {strides = array<i32>} : memref<18x18x4xf32, #tpu.memory_space<vmem>>, vector<18x1x4xf32>,
    %cst_25 = arith.constant 0.000000e+00 : f32
    %14 = vector.broadcast %cst_25 : f32 to vector<18x1x4xf32>
    %c0_26 = arith.constant 0 : index
    %c17_27 = arith.constant 17 : index
    %c0_28 = arith.constant 0 : index
    %15 = vector.load %arg8[%c0_26, %c17_27, %c0_28] : memref<18x18x4xf32, #tpu.memory_space<vmem>>, vector<18x1x4xf32>
    tpu.vector_store %arg8[%c0_26, %c17_27, %c0_28], %14 {strides = array<i32>} : memref<18x18x4xf32, #tpu.memory_space<vmem>>, vector<18x1x4xf32>,
    %c0_29 = arith.constant 0 : index
    %c0_30 = arith.constant 0 : index
    %c0_31 = arith.constant 0 : index
    %c0_32 = arith.constant 0 : index
    %16 = vector.load %arg1[%c0_29, %c0_30, %c0_31, %c0_32] : memref<1x16x16x4xf32, #tpu.memory_space<vmem>>, vector<1x16x16x4xf32>
    %17 = vector.shape_cast %16 : vector<1x16x16x4xf32> to vector<16x16x4xf32>
    %c1 = arith.constant 1 : index
    %c1_33 = arith.constant 1 : index
    %c0_34 = arith.constant 0 : index
    %18 = vector.load %arg7[%c1, %c1_33, %c0_34] : memref<18x18x4xf32, #tpu.memory_space<vmem>>, vector<16x16x4xf32>
    tpu.vector_store %arg7[%c1, %c1_33, %c0_34], %17 {strides = array<i32>} : memref<18x18x4xf32, #tpu.memory_space<vmem>>, vector<16x16x4xf32>,
    %c0_35 = arith.constant 0 : index
    %c0_36 = arith.constant 0 : index
    %c0_37 = arith.constant 0 : index
    %19 = vector.load %arg7[%c0_35, %c0_36, %c0_37] : memref<18x18x4xf32, #tpu.memory_space<vmem>>, vector<16x16x4xf32>
    %c0_38 = arith.constant 0 : index
    %c1_39 = arith.constant 1 : index
    %c0_40 = arith.constant 0 : index
    %20 = vector.load %arg7[%c0_38, %c1_39, %c0_40] : memref<18x18x4xf32, #tpu.memory_space<vmem>>, vector<16x16x4xf32>
    %c0_41 = arith.constant 0 : index
    %c2 = arith.constant 2 : index
    %c0_42 = arith.constant 0 : index
    %21 = vector.load %arg7[%c0_41, %c2, %c0_42] : memref<18x18x4xf32, #tpu.memory_space<vmem>>, vector<16x16x4xf32>
    %c1_43 = arith.constant 1 : index
    %c0_44 = arith.constant 0 : index
    %c0_45 = arith.constant 0 : index
    %22 = vector.load %arg7[%c1_43, %c0_44, %c0_45] : memref<18x18x4xf32, #tpu.memory_space<vmem>>, vector<16x16x4xf32>
    %c1_46 = arith.constant 1 : index
    %c1_47 = arith.constant 1 : index
    %c0_48 = arith.constant 0 : index
    %23 = vector.load %arg7[%c1_46, %c1_47, %c0_48] : memref<18x18x4xf32, #tpu.memory_space<vmem>>, vector<16x16x4xf32>
    %c1_49 = arith.constant 1 : index
    %c2_50 = arith.constant 2 : index
    %c0_51 = arith.constant 0 : index
    %24 = vector.load %arg7[%c1_49, %c2_50, %c0_51] : memref<18x18x4xf32, #tpu.memory_space<vmem>>, vector<16x16x4xf32>
    %c2_52 = arith.constant 2 : index
    %c0_53 = arith.constant 0 : index
    %c0_54 = arith.constant 0 : index
    %25 = vector.load %arg7[%c2_52, %c0_53, %c0_54] : memref<18x18x4xf32, #tpu.memory_space<vmem>>, vector<16x16x4xf32>
    %c2_55 = arith.constant 2 : index
    %c1_56 = arith.constant 1 : index
    %c0_57 = arith.constant 0 : index
    %26 = vector.load %arg7[%c2_55, %c1_56, %c0_57] : memref<18x18x4xf32, #tpu.memory_space<vmem>>, vector<16x16x4xf32>
    %c2_58 = arith.constant 2 : index
    %c2_59 = arith.constant 2 : index
    %c0_60 = arith.constant 0 : index
    %27 = vector.load %arg7[%c2_58, %c2_59, %c0_60] : memref<18x18x4xf32, #tpu.memory_space<vmem>>, vector<16x16x4xf32>
    %28 = tpu.concatenate %19, %20, %21, %22, %23, %24, %25, %26, %27 in 2 : vector<16x16x4xf32>, vector<16x16x4xf32>, vector<16x16x4xf32>, vector<16x16x4xf32>, vector<16x16x4xf32>, vector<16x16x4xf32>, vector<16x16x4xf32>, vector<16x16x4xf32>, vector<16x16x4xf32> -> vector<16x16x36xf32>
    %29 = vector.shape_cast %28 : vector<16x16x36xf32> to vector<256x36xf32>
    %c0_61 = arith.constant 0 : index
    %c0_62 = arith.constant 0 : index
    %30 = vector.load %arg2[%c0_61, %c0_62] : memref<36x4xf32, #tpu.memory_space<vmem>>, vector<36x4xf32>
    %cst_63 = arith.constant dense<0.000000e+00> : vector<256x4xf32>
    %31 = tpu.matmul %29, %30, %cst_63 {dimension_numbers = #tpu.dot_dimension_numbers<[1], [0], [0], [1], [0, 0, 1, 1], [], []>} : vector<256x36xf32>, vector<36x4xf32>, vector<256x4xf32> -> vector<256x4xf32>
    %c0_64 = arith.constant 0 : index
    %c0_65 = arith.constant 0 : index
    %32 = vector.load %arg3[%c0_64, %c0_65] : memref<1x4xf32, #tpu.memory_space<vmem>>, vector<1x4xf32>
    %33 = vector.broadcast %32 : vector<1x4xf32> to vector<256x4xf32>
    %34 = arith.addf %31, %33 : vector<256x4xf32>
    %cst_66 = arith.constant 2.000000e+01 : f32
    %35 = vector.broadcast %cst_66 : f32 to vector<256x4xf32>
    %36 = arith.minimumf %34, %35 : vector<256x4xf32>
    %37 = math.exp %36 : vector<256x4xf32>
    %cst_67 = arith.constant 1.000000e+00 : f32
    %38 = vector.broadcast %cst_67 : f32 to vector<256x4xf32>
    %39 = arith.addf %37, %38 : vector<256x4xf32>
    %40 = arith.mulf %39, %39 : vector<256x4xf32>
    %cst_68 = arith.constant 1.000000e+00 : f32
    %41 = vector.broadcast %cst_68 : f32 to vector<256x4xf32>
    %42 = arith.subf %40, %41 : vector<256x4xf32>
    %cst_69 = arith.constant 1.000000e+00 : f32
    %43 = vector.broadcast %cst_69 : f32 to vector<256x4xf32>
    %44 = arith.addf %40, %43 : vector<256x4xf32>
    %45 = arith.divf %42, %44 : vector<256x4xf32>
    %46 = arith.mulf %34, %45 : vector<256x4xf32>
    %47 = vector.shape_cast %46 : vector<256x4xf32> to vector<16x16x4xf32>
    %c1_70 = arith.constant 1 : index
    %c1_71 = arith.constant 1 : index
    %c0_72 = arith.constant 0 : index
    %48 = vector.load %arg8[%c1_70, %c1_71, %c0_72] : memref<18x18x4xf32, #tpu.memory_space<vmem>>, vector<16x16x4xf32>
    tpu.vector_store %arg8[%c1_70, %c1_71, %c0_72], %47 {strides = array<i32>} : memref<18x18x4xf32, #tpu.memory_space<vmem>>, vector<16x16x4xf32>,
    %c0_73 = arith.constant 0 : index
    %c0_74 = arith.constant 0 : index
    %c0_75 = arith.constant 0 : index
    %49 = vector.load %arg8[%c0_73, %c0_74, %c0_75] : memref<18x18x4xf32, #tpu.memory_space<vmem>>, vector<16x16x4xf32>
    %c0_76 = arith.constant 0 : index
    %c1_77 = arith.constant 1 : index
    %c0_78 = arith.constant 0 : index
    %50 = vector.load %arg8[%c0_76, %c1_77, %c0_78] : memref<18x18x4xf32, #tpu.memory_space<vmem>>, vector<16x16x4xf32>
    %c0_79 = arith.constant 0 : index
    %c2_80 = arith.constant 2 : index
    %c0_81 = arith.constant 0 : index
    %51 = vector.load %arg8[%c0_79, %c2_80, %c0_81] : memref<18x18x4xf32, #tpu.memory_space<vmem>>, vector<16x16x4xf32>
    %c1_82 = arith.constant 1 : index
    %c0_83 = arith.constant 0 : index
    %c0_84 = arith.constant 0 : index
    %52 = vector.load %arg8[%c1_82, %c0_83, %c0_84] : memref<18x18x4xf32, #tpu.memory_space<vmem>>, vector<16x16x4xf32>
    %c1_85 = arith.constant 1 : index
    %c1_86 = arith.constant 1 : index
    %c0_87 = arith.constant 0 : index
    %53 = vector.load %arg8[%c1_85, %c1_86, %c0_87] : memref<18x18x4xf32, #tpu.memory_space<vmem>>, vector<16x16x4xf32>
    %c1_88 = arith.constant 1 : index
    %c2_89 = arith.constant 2 : index
    %c0_90 = arith.constant 0 : index
    %54 = vector.load %arg8[%c1_88, %c2_89, %c0_90] : memref<18x18x4xf32, #tpu.memory_space<vmem>>, vector<16x16x4xf32>
    %c2_91 = arith.constant 2 : index
    %c0_92 = arith.constant 0 : index
    %c0_93 = arith.constant 0 : index
    %55 = vector.load %arg8[%c2_91, %c0_92, %c0_93] : memref<18x18x4xf32, #tpu.memory_space<vmem>>, vector<16x16x4xf32>
    %c2_94 = arith.constant 2 : index
    %c1_95 = arith.constant 1 : index
    %c0_96 = arith.constant 0 : index
    %56 = vector.load %arg8[%c2_94, %c1_95, %c0_96] : memref<18x18x4xf32, #tpu.memory_space<vmem>>, vector<16x16x4xf32>
    %c2_97 = arith.constant 2 : index
    %c2_98 = arith.constant 2 : index
    %c0_99 = arith.constant 0 : index
    %57 = vector.load %arg8[%c2_97, %c2_98, %c0_99] : memref<18x18x4xf32, #tpu.memory_space<vmem>>, vector<16x16x4xf32>
    %58 = tpu.concatenate %49, %50, %51, %52, %53, %54, %55, %56, %57 in 2 : vector<16x16x4xf32>, vector<16x16x4xf32>, vector<16x16x4xf32>, vector<16x16x4xf32>, vector<16x16x4xf32>, vector<16x16x4xf32>, vector<16x16x4xf32>, vector<16x16x4xf32>, vector<16x16x4xf32> -> vector<16x16x36xf32>
    %59 = vector.shape_cast %58 : vector<16x16x36xf32> to vector<256x36xf32>
    %c0_100 = arith.constant 0 : index
    %c0_101 = arith.constant 0 : index
    %60 = vector.load %arg4[%c0_100, %c0_101] : memref<36x4xf32, #tpu.memory_space<vmem>>, vector<36x4xf32>
    %cst_102 = arith.constant dense<0.000000e+00> : vector<256x4xf32>
    %61 = tpu.matmul %59, %60, %cst_102 {dimension_numbers = #tpu.dot_dimension_numbers<[1], [0], [0], [1], [0, 0, 1, 1], [], []>} : vector<256x36xf32>, vector<36x4xf32>, vector<256x4xf32> -> vector<256x4xf32>
    %c0_103 = arith.constant 0 : index
    %c0_104 = arith.constant 0 : index
    %62 = vector.load %arg5[%c0_103, %c0_104] : memref<1x4xf32, #tpu.memory_space<vmem>>, vector<1x4xf32>
    %63 = vector.broadcast %62 : vector<1x4xf32> to vector<256x4xf32>
    %64 = arith.addf %61, %63 : vector<256x4xf32>
    %65 = vector.shape_cast %17 : vector<16x16x4xf32> to vector<256x4xf32>
    %cst_105 = arith.constant 5.000000e-01 : f32
    %66 = vector.broadcast %cst_105 : f32 to vector<256x4xf32>
    %67 = arith.mulf %66, %64 : vector<256x4xf32>
    %68 = arith.addf %65, %67 : vector<256x4xf32>
    %69 = vector.shape_cast %68 : vector<256x4xf32> to vector<16x16x4xf32>
    %c0_106 = arith.constant 0 : index
    %c0_107 = arith.constant 0 : index
    %c0_108 = arith.constant 0 : index
    %c0_109 = arith.constant 0 : index
    %70 = vector.load %arg6[%c0_106, %c0_107, %c0_108, %c0_109] : memref<1x16x16x4xf32, #tpu.memory_space<vmem>>, vector<1x16x16x4xf32>
    %71 = vector.shape_cast %70 : vector<1x16x16x4xf32> to vector<16x16x4xf32>
    %72 = vector.shape_cast %69 : vector<16x16x4xf32> to vector<1x16x16x4xf32>
    tpu.vector_store %arg6[%c0_106, %c0_107, %c0_108, %c0_109], %72 {strides = array<i32>} : memref<1x16x16x4xf32, #tpu.memory_space<vmem>>, vector<1x16x16x4xf32>,
    return
  }
  func.func @transform_0(%arg0: i32) -> (i32, i32, i32, i32) {
    %c0_i32 = arith.constant 0 : i32
    %c0_i32_0 = arith.constant 0 : i32
    %c0_i32_1 = arith.constant 0 : i32
    %c0_i32_2 = arith.constant 0 : i32
    return %arg0, %c0_i32, %c0_i32_0, %c0_i32_1 : i32, i32, i32, i32
  }
  func.func @transform_1(%arg0: i32) -> (i32, i32) {
    %c0_i32 = arith.constant 0 : i32
    %c0_i32_0 = arith.constant 0 : i32
    %c0_i32_1 = arith.constant 0 : i32
    return %c0_i32, %c0_i32_0 : i32, i32
  }
  func.func @transform_2(%arg0: i32) -> (i32, i32) {
    %c0_i32 = arith.constant 0 : i32
    %c0_i32_0 = arith.constant 0 : i32
    %c0_i32_1 = arith.constant 0 : i32
    return %c0_i32, %c0_i32_0 : i32, i32
  }
  func.func @transform_3(%arg0: i32) -> (i32, i32) {
    %c0_i32 = arith.constant 0 : i32
    %c0_i32_0 = arith.constant 0 : i32
    %c0_i32_1 = arith.constant 0 : i32
    return %c0_i32, %c0_i32_0 : i32, i32
  }
  func.func @transform_4(%arg0: i32) -> (i32, i32) {
    %c0_i32 = arith.constant 0 : i32
    %c0_i32_0 = arith.constant 0 : i32
    %c0_i32_1 = arith.constant 0 : i32
    return %c0_i32, %c0_i32_0 : i32, i32
  }
  func.func @transform_5(%arg0: i32) -> (i32, i32, i32, i32) {
    %c0_i32 = arith.constant 0 : i32
    %c0_i32_0 = arith.constant 0 : i32
    %c0_i32_1 = arith.constant 0 : i32
    %c0_i32_2 = arith.constant 0 : i32
    return %arg0, %c0_i32, %c0_i32_0, %c0_i32_1 : i32, i32, i32, i32
  }
}

</mosaic_0001>

<llo_original>
// kernel: residual_block_forward.1
$region0: #{residual_block_forward.1}
  #allocation0 [shape = 'u32[]', space=smem, size = 0x4, offset = 0x4, fixed_abs, tag = 'smem constant byte address 0x4 - core index']
  #allocation1 [shape = 'u32[144,128]{1,0:T(1,128)}', space=vmem, size = 0x12000, scoped, tag = 'internal scratch']
  #allocation2 [shape = 'f32[18,18,4]{2,1,0:T(8,128)}', space=vmem, size = 0x36000, scoped, tag = 'scratch operand']
  #allocation3 [shape = 'f32[18,18,4]{2,1,0:T(8,128)}', space=vmem, size = 0x36000, scoped, tag = 'scratch operand']
  %s0 = inlined_call_operand.vmem [shape: f32[2,16,16,4], index: 0, kind: input, shape index: {}, may-alias: {0,5}]
  %s1 = inlined_call_operand.vmem [shape: f32[36,4], index: 1, kind: input, shape index: {}]
  %s2 = inlined_call_operand.vmem [shape: f32[1,4], index: 2, kind: input, shape index: {}]
  %s3 = inlined_call_operand.vmem [shape: f32[36,4], index: 3, kind: input, shape index: {}]
  %s4 = inlined_call_operand.vmem [shape: f32[1,4], index: 4, kind: input, shape index: {}]
  %s5 = inlined_call_operand.vmem [shape: f32[2,16,16,4], index: 5, kind: output, shape index: {}, may-alias: {0,5}]
  %s6 = sld [smem:[#allocation0]]
  $region53: #{residual_block_forward.1} parent=0
    _
  %s8 = ssub.s32 1, %s6
  %s9 = scalar_select 0, %s8, %s6
  loop: start=0, step=1, limit=4
  $region2: #{residual_block_forward.1} parent=0 // loop_pre_header
    _
  $region3: #{residual_block_forward.1} parent=0 // loop_header
    %s11 = sphi 0, %s15
    %p12 = scmp.ge.s32.totalorder %s11, 4
    %s21 = sphi 0, %s23
    %s24 = sphi 0, %s21
    %s25 = sphi 0, %s24
    %s41 = sphi 0, %s25
    %s45 = sphi 0, %s45
    %s47 = sphi 0, %s45
    %s48 = sphi 0, %s47
    %s62 = sphi 0, %s48
    %s66 = sphi 0, %s66
    %s68 = sphi 0, %s66
    %s69 = sphi 0, %s68
    %s83 = sphi 0, %s69
    %s87 = sphi 0, %s87
    %s89 = sphi 0, %s87
    %s90 = sphi 0, %s89
    %s104 = sphi 0, %s90
    %s108 = sphi 0, %s108
    %s110 = sphi 0, %s108
    %s111 = sphi 0, %s110
    %s125 = sphi 0, %s111
    %s131 = sphi 0, %s133
    %s134 = sphi 0, %s131
    %s135 = sphi 0, %s134
    %s151 = sphi 0, %s135
  $region4: #{residual_block_forward.1} parent=0 // loop_header_branch
    %14 = sbr.rel (%p12) target = $region8
  $region5: #{residual_block_forward.1} parent=0 // loop_body
    %s16 = ssub.s32 %s11, 1
    %s17 = ssub.s32 %s11, 2
    %s18 = sadd.s32 %s11, 1
    %s19 = ssub.s32 %s11, %s18
    %p20 = scmp.eq.s32.totalorder %s19, 0
    %s22 = sadd.s32 %s21, 1
    %s23 = scalar_select %p20, %s21, %s22
    %p26 = pneg %p20
    %p27 = scmp.eq.s32.totalorder %s11, 1
    %p28 = por %p26, %p27
    %p29 = scmp.ne.s32.totalorder %s21, %s24
    %p30 = scmp.eq.s32.totalorder %s11, 0
    %p31 = por %p29, %p30
    %p32 = scmp.ne.s32.totalorder %s21, %s24
    %p33 = scmp.eq.s32.totalorder %s16, 1
    %p34 = por %p32, %p33
    %p35 = scmp.ne.s32.totalorder %s24, %s25
    %p36 = scmp.eq.s32.totalorder %s16, 0
    %p37 = por %p35, %p36
    %p38 = scmp.ne.s32.totalorder %s24, %s25
    %p39 = scmp.eq.s32.totalorder %s17, 1
    %p40 = por %p38, %p39
    %p42 = scmp.ne.s32.totalorder %s25, %s41
    %p43 = scmp.eq.s32.totalorder %s17, 0
    %p44 = por %p42, %p43
    %s46 = sadd.s32 %s45, 1
    %p49 = scmp.eq.s32.totalorder %s11, 1
    %p50 = scmp.ne.s32.totalorder %s45, %s47
    %p51 = scmp.eq.s32.totalorder %s11, 0
    %p52 = por %p50, %p51
    %p53 = scmp.ne.s32.totalorder %s45, %s47
    %p54 = scmp.eq.s32.totalorder %s16, 1
    %p55 = por %p53, %p54
    %p56 = scmp.ne.s32.totalorder %s47, %s48
    %p57 = scmp.eq.s32.totalorder %s16, 0
    %p58 = por %p56, %p57
    %p59 = scmp.ne.s32.totalorder %s47, %s48
    %p60 = scmp.eq.s32.totalorder %s17, 1
    %p61 = por %p59, %p60
    %p63 = scmp.ne.s32.totalorder %s48, %s62
    %p64 = scmp.eq.s32.totalorder %s17, 0
    %p65 = por %p63, %p64
    %s67 = sadd.s32 %s66, 1
    %p70 = scmp.eq.s32.totalorder %s11, 1
    %p71 = scmp.ne.s32.totalorder %s66, %s68
    %p72 = scmp.eq.s32.totalorder %s11, 0
    %p73 = por %p71, %p72
    %p74 = scmp.ne.s32.totalorder %s66, %s68
    %p75 = scmp.eq.s32.totalorder %s16, 1
    %p76 = por %p74, %p75
    %p77 = scmp.ne.s32.totalorder %s68, %s69
    %p78 = scmp.eq.s32.totalorder %s16, 0
    %p79 = por %p77, %p78
    %p80 = scmp.ne.s32.totalorder %s68, %s69
    %p81 = scmp.eq.s32.totalorder %s17, 1
    %p82 = por %p80, %p81
    %p84 = scmp.ne.s32.totalorder %s69, %s83
    %p85 = scmp.eq.s32.totalorder %s17, 0
    %p86 = por %p84, %p85
    %s88 = sadd.s32 %s87, 1
    %p91 = scmp.eq.s32.totalorder %s11, 1
    %p92 = scmp.ne.s32.totalorder %s87, %s89
    %p93 = scmp.eq.s32.totalorder %s11, 0
    %p94 = por %p92, %p93
    %p95 = scmp.ne.s32.totalorder %s87, %s89
    %p96 = scmp.eq.s32.totalorder %s16, 1
    %p97 = por %p95, %p96
    %p98 = scmp.ne.s32.totalorder %s89, %s90
    %p99 = scmp.eq.s32.totalorder %s16, 0
    %p100 = por %p98, %p99
    %p101 = scmp.ne.s32.totalorder %s89, %s90
    %p102 = scmp.eq.s32.totalorder %s17, 1
    %p103 = por %p101, %p102
    %p105 = scmp.ne.s32.totalorder %s90, %s104
    %p106 = scmp.eq.s32.totalorder %s17, 0
    %p107 = por %p105, %p106
    %s109 = sadd.s32 %s108, 1
    %p112 = scmp.eq.s32.totalorder %s11, 1
    %p113 = scmp.ne.s32.totalorder %s108, %s110
    %p114 = scmp.eq.s32.totalorder %s11, 0
    %p115 = por %p113, %p114
    %p116 = scmp.ne.s32.totalorder %s108, %s110
    %p117 = scmp.eq.s32.totalorder %s16, 1
    %p118 = por %p116, %p117
    %p119 = scmp.ne.s32.totalorder %s110, %s111
    %p120 = scmp.eq.s32.totalorder %s16, 0
    %p121 = por %p119, %p120
    %p122 = scmp.ne.s32.totalorder %s110, %s111
    %p123 = scmp.eq.s32.totalorder %s17, 1
    %p124 = por %p122, %p123
    %p126 = scmp.ne.s32.totalorder %s111, %s125
    %p127 = scmp.eq.s32.totalorder %s17, 0
    %p128 = por %p126, %p127
    %s129 = ssub.s32 %s11, %s18
    %p130 = scmp.eq.s32.totalorder %s129, 0
    %s132 = sadd.s32 %s131, 1
    %s133 = scalar_select %p130, %s131, %s132
    %p136 = pneg %p130
    %p137 = scmp.eq.s32.totalorder %s11, 1
    %p138 = por %p136, %p137
    %p139 = scmp.ne.s32.totalorder %s131, %s134
    %p140 = scmp.eq.s32.totalorder %s11, 0
    %p141 = por %p139, %p140
    %p142 = scmp.ne.s32.totalorder %s131, %s134
    %p143 = scmp.eq.s32.totalorder %s16, 1
    %p144 = por %p142, %p143
    %p145 = scmp.ne.s32.totalorder %s134, %s135
    %p146 = scmp.eq.s32.totalorder %s16, 0
    %p147 = por %p145, %p146
    %p148 = scmp.ne.s32.totalorder %s134, %s135
    %p149 = scmp.eq.s32.totalorder %s17, 1
    %p150 = por %p148, %p149
    %p152 = scmp.ne.s32.totalorder %s135, %s151
    %p153 = scmp.eq.s32.totalorder %s17, 0
    %p154 = por %p152, %p153
    %p155 = scmp.le.s32.totalorder 1, %s11
    %p156 = scmp.lt.s32.totalorder %s11, 3
    %p157 = pnand %p155, %p156
    %p158 = pneg %p157
    // Predicated region
    $region9: #{residual_block_forward.1} parent=5 // pred_check
      _
    $region10: #{residual_block_forward.1} parent=5 // pred_check_branch
      %160 = sbr.rel (%p157) target = $region12
    $region11: #{residual_block_forward.1} parent=5 // pred_region
      %s161 = ssub.s32 %s11, 1
      // Predicated region
      $region13: #{residual_block_forward.1} parent=11 // pred_check
        %p162 = pneg %p58
      $region14: #{residual_block_forward.1} parent=11 // pred_check_branch
        %164 = sbr.rel (%p162) target = $region16
      $region15: #{residual_block_forward.1} parent=11 // pred_region
        _
      $region16: #{residual_block_forward.1} parent=11 // pred_fallthru
        _
      // Predicated region
      $region17: #{residual_block_forward.1} parent=11 // pred_check
        %p165 = pneg %p79
      $region18: #{residual_block_forward.1} parent=11 // pred_check_branch
        %167 = sbr.rel (%p165) target = $region20
      $region19: #{residual_block_forward.1} parent=11 // pred_region
        _
      $region20: #{residual_block_forward.1} parent=11 // pred_fallthru
        _
      // Predicated region
      $region21: #{residual_block_forward.1} parent=11 // pred_check
        %p168 = pneg %p100
      $region22: #{residual_block_forward.1} parent=11 // pred_check_branch
        %170 = sbr.rel (%p168) target = $region24
      $region23: #{residual_block_forward.1} parent=11 // pred_region
        _
      $region24: #{residual_block_forward.1} parent=11 // pred_fallthru
        _
      // Predicated region
      $region25: #{residual_block_forward.1} parent=11 // pred_check
        %p171 = pneg %p121
      $region26: #{residual_block_forward.1} parent=11 // pred_check_branch
        %173 = sbr.rel (%p171) target = $region28
      $region27: #{residual_block_forward.1} parent=11 // pred_region
        _
      $region28: #{residual_block_forward.1} parent=11 // pred_fallthru
        _
    $region12: #{residual_block_forward.1} parent=5 // pred_fallthru
      _
    %p174 = scmp.lt.s32.totalorder %s11, 2
    // Predicated region
    $region29: #{residual_block_forward.1} parent=5 // pred_check
      %p175 = pneg %p174
    $region30: #{residual_block_forward.1} parent=5 // pred_check_branch
      %177 = sbr.rel (%p175) target = $region32
    $region31: #{residual_block_forward.1} parent=5 // pred_region
      // Predicated region
      $region33: #{residual_block_forward.1} parent=31 // pred_check
        %p178 = pneg %p31
      $region34: #{residual_block_forward.1} parent=31 // pred_check_branch
        %180 = sbr.rel (%p178) target = $region36
      $region35: #{residual_block_forward.1} parent=31 // pred_region
        %p181 = scmp.lt.s32.totalorder %s11, 1
        %s182 = scalar_select %p181, %s11, 1
        %s183 = smul.addr %s182, 32
        %s184 = smul.addr %s183, 8
        %s185 = scalar_lea.vmem %s0, %s184
      $region36: #{residual_block_forward.1} parent=31 // pred_fallthru
        _
    $region32: #{residual_block_forward.1} parent=5 // pred_fallthru
      _
    %p186 = scmp.le.s32.totalorder 1, %s11
    %p187 = scmp.lt.s32.totalorder %s11, 3
    %p188 = pnand %p186, %p187
    %p189 = pneg %p188
    // Predicated region
    $region37: #{residual_block_forward.1} parent=5 // pred_check
      _
    $region38: #{residual_block_forward.1} parent=5 // pred_check_branch
      %191 = sbr.rel (%p188) target = $region40
    $region39: #{residual_block_forward.1} parent=5 // pred_region
      %s192 = ssub.s32 %s11, 1
      %p193 = scmp.lt.s32.totalorder %s16, 1
      %s194 = scalar_select %p193, %s16, 1
      %s195 = smul.addr %s194, 32
      %s196 = smul.addr %s195, 8
      %s197 = scalar_lea.vmem %s0, %s196
      %p198 = pneg %p37
      %p199 = pneg %p34
      %p200 = pneg %p58
      %p201 = pneg %p55
      %p202 = pneg %p79
      %p203 = pneg %p76
      %p204 = pneg %p100
      %p205 = pneg %p97
      %p206 = pneg %p121
      %p207 = pneg %p118
      %p208 = pneg %p147
      %p209 = pneg %p144
      %p210 = scmp.lt.s32.totalorder %s16, 1
      %s211 = scalar_select %p210, %s16, 1
      %s212 = smul.addr %s211, 32
      %s213 = smul.addr %s212, 8
      %s214 = scalar_lea.vmem %s5, %s213
      %p215 = scmp.lt.s32.totalorder %s16, 1
      %s216 = scalar_select %p215, %s16, 1
      %s217 = smul.addr %s216, 32
      %s218 = smul.addr %s217, 8
      %s219 = scalar_lea.vmem %s0, %s218
      %p220 = scmp.lt.s32.totalorder %s16, 1
      %s221 = scalar_select %p220, %s16, 1
      %s222 = smul.addr %s221, 32
      %s223 = smul.addr %s222, 8
      %s224 = scalar_lea.vmem %s5, %s223
      %vm225 = vcmask 31744
      %226 = vst.msk [vmem:[#allocation2] sm:$0xff] %vm225, 0.0
      %227 = vst.msk [vmem:[#allocation2 + $0x8] sm:$0xff] %vm225, 0.0
      %vm228 = vcmask 25600
      %229 = vst.msk [vmem:[#allocation2 + $0x10] sm:$0x3] %vm228, 0.0
      %s230 = scalar_lea.vmem [#allocation2], 408
      %231 = vst.msk [vmem:[%s230] sm:$0xff] %vm225, 0.0
      %232 = vst.msk [vmem:[%s230 + $0x8] sm:$0xff] %vm225, 0.0
      %233 = vst.msk [vmem:[%s230 + $0x10] sm:$0x3] %vm228, 0.0
      %vm234 = vcmask 24576
      %235 = vst.msk [vmem:[#allocation2] sm:$0x1] %vm234, 0.0
      %236 = vst.msk [vmem:[#allocation2 + $0x18] sm:$0x1] %vm234, 0.0
      %237 = vst.msk [vmem:[#allocation2 + $0x30] sm:$0x1] %vm234, 0.0
      %238 = vst.msk [vmem:[#allocation2 + $0x48] sm:$0x1] %vm234, 0.0
      %239 = vst.msk [vmem:[#allocation2 + $0x60] sm:$0x1] %vm234, 0.0
      %240 = vst.msk [vmem:[#allocation2 + $0x78] sm:$0x1] %vm234, 0.0
      %241 = vst.msk [vmem:[#allocation2 + $0x90] sm:$0x1] %vm234, 0.0
      %242 = vst.msk [vmem:[#allocation2 + $0xa8] sm:$0x1] %vm234, 0.0
      %243 = vst.msk [vmem:[#allocation2 + $0xc0] sm:$0x1] %vm234, 0.0
      %244 = vst.msk [vmem:[#allocation2 + $0xd8] sm:$0x1] %vm234, 0.0
      %245 = vst.msk [vmem:[#allocation2 + $0xf0] sm:$0x1] %vm234, 0.0
      %246 = vst.msk [vmem:[#allocation2 + $0x108] sm:$0x1] %vm234, 0.0
      %247 = vst.msk [vmem:[#allocation2 + $0x120] sm:$0x1] %vm234, 0.0
      %248 = vst.msk [vmem:[#allocation2 + $0x138] sm:$0x1] %vm234, 0.0
      %249 = vst.msk [vmem:[#allocation2 + $0x150] sm:$0x1] %vm234, 0.0
      %250 = vst.msk [vmem:[#allocation2 + $0x168] sm:$0x1] %vm234, 0.0
      %251 = vst.msk [vmem:[#allocation2 + $0x180] sm:$0x1] %vm234, 0.0
      %252 = vst.msk [vmem:[#allocation2 + $0x198] sm:$0x1] %vm234, 0.0
      %253 = vst.msk [vmem:[#allocation2 + $0x11] sm:$0x1] %vm234, 0.0
      %254 = vst.msk [vmem:[#allocation2 + $0x29] sm:$0x1] %vm234, 0.0
      %255 = vst.msk [vmem:[#allocation2 + $0x41] sm:$0x1] %vm234, 0.0
      %256 = vst.msk [vmem:[#allocation2 + $0x59] sm:$0x1] %vm234, 0.0
      %257 = vst.msk [vmem:[#allocation2 + $0x71] sm:$0x1] %vm234, 0.0
      %258 = vst.msk [vmem:[#allocation2 + $0x89] sm:$0x1] %vm234, 0.0
      %259 = vst.msk [vmem:[#allocation2 + $0xa1] sm:$0x1] %vm234, 0.0
      %260 = vst.msk [vmem:[#allocation2 + $0xb9] sm:$0x1] %vm234, 0.0
      %261 = vst.msk [vmem:[#allocation2 + $0xd1] sm:$0x1] %vm234, 0.0
      %262 = vst.msk [vmem:[#allocation2 + $0xe9] sm:$0x1] %vm234, 0.0
      %263 = vst.msk [vmem:[#allocation2 + $0x101] sm:$0x1] %vm234, 0.0
      %264 = vst.msk [vmem:[#allocation2 + $0x119] sm:$0x1] %vm234, 0.0
      %265 = vst.msk [vmem:[#allocation2 + $0x131] sm:$0x1] %vm234, 0.0
      %266 = vst.msk [vmem:[#allocation2 + $0x149] sm:$0x1] %vm234, 0.0
      %267 = vst.msk [vmem:[#allocation2 + $0x161] sm:$0x1] %vm234, 0.0
      %268 = vst.msk [vmem:[#allocation2 + $0x179] sm:$0x1] %vm234, 0.0
      %269 = vst.msk [vmem:[#allocation2 + $0x191] sm:$0x1] %vm234, 0.0
      %270 = vst.msk [vmem:[#allocation2 + $0x1a9] sm:$0x1] %vm234, 0.0
      %271 = vst.msk [vmem:[#allocation3] sm:$0xff] %vm225, 0.0
      %272 = vst.msk [vmem:[#allocation3 + $0x8] sm:$0xff] %vm225, 0.0
      %273 = vst.msk [vmem:[#allocation3 + $0x10] sm:$0x3] %vm228, 0.0
      %s274 = scalar_lea.vmem [#allocation3], 408
      %275 = vst.msk [vmem:[%s274] sm:$0xff] %vm225, 0.0
      %276 = vst.msk [vmem:[%s274 + $0x8] sm:$0xff] %vm225, 0.0
      %277 = vst.msk [vmem:[%s274 + $0x10] sm:$0x3] %vm228, 0.0
      %278 = vst.msk [vmem:[#allocation3] sm:$0x1] %vm234, 0.0
      %279 = vst.msk [vmem:[#allocation3 + $0x18] sm:$0x1] %vm234, 0.0
      %280 = vst.msk [vmem:[#allocation3 + $0x30] sm:$0x1] %vm234, 0.0
      %281 = vst.msk [vmem:[#allocation3 + $0x48] sm:$0x1] %vm234, 0.0
      %282 = vst.msk [vmem:[#allocation3 + $0x60] sm:$0x1] %vm234, 0.0
      %283 = vst.msk [vmem:[#allocation3 + $0x78] sm:$0x1] %vm234, 0.0
      %284 = vst.msk [vmem:[#allocation3 + $0x90] sm:$0x1] %vm234, 0.0
      %285 = vst.msk [vmem:[#allocation3 + $0xa8] sm:$0x1] %vm234, 0.0
      %286 = vst.msk [vmem:[#allocation3 + $0xc0] sm:$0x1] %vm234, 0.0
      %287 = vst.msk [vmem:[#allocation3 + $0xd8] sm:$0x1] %vm234, 0.0
      %288 = vst.msk [vmem:[#allocation3 + $0xf0] sm:$0x1] %vm234, 0.0
      %289 = vst.msk [vmem:[#allocation3 + $0x108] sm:$0x1] %vm234, 0.0
      %290 = vst.msk [vmem:[#allocation3 + $0x120] sm:$0x1] %vm234, 0.0
      %291 = vst.msk [vmem:[#allocation3 + $0x138] sm:$0x1] %vm234, 0.0
      %292 = vst.msk [vmem:[#allocation3 + $0x150] sm:$0x1] %vm234, 0.0
      %293 = vst.msk [vmem:[#allocation3 + $0x168] sm:$0x1] %vm234, 0.0
      %294 = vst.msk [vmem:[#allocation3 + $0x180] sm:$0x1] %vm234, 0.0
      %295 = vst.msk [vmem:[#allocation3 + $0x198] sm:$0x1] %vm234, 0.0
      %296 = vst.msk [vmem:[#allocation3 + $0x11] sm:$0x1] %vm234, 0.0
      %297 = vst.msk [vmem:[#allocation3 + $0x29] sm:$0x1] %vm234, 0.0
      %298 = vst.msk [vmem:[#allocation3 + $0x41] sm:$0x1] %vm234, 0.0
      %299 = vst.msk [vmem:[#allocation3 + $0x59] sm:$0x1] %vm234, 0.0
      %300 = vst.msk [vmem:[#allocation3 + $0x71] sm:$0x1] %vm234, 0.0
      %301 = vst.msk [vmem:[#allocation3 + $0x89] sm:$0x1] %vm234, 0.0
      %302 = vst.msk [vmem:[#allocation3 + $0xa1] sm:$0x1] %vm234, 0.0
      %303 = vst.msk [vmem:[#allocation3 + $0xb9] sm:$0x1] %vm234, 0.0
      %304 = vst.msk [vmem:[#allocation3 + $0xd1] sm:$0x1] %vm234, 0.0
      %305 = vst.msk [vmem:[#allocation3 + $0xe9] sm:$0x1] %vm234, 0.0
      %306 = vst.msk [vmem:[#allocation3 + $0x101] sm:$0x1] %vm234, 0.0
      %307 = vst.msk [vmem:[#allocation3 + $0x119] sm:$0x1] %vm234, 0.0
      %308 = vst.msk [vmem:[#allocation3 + $0x131] sm:$0x1] %vm234, 0.0
      %309 = vst.msk [vmem:[#allocation3 + $0x149] sm:$0x1] %vm234, 0.0
      %310 = vst.msk [vmem:[#allocation3 + $0x161] sm:$0x1] %vm234, 0.0
      %311 = vst.msk [vmem:[#allocation3 + $0x179] sm:$0x1] %vm234, 0.0
      %312 = vst.msk [vmem:[#allocation3 + $0x191] sm:$0x1] %vm234, 0.0
      %313 = vst.msk [vmem:[#allocation3 + $0x1a9] sm:$0x1] %vm234, 0.0
      %v314 = vld [vmem:[%s219] sm:$0xff]
      %v315 = vld [vmem:[%s219 + $0x8] sm:$0xff]
      %v316 = vld [vmem:[%s219 + $0x10] sm:$0xff]
      %v317 = vld [vmem:[%s219 + $0x18] sm:$0xff]
      %v318 = vld [vmem:[%s219 + $0x20] sm:$0xff]
      %v319 = vld [vmem:[%s219 + $0x28] sm:$0xff]
      %v320 = vld [vmem:[%s219 + $0x30] sm:$0xff]
      %v321 = vld [vmem:[%s219 + $0x38] sm:$0xff]
      %v322 = vld [vmem:[%s219 + $0x40] sm:$0xff]
      %v323 = vld [vmem:[%s219 + $0x48] sm:$0xff]
      %v324 = vld [vmem:[%s219 + $0x50] sm:$0xff]
      %v325 = vld [vmem:[%s219 + $0x58] sm:$0xff]
      %v326 = vld [vmem:[%s219 + $0x60] sm:$0xff]
      %v327 = vld [vmem:[%s219 + $0x68] sm:$0xff]
      %v328 = vld [vmem:[%s219 + $0x70] sm:$0xff]
      %v329 = vld [vmem:[%s219 + $0x78] sm:$0xff]
      %v330 = vld [vmem:[%s219 + $0x80] sm:$0xff]
      %v331 = vld [vmem:[%s219 + $0x88] sm:$0xff]
      %v332 = vld [vmem:[%s219 + $0x90] sm:$0xff]
      %v333 = vld [vmem:[%s219 + $0x98] sm:$0xff]
      %v334 = vld [vmem:[%s219 + $0xa0] sm:$0xff]
      %v335 = vld [vmem:[%s219 + $0xa8] sm:$0xff]
      %v336 = vld [vmem:[%s219 + $0xb0] sm:$0xff]
      %v337 = vld [vmem:[%s219 + $0xb8] sm:$0xff]
      %v338 = vld [vmem:[%s219 + $0xc0] sm:$0xff]
      %v339 = vld [vmem:[%s219 + $0xc8] sm:$0xff]
      %v340 = vld [vmem:[%s219 + $0xd0] sm:$0xff]
      %v341 = vld [vmem:[%s219 + $0xd8] sm:$0xff]
      %v342 = vld [vmem:[%s219 + $0xe0] sm:$0xff]
      %v343 = vld [vmem:[%s219 + $0xe8] sm:$0xff]
      %v344 = vld [vmem:[%s219 + $0xf0] sm:$0xff]
      %v345 = vld [vmem:[%s219 + $0xf8] sm:$0xff]
      %s346 = scalar_lea.vmem [#allocation2], 24
      %347 = vst.msk [vmem:[%s346 + $0x1] sm:$0xff] %vm225, %v314
      %348 = vst.msk [vmem:[%s346 + $0x9] sm:$0xff] %vm225, %v315
      %349 = vst.msk [vmem:[%s346 + $0x19] sm:$0xff] %vm225, %v316
      %350 = vst.msk [vmem:[%s346 + $0x21] sm:$0xff] %vm225, %v317
      %351 = vst.msk [vmem:[%s346 + $0x31] sm:$0xff] %vm225, %v318
      %352 = vst.msk [vmem:[%s346 + $0x39] sm:$0xff] %vm225, %v319
      %353 = vst.msk [vmem:[%s346 + $0x49] sm:$0xff] %vm225, %v320
      %354 = vst.msk [vmem:[%s346 + $0x51] sm:$0xff] %vm225, %v321
      %355 = vst.msk [vmem:[%s346 + $0x61] sm:$0xff] %vm225, %v322
      %356 = vst.msk [vmem:[%s346 + $0x69] sm:$0xff] %vm225, %v323
      %357 = vst.msk [vmem:[%s346 + $0x79] sm:$0xff] %vm225, %v324
      %358 = vst.msk [vmem:[%s346 + $0x81] sm:$0xff] %vm225, %v325
      %359 = vst.msk [vmem:[%s346 + $0x91] sm:$0xff] %vm225, %v326
      %360 = vst.msk [vmem:[%s346 + $0x99] sm:$0xff] %vm225, %v327
      %361 = vst.msk [vmem:[%s346 + $0xa9] sm:$0xff] %vm225, %v328
      %362 = vst.msk [vmem:[%s346 + $0xb1] sm:$0xff] %vm225, %v329
      %363 = vst.msk [vmem:[%s346 + $0xc1] sm:$0xff] %vm225, %v330
      %364 = vst.msk [vmem:[%s346 + $0xc9] sm:$0xff] %vm225, %v331
      %365 = vst.msk [vmem:[%s346 + $0xd9] sm:$0xff] %vm225, %v332
      %366 = vst.msk [vmem:[%s346 + $0xe1] sm:$0xff] %vm225, %v333
      %367 = vst.msk [vmem:[%s346 + $0xf1] sm:$0xff] %vm225, %v334
      %368 = vst.msk [vmem:[%s346 + $0xf9] sm:$0xff] %vm225, %v335
      %369 = vst.msk [vmem:[%s346 + $0x109] sm:$0xff] %vm225, %v336
      %370 = vst.msk [vmem:[%s346 + $0x111] sm:$0xff] %vm225, %v337
      %371 = vst.msk [vmem:[%s346 + $0x121] sm:$0xff] %vm225, %v338
      %372 = vst.msk [vmem:[%s346 + $0x129] sm:$0xff] %vm225, %v339
      %373 = vst.msk [vmem:[%s346 + $0x139] sm:$0xff] %vm225, %v340
      %374 = vst.msk [vmem:[%s346 + $0x141] sm:$0xff] %vm225, %v341
      %375 = vst.msk [vmem:[%s346 + $0x151] sm:$0xff] %vm225, %v342
      %376 = vst.msk [vmem:[%s346 + $0x159] sm:$0xff] %vm225, %v343
      %377 = vst.msk [vmem:[%s346 + $0x169] sm:$0xff] %vm225, %v344
      %378 = vst.msk [vmem:[%s346 + $0x171] sm:$0xff] %vm225, %v345
      %v379 = vld [vmem:[#allocation2] sm:$0xff]
      %v380 = vld [vmem:[#allocation2 + $0x8] sm:$0xff]
      %v381 = vld [vmem:[#allocation2 + $0x18] sm:$0xff]
      %v382 = vld [vmem:[#allocation2 + $0x20] sm:$0xff]
      %v383 = vld [vmem:[#allocation2 + $0x30] sm:$0xff]
      %v384 = vld [vmem:[#allocation2 + $0x38] sm:$0xff]
      %v385 = vld [vmem:[#allocation2 + $0x48] sm:$0xff]
      %v386 = vld [vmem:[#allocation2 + $0x50] sm:$0xff]
      %v387 = vld [vmem:[#allocation2 + $0x60] sm:$0xff]
      %v388 = vld [vmem:[#allocation2 + $0x68] sm:$0xff]
      %v389 = vld [vmem:[#allocation2 + $0x78] sm:$0xff]
      %v390 = vld [vmem:[#allocation2 + $0x80] sm:$0xff]
      %v391 = vld [vmem:[#allocation2 + $0x90] sm:$0xff]
      %v392 = vld [vmem:[#allocation2 + $0x98] sm:$0xff]
      %v393 = vld [vmem:[#allocation2 + $0xa8] sm:$0xff]
      %v394 = vld [vmem:[#allocation2 + $0xb0] sm:$0xff]
      %v395 = vld [vmem:[#allocation2 + $0xc0] sm:$0xff]
      %v396 = vld [vmem:[#allocation2 + $0xc8] sm:$0xff]
      %v397 = vld [vmem:[#allocation2 + $0xd8] sm:$0xff]
      %v398 = vld [vmem:[#allocation2 + $0xe0] sm:$0xff]
      %v399 = vld [vmem:[#allocation2 + $0xf0] sm:$0xff]
      %v400 = vld [vmem:[#allocation2 + $0xf8] sm:$0xff]
      %v401 = vld [vmem:[#allocation2 + $0x108] sm:$0xff]
      %v402 = vld [vmem:[#allocation2 + $0x110] sm:$0xff]
      %v403 = vld [vmem:[#allocation2 + $0x120] sm:$0xff]
      %v404 = vld [vmem:[#allocation2 + $0x128] sm:$0xff]
      %v405 = vld [vmem:[#allocation2 + $0x138] sm:$0xff]
      %v406 = vld [vmem:[#allocation2 + $0x140] sm:$0xff]
      %v407 = vld [vmem:[#allocation2 + $0x150] sm:$0xff]
      %v408 = vld [vmem:[#allocation2 + $0x158] sm:$0xff]
      %v409 = vld [vmem:[#allocation2 + $0x168] sm:$0xff]
      %v410 = vld [vmem:[#allocation2 + $0x170] sm:$0xff]
      %v411 = vld [vmem:[#allocation2 + $0x1] sm:$0xff]
      %v412 = vld [vmem:[#allocation2 + $0x9] sm:$0xff]
      %v413 = vld [vmem:[#allocation2 + $0x19] sm:$0xff]
      %v414 = vld [vmem:[#allocation2 + $0x21] sm:$0xff]
      %v415 = vld [vmem:[#allocation2 + $0x31] sm:$0xff]
      %v416 = vld [vmem:[#allocation2 + $0x39] sm:$0xff]
      %v417 = vld [vmem:[#allocation2 + $0x49] sm:$0xff]
      %v418 = vld [vmem:[#allocation2 + $0x51] sm:$0xff]
      %v419 = vld [vmem:[#allocation2 + $0x61] sm:$0xff]
      %v420 = vld [vmem:[#allocation2 + $0x69] sm:$0xff]
      %v421 = vld [vmem:[#allocation2 + $0x79] sm:$0xff]
      %v422 = vld [vmem:[#allocation2 + $0x81] sm:$0xff]
      %v423 = vld [vmem:[#allocation2 + $0x91] sm:$0xff]
      %v424 = vld [vmem:[#allocation2 + $0x99] sm:$0xff]
      %v425 = vld [vmem:[#allocation2 + $0xa9] sm:$0xff]
      %v426 = vld [vmem:[#allocation2 + $0xb1] sm:$0xff]
      %v427 = vld [vmem:[#allocation2 + $0xc1] sm:$0xff]
      %v428 = vld [vmem:[#allocation2 + $0xc9] sm:$0xff]
      %v429 = vld [vmem:[#allocation2 + $0xd9] sm:$0xff]
      %v430 = vld [vmem:[#allocation2 + $0xe1] sm:$0xff]
      %v431 = vld [vmem:[#allocation2 + $0xf1] sm:$0xff]
      %v432 = vld [vmem:[#allocation2 + $0xf9] sm:$0xff]
      %v433 = vld [vmem:[#allocation2 + $0x109] sm:$0xff]
      %v434 = vld [vmem:[#allocation2 + $0x111] sm:$0xff]
      %v435 = vld [vmem:[#allocation2 + $0x121] sm:$0xff]
      %v436 = vld [vmem:[#allocation2 + $0x129] sm:$0xff]
      %v437 = vld [vmem:[#allocation2 + $0x139] sm:$0xff]
      %v438 = vld [vmem:[#allocation2 + $0x141] sm:$0xff]
      %v439 = vld [vmem:[#allocation2 + $0x151] sm:$0xff]
      %v440 = vld [vmem:[#allocation2 + $0x159] sm:$0xff]
      %v441 = vld [vmem:[#allocation2 + $0x169] sm:$0xff]
      %v442 = vld [vmem:[#allocation2 + $0x171] sm:$0xff]
      %v443 = vld [vmem:[#allocation2 + $0x2] sm:$0xff]
      %v444 = vld [vmem:[#allocation2 + $0xa] sm:$0xff]
      %v445 = vld [vmem:[#allocation2 + $0x1a] sm:$0xff]
      %v446 = vld [vmem:[#allocation2 + $0x22] sm:$0xff]
      %v447 = vld [vmem:[#allocation2 + $0x32] sm:$0xff]
      %v448 = vld [vmem:[#allocation2 + $0x3a] sm:$0xff]
      %v449 = vld [vmem:[#allocation2 + $0x4a] sm:$0xff]
      %v450 = vld [vmem:[#allocation2 + $0x52] sm:$0xff]
      %v451 = vld [vmem:[#allocation2 + $0x62] sm:$0xff]
      %v452 = vld [vmem:[#allocation2 + $0x6a] sm:$0xff]
      %v453 = vld [vmem:[#allocation2 + $0x7a] sm:$0xff]
      %v454 = vld [vmem:[#allocation2 + $0x82] sm:$0xff]
      %v455 = vld [vmem:[#allocation2 + $0x92] sm:$0xff]
      %v456 = vld [vmem:[#allocation2 + $0x9a] sm:$0xff]
      %v457 = vld [vmem:[#allocation2 + $0xaa] sm:$0xff]
      %v458 = vld [vmem:[#allocation2 + $0xb2] sm:$0xff]
      %v459 = vld [vmem:[#allocation2 + $0xc2] sm:$0xff]
      %v460 = vld [vmem:[#allocation2 + $0xca] sm:$0xff]
      %v461 = vld [vmem:[#allocation2 + $0xda] sm:$0xff]
      %v462 = vld [vmem:[#allocation2 + $0xe2] sm:$0xff]
      %v463 = vld [vmem:[#allocation2 + $0xf2] sm:$0xff]
      %v464 = vld [vmem:[#allocation2 + $0xfa] sm:$0xff]
      %v465 = vld [vmem:[#allocation2 + $0x10a] sm:$0xff]
      %v466 = vld [vmem:[#allocation2 + $0x112] sm:$0xff]
      %v467 = vld [vmem:[#allocation2 + $0x122] sm:$0xff]
      %v468 = vld [vmem:[#allocation2 + $0x12a] sm:$0xff]
      %v469 = vld [vmem:[#allocation2 + $0x13a] sm:$0xff]
      %v470 = vld [vmem:[#allocation2 + $0x142] sm:$0xff]
      %v471 = vld [vmem:[#allocation2 + $0x152] sm:$0xff]
      %v472 = vld [vmem:[#allocation2 + $0x15a] sm:$0xff]
      %v473 = vld [vmem:[#allocation2 + $0x16a] sm:$0xff]
      %v474 = vld [vmem:[#allocation2 + $0x172] sm:$0xff]
      %v475 = vld [vmem:[%s346] sm:$0xff]
      %v476 = vld [vmem:[%s346 + $0x8] sm:$0xff]
      %v477 = vld [vmem:[%s346 + $0x18] sm:$0xff]
      %v478 = vld [vmem:[%s346 + $0x20] sm:$0xff]
      %v479 = vld [vmem:[%s346 + $0x30] sm:$0xff]
      %v480 = vld [vmem:[%s346 + $0x38] sm:$0xff]
      %v481 = vld [vmem:[%s346 + $0x48] sm:$0xff]
      %v482 = vld [vmem:[%s346 + $0x50] sm:$0xff]
      %v483 = vld [vmem:[%s346 + $0x60] sm:$0xff]
      %v484 = vld [vmem:[%s346 + $0x68] sm:$0xff]
      %v485 = vld [vmem:[%s346 + $0x78] sm:$0xff]
      %v486 = vld [vmem:[%s346 + $0x80] sm:$0xff]
      %v487 = vld [vmem:[%s346 + $0x90] sm:$0xff]
      %v488 = vld [vmem:[%s346 + $0x98] sm:$0xff]
      %v489 = vld [vmem:[%s346 + $0xa8] sm:$0xff]
      %v490 = vld [vmem:[%s346 + $0xb0] sm:$0xff]
      %v491 = vld [vmem:[%s346 + $0xc0] sm:$0xff]
      %v492 = vld [vmem:[%s346 + $0xc8] sm:$0xff]
      %v493 = vld [vmem:[%s346 + $0xd8] sm:$0xff]
      %v494 = vld [vmem:[%s346 + $0xe0] sm:$0xff]
      %v495 = vld [vmem:[%s346 + $0xf0] sm:$0xff]
      %v496 = vld [vmem:[%s346 + $0xf8] sm:$0xff]
      %v497 = vld [vmem:[%s346 + $0x108] sm:$0xff]
      %v498 = vld [vmem:[%s346 + $0x110] sm:$0xff]
      %v499 = vld [vmem:[%s346 + $0x120] sm:$0xff]
      %v500 = vld [vmem:[%s346 + $0x128] sm:$0xff]
      %v501 = vld [vmem:[%s346 + $0x138] sm:$0xff]
      %v502 = vld [vmem:[%s346 + $0x140] sm:$0xff]
      %v503 = vld [vmem:[%s346 + $0x150] sm:$0xff]
      %v504 = vld [vmem:[%s346 + $0x158] sm:$0xff]
      %v505 = vld [vmem:[%s346 + $0x168] sm:$0xff]
      %v506 = vld [vmem:[%s346 + $0x170] sm:$0xff]
      %v507 = vld [vmem:[%s346 + $0x1] sm:$0xff]
      %v508 = vld [vmem:[%s346 + $0x9] sm:$0xff]
      %v509 = vld [vmem:[%s346 + $0x19] sm:$0xff]
      %v510 = vld [vmem:[%s346 + $0x21] sm:$0xff]
      %v511 = vld [vmem:[%s346 + $0x31] sm:$0xff]
      %v512 = vld [vmem:[%s346 + $0x39] sm:$0xff]
      %v513 = vld [vmem:[%s346 + $0x49] sm:$0xff]
      %v514 = vld [vmem:[%s346 + $0x51] sm:$0xff]
      %v515 = vld [vmem:[%s346 + $0x61] sm:$0xff]
      %v516 = vld [vmem:[%s346 + $0x69] sm:$0xff]
      %v517 = vld [vmem:[%s346 + $0x79] sm:$0xff]
      %v518 = vld [vmem:[%s346 + $0x81] sm:$0xff]
      %v519 = vld [vmem:[%s346 + $0x91] sm:$0xff]
      %v520 = vld [vmem:[%s346 + $0x99] sm:$0xff]
      %v521 = vld [vmem:[%s346 + $0xa9] sm:$0xff]
      %v522 = vld [vmem:[%s346 + $0xb1] sm:$0xff]
      %v523 = vld [vmem:[%s346 + $0xc1] sm:$0xff]
      %v524 = vld [vmem:[%s346 + $0xc9] sm:$0xff]
      %v525 = vld [vmem:[%s346 + $0xd9] sm:$0xff]
      %v526 = vld [vmem:[%s346 + $0xe1] sm:$0xff]
      %v527 = vld [vmem:[%s346 + $0xf1] sm:$0xff]
      %v528 = vld [vmem:[%s346 + $0xf9] sm:$0xff]
      %v529 = vld [vmem:[%s346 + $0x109] sm:$0xff]
      %v530 = vld [vmem:[%s346 + $0x111] sm:$0xff]
      %v531 = vld [vmem:[%s346 + $0x121] sm:$0xff]
      %v532 = vld [vmem:[%s346 + $0x129] sm:$0xff]
      %v533 = vld [vmem:[%s346 + $0x139] sm:$0xff]
      %v534 = vld [vmem:[%s346 + $0x141] sm:$0xff]
      %v535 = vld [vmem:[%s346 + $0x151] sm:$0xff]
      %v536 = vld [vmem:[%s346 + $0x159] sm:$0xff]
      %v537 = vld [vmem:[%s346 + $0x169] sm:$0xff]
      %v538 = vld [vmem:[%s346 + $0x171] sm:$0xff]
      %v539 = vld [vmem:[%s346 + $0x2] sm:$0xff]
      %v540 = vld [vmem:[%s346 + $0xa] sm:$0xff]
      %v541 = vld [vmem:[%s346 + $0x1a] sm:$0xff]
      %v542 = vld [vmem:[%s346 + $0x22] sm:$0xff]
      %v543 = vld [vmem:[%s346 + $0x32] sm:$0xff]
      %v544 = vld [vmem:[%s346 + $0x3a] sm:$0xff]
      %v545 = vld [vmem:[%s346 + $0x4a] sm:$0xff]
      %v546 = vld [vmem:[%s346 + $0x52] sm:$0xff]
      %v547 = vld [vmem:[%s346 + $0x62] sm:$0xff]
      %v548 = vld [vmem:[%s346 + $0x6a] sm:$0xff]
      %v549 = vld [vmem:[%s346 + $0x7a] sm:$0xff]
      %v550 = vld [vmem:[%s346 + $0x82] sm:$0xff]
      %v551 = vld [vmem:[%s346 + $0x92] sm:$0xff]
      %v552 = vld [vmem:[%s346 + $0x9a] sm:$0xff]
      %v553 = vld [vmem:[%s346 + $0xaa] sm:$0xff]
      %v554 = vld [vmem:[%s346 + $0xb2] sm:$0xff]
      %v555 = vld [vmem:[%s346 + $0xc2] sm:$0xff]
      %v556 = vld [vmem:[%s346 + $0xca] sm:$0xff]
      %v557 = vld [vmem:[%s346 + $0xda] sm:$0xff]
      %v558 = vld [vmem:[%s346 + $0xe2] sm:$0xff]
      %v559 = vld [vmem:[%s346 + $0xf2] sm:$0xff]
      %v560 = vld [vmem:[%s346 + $0xfa] sm:$0xff]
      %v561 = vld [vmem:[%s346 + $0x10a] sm:$0xff]
      %v562 = vld [vmem:[%s346 + $0x112] sm:$0xff]
      %v563 = vld [vmem:[%s346 + $0x122] sm:$0xff]
      %v564 = vld [vmem:[%s346 + $0x12a] sm:$0xff]
      %v565 = vld [vmem:[%s346 + $0x13a] sm:$0xff]
      %v566 = vld [vmem:[%s346 + $0x142] sm:$0xff]
      %v567 = vld [vmem:[%s346 + $0x152] sm:$0xff]
      %v568 = vld [vmem:[%s346 + $0x15a] sm:$0xff]
      %v569 = vld [vmem:[%s346 + $0x16a] sm:$0xff]
      %v570 = vld [vmem:[%s346 + $0x172] sm:$0xff]
      %s571 = scalar_lea.vmem [#allocation2], 48
      %v572 = vld [vmem:[%s571] sm:$0xff]
      %v573 = vld [vmem:[%s571 + $0x8] sm:$0xff]
      %v574 = vld [vmem:[%s571 + $0x18] sm:$0xff]
      %v575 = vld [vmem:[%s571 + $0x20] sm:$0xff]
      %v576 = vld [vmem:[%s571 + $0x30] sm:$0xff]
      %v577 = vld [vmem:[%s571 + $0x38] sm:$0xff]
      %v578 = vld [vmem:[%s571 + $0x48] sm:$0xff]
      %v579 = vld [vmem:[%s571 + $0x50] sm:$0xff]
      %v580 = vld [vmem:[%s571 + $0x60] sm:$0xff]
      %v581 = vld [vmem:[%s571 + $0x68] sm:$0xff]
      %v582 = vld [vmem:[%s571 + $0x78] sm:$0xff]
      %v583 = vld [vmem:[%s571 + $0x80] sm:$0xff]
      %v584 = vld [vmem:[%s571 + $0x90] sm:$0xff]
      %v585 = vld [vmem:[%s571 + $0x98] sm:$0xff]
      %v586 = vld [vmem:[%s571 + $0xa8] sm:$0xff]
      %v587 = vld [vmem:[%s571 + $0xb0] sm:$0xff]
      %v588 = vld [vmem:[%s571 + $0xc0] sm:$0xff]
      %v589 = vld [vmem:[%s571 + $0xc8] sm:$0xff]
      %v590 = vld [vmem:[%s571 + $0xd8] sm:$0xff]
      %v591 = vld [vmem:[%s571 + $0xe0] sm:$0xff]
      %v592 = vld [vmem:[%s571 + $0xf0] sm:$0xff]
      %v593 = vld [vmem:[%s571 + $0xf8] sm:$0xff]
      %v594 = vld [vmem:[%s571 + $0x108] sm:$0xff]
      %v595 = vld [vmem:[%s571 + $0x110] sm:$0xff]
      %v596 = vld [vmem:[%s571 + $0x120] sm:$0xff]
      %v597 = vld [vmem:[%s571 + $0x128] sm:$0xff]
      %v598 = vld [vmem:[%s571 + $0x138] sm:$0xff]
      %v599 = vld [vmem:[%s571 + $0x140] sm:$0xff]
      %v600 = vld [vmem:[%s571 + $0x150] sm:$0xff]
      %v601 = vld [vmem:[%s571 + $0x158] sm:$0xff]
      %v602 = vld [vmem:[%s571 + $0x168] sm:$0xff]
      %v603 = vld [vmem:[%s571 + $0x170] sm:$0xff]
      %v604 = vld [vmem:[%s571 + $0x1] sm:$0xff]
      %v605 = vld [vmem:[%s571 + $0x9] sm:$0xff]
      %v606 = vld [vmem:[%s571 + $0x19] sm:$0xff]
      %v607 = vld [vmem:[%s571 + $0x21] sm:$0xff]
      %v608 = vld [vmem:[%s571 + $0x31] sm:$0xff]
      %v609 = vld [vmem:[%s571 + $0x39] sm:$0xff]
      %v610 = vld [vmem:[%s571 + $0x49] sm:$0xff]
      %v611 = vld [vmem:[%s571 + $0x51] sm:$0xff]
      %v612 = vld [vmem:[%s571 + $0x61] sm:$0xff]
      %v613 = vld [vmem:[%s571 + $0x69] sm:$0xff]
      %v614 = vld [vmem:[%s571 + $0x79] sm:$0xff]
      %v615 = vld [vmem:[%s571 + $0x81] sm:$0xff]
      %v616 = vld [vmem:[%s571 + $0x91] sm:$0xff]
      %v617 = vld [vmem:[%s571 + $0x99] sm:$0xff]
      %v618 = vld [vmem:[%s571 + $0xa9] sm:$0xff]
      %v619 = vld [vmem:[%s571 + $0xb1] sm:$0xff]
      %v620 = vld [vmem:[%s571 + $0xc1] sm:$0xff]
      %v621 = vld [vmem:[%s571 + $0xc9] sm:$0xff]
      %v622 = vld [vmem:[%s571 + $0xd9] sm:$0xff]
      %v623 = vld [vmem:[%s571 + $0xe1] sm:$0xff]
      %v624 = vld [vmem:[%s571 + $0xf1] sm:$0xff]
      %v625 = vld [vmem:[%s571 + $0xf9] sm:$0xff]
      %v626 = vld [vmem:[%s571 + $0x109] sm:$0xff]
      %v627 = vld [vmem:[%s571 + $0x111] sm:$0xff]
      %v628 = vld [vmem:[%s571 + $0x121] sm:$0xff]
      %v629 = vld [vmem:[%s571 + $0x129] sm:$0xff]
      %v630 = vld [vmem:[%s571 + $0x139] sm:$0xff]
      %v631 = vld [vmem:[%s571 + $0x141] sm:$0xff]
      %v632 = vld [vmem:[%s571 + $0x151] sm:$0xff]
      %v633 = vld [vmem:[%s571 + $0x159] sm:$0xff]
      %v634 = vld [vmem:[%s571 + $0x169] sm:$0xff]
      %v635 = vld [vmem:[%s571 + $0x171] sm:$0xff]
      %v636 = vld [vmem:[%s571 + $0x2] sm:$0xff]
      %v637 = vld [vmem:[%s571 + $0xa] sm:$0xff]
      %v638 = vld [vmem:[%s571 + $0x1a] sm:$0xff]
      %v639 = vld [vmem:[%s571 + $0x22] sm:$0xff]
      %v640 = vld [vmem:[%s571 + $0x32] sm:$0xff]
      %v641 = vld [vmem:[%s571 + $0x3a] sm:$0xff]
      %v642 = vld [vmem:[%s571 + $0x4a] sm:$0xff]
      %v643 = vld [vmem:[%s571 + $0x52] sm:$0xff]
      %v644 = vld [vmem:[%s571 + $0x62] sm:$0xff]
      %v645 = vld [vmem:[%s571 + $0x6a] sm:$0xff]
      %v646 = vld [vmem:[%s571 + $0x7a] sm:$0xff]
      %v647 = vld [vmem:[%s571 + $0x82] sm:$0xff]
      %v648 = vld [vmem:[%s571 + $0x92] sm:$0xff]
      %v649 = vld [vmem:[%s571 + $0x9a] sm:$0xff]
      %v650 = vld [vmem:[%s571 + $0xaa] sm:$0xff]
      %v651 = vld [vmem:[%s571 + $0xb2] sm:$0xff]
      %v652 = vld [vmem:[%s571 + $0xc2] sm:$0xff]
      %v653 = vld [vmem:[%s571 + $0xca] sm:$0xff]
      %v654 = vld [vmem:[%s571 + $0xda] sm:$0xff]
      %v655 = vld [vmem:[%s571 + $0xe2] sm:$0xff]
      %v656 = vld [vmem:[%s571 + $0xf2] sm:$0xff]
      %v657 = vld [vmem:[%s571 + $0xfa] sm:$0xff]
      %v658 = vld [vmem:[%s571 + $0x10a] sm:$0xff]
      %v659 = vld [vmem:[%s571 + $0x112] sm:$0xff]
      %v660 = vld [vmem:[%s571 + $0x122] sm:$0xff]
      %v661 = vld [vmem:[%s571 + $0x12a] sm:$0xff]
      %v662 = vld [vmem:[%s571 + $0x13a] sm:$0xff]
      %v663 = vld [vmem:[%s571 + $0x142] sm:$0xff]
      %v664 = vld [vmem:[%s571 + $0x152] sm:$0xff]
      %v665 = vld [vmem:[%s571 + $0x15a] sm:$0xff]
      %v666 = vld [vmem:[%s571 + $0x16a] sm:$0xff]
      %v667 = vld [vmem:[%s571 + $0x172] sm:$0xff]
      %700 = vrot.lane.b32.xlu0 %v411, 4
      %v701 = vpop.permute.xlu0 %700
      %702 = vrot.lane.b32.xlu0 %v412, 4
      %v703 = vpop.permute.xlu0 %702
      %704 = vrot.lane.b32.xlu0 %v413, 4
      %v705 = vpop.permute.xlu0 %704
      %706 = vrot.lane.b32.xlu0 %v414, 4
      %v707 = vpop.permute.xlu0 %706
      %708 = vrot.lane.b32.xlu0 %v415, 4
      %v709 = vpop.permute.xlu0 %708
      %710 = vrot.lane.b32.xlu0 %v416, 4
      %v711 = vpop.permute.xlu0 %710
      %712 = vrot.lane.b32.xlu0 %v417, 4
      %v713 = vpop.permute.xlu0 %712
      %714 = vrot.lane.b32.xlu0 %v418, 4
      %v715 = vpop.permute.xlu0 %714
      %716 = vrot.lane.b32.xlu0 %v419, 4
      %v717 = vpop.permute.xlu0 %716
      %718 = vrot.lane.b32.xlu0 %v420, 4
      %v719 = vpop.permute.xlu0 %718
      %720 = vrot.lane.b32.xlu0 %v421, 4
      %v721 = vpop.permute.xlu0 %720
      %722 = vrot.lane.b32.xlu0 %v422, 4
      %v723 = vpop.permute.xlu0 %722
      %724 = vrot.lane.b32.xlu0 %v423, 4
      %v725 = vpop.permute.xlu0 %724
      %726 = vrot.lane.b32.xlu0 %v424, 4
      %v727 = vpop.permute.xlu0 %726
      %728 = vrot.lane.b32.xlu0 %v425, 4
      %v729 = vpop.permute.xlu0 %728
      %730 = vrot.lane.b32.xlu0 %v426, 4
      %v731 = vpop.permute.xlu0 %730
      %732 = vrot.lane.b32.xlu0 %v427, 4
      %v733 = vpop.permute.xlu0 %732
      %734 = vrot.lane.b32.xlu0 %v428, 4
      %v735 = vpop.permute.xlu0 %734
      %736 = vrot.lane.b32.xlu0 %v429, 4
      %v737 = vpop.permute.xlu0 %736
      %738 = vrot.lane.b32.xlu0 %v430, 4
      %v739 = vpop.permute.xlu0 %738
      %740 = vrot.lane.b32.xlu0 %v431, 4
      %v741 = vpop.permute.xlu0 %740
      %742 = vrot.lane.b32.xlu0 %v432, 4
      %v743 = vpop.permute.xlu0 %742
      %744 = vrot.lane.b32.xlu0 %v433, 4
      %v745 = vpop.permute.xlu0 %744
      %746 = vrot.lane.b32.xlu0 %v434, 4
      %v747 = vpop.permute.xlu0 %746
      %748 = vrot.lane.b32.xlu0 %v435, 4
      %v749 = vpop.permute.xlu0 %748
      %750 = vrot.lane.b32.xlu0 %v436, 4
      %v751 = vpop.permute.xlu0 %750
      %752 = vrot.lane.b32.xlu0 %v437, 4
      %v753 = vpop.permute.xlu0 %752
      %754 = vrot.lane.b32.xlu0 %v438, 4
      %v755 = vpop.permute.xlu0 %754
      %756 = vrot.lane.b32.xlu0 %v439, 4
      %v757 = vpop.permute.xlu0 %756
      %758 = vrot.lane.b32.xlu0 %v440, 4
      %v759 = vpop.permute.xlu0 %758
      %760 = vrot.lane.b32.xlu0 %v441, 4
      %v761 = vpop.permute.xlu0 %760
      %762 = vrot.lane.b32.xlu0 %v442, 4
      %v763 = vpop.permute.xlu0 %762
      %828 = vrot.lane.b32.xlu0 %v443, 8
      %v829 = vpop.permute.xlu0 %828
      %830 = vrot.lane.b32.xlu0 %v444, 8
      %v831 = vpop.permute.xlu0 %830
      %832 = vrot.lane.b32.xlu0 %v445, 8
      %v833 = vpop.permute.xlu0 %832
      %834 = vrot.lane.b32.xlu0 %v446, 8
      %v835 = vpop.permute.xlu0 %834
      %836 = vrot.lane.b32.xlu0 %v447, 8
      %v837 = vpop.permute.xlu0 %836
      %838 = vrot.lane.b32.xlu0 %v448, 8
      %v839 = vpop.permute.xlu0 %838
      %840 = vrot.lane.b32.xlu0 %v449, 8
      %v841 = vpop.permute.xlu0 %840
      %842 = vrot.lane.b32.xlu0 %v450, 8
      %v843 = vpop.permute.xlu0 %842
      %844 = vrot.lane.b32.xlu0 %v451, 8
      %v845 = vpop.permute.xlu0 %844
      %846 = vrot.lane.b32.xlu0 %v452, 8
      %v847 = vpop.permute.xlu0 %846
      %848 = vrot.lane.b32.xlu0 %v453, 8
      %v849 = vpop.permute.xlu0 %848
      %850 = vrot.lane.b32.xlu0 %v454, 8
      %v851 = vpop.permute.xlu0 %850
      %852 = vrot.lane.b32.xlu0 %v455, 8
      %v853 = vpop.permute.xlu0 %852
      %854 = vrot.lane.b32.xlu0 %v456, 8
      %v855 = vpop.permute.xlu0 %854
      %856 = vrot.lane.b32.xlu0 %v457, 8
      %v857 = vpop.permute.xlu0 %856
      %858 = vrot.lane.b32.xlu0 %v458, 8
      %v859 = vpop.permute.xlu0 %858
      %860 = vrot.lane.b32.xlu0 %v459, 8
      %v861 = vpop.permute.xlu0 %860
      %862 = vrot.lane.b32.xlu0 %v460, 8
      %v863 = vpop.permute.xlu0 %862
      %864 = vrot.lane.b32.xlu0 %v461, 8
      %v865 = vpop.permute.xlu0 %864
      %866 = vrot.lane.b32.xlu0 %v462, 8
      %v867 = vpop.permute.xlu0 %866
      %868 = vrot.lane.b32.xlu0 %v463, 8
      %v869 = vpop.permute.xlu0 %868
      %870 = vrot.lane.b32.xlu0 %v464, 8
      %v871 = vpop.permute.xlu0 %870
      %872 = vrot.lane.b32.xlu0 %v465, 8
      %v873 = vpop.permute.xlu0 %872
      %874 = vrot.lane.b32.xlu0 %v466, 8
      %v875 = vpop.permute.xlu0 %874
      %876 = vrot.lane.b32.xlu0 %v467, 8
      %v877 = vpop.permute.xlu0 %876
      %878 = vrot.lane.b32.xlu0 %v468, 8
      %v879 = vpop.permute.xlu0 %878
      %880 = vrot.lane.b32.xlu0 %v469, 8
      %v881 = vpop.permute.xlu0 %880
      %882 = vrot.lane.b32.xlu0 %v470, 8
      %v883 = vpop.permute.xlu0 %882
      %884 = vrot.lane.b32.xlu0 %v471, 8
      %v885 = vpop.permute.xlu0 %884
      %886 = vrot.lane.b32.xlu0 %v472, 8
      %v887 = vpop.permute.xlu0 %886
      %888 = vrot.lane.b32.xlu0 %v473, 8
      %v889 = vpop.permute.xlu0 %888
      %890 = vrot.lane.b32.xlu0 %v474, 8
      %v891 = vpop.permute.xlu0 %890
      %956 = vrot.lane.b32.xlu0 %v475, 12
      %v957 = vpop.permute.xlu0 %956
      %958 = vrot.lane.b32.xlu0 %v476, 12
      %v959 = vpop.permute.xlu0 %958
      %960 = vrot.lane.b32.xlu0 %v477, 12
      %v961 = vpop.permute.xlu0 %960
      %962 = vrot.lane.b32.xlu0 %v478, 12
      %v963 = vpop.permute.xlu0 %962
      %964 = vrot.lane.b32.xlu0 %v479, 12
      %v965 = vpop.permute.xlu0 %964
      %966 = vrot.lane.b32.xlu0 %v480, 12
      %v967 = vpop.permute.xlu0 %966
      %968 = vrot.lane.b32.xlu0 %v481, 12
      %v969 = vpop.permute.xlu0 %968
      %970 = vrot.lane.b32.xlu0 %v482, 12
      %v971 = vpop.permute.xlu0 %970
      %972 = vrot.lane.b32.xlu0 %v483, 12
      %v973 = vpop.permute.xlu0 %972
      %974 = vrot.lane.b32.xlu0 %v484, 12
      %v975 = vpop.permute.xlu0 %974
      %976 = vrot.lane.b32.xlu0 %v485, 12
      %v977 = vpop.permute.xlu0 %976
      %978 = vrot.lane.b32.xlu0 %v486, 12
      %v979 = vpop.permute.xlu0 %978
      %980 = vrot.lane.b32.xlu0 %v487, 12
      %v981 = vpop.permute.xlu0 %980
      %982 = vrot.lane.b32.xlu0 %v488, 12
      %v983 = vpop.permute.xlu0 %982
      %984 = vrot.lane.b32.xlu0 %v489, 12
      %v985 = vpop.permute.xlu0 %984
      %986 = vrot.lane.b32.xlu0 %v490, 12
      %v987 = vpop.permute.xlu0 %986
      %988 = vrot.lane.b32.xlu0 %v491, 12
      %v989 = vpop.permute.xlu0 %988
      %990 = vrot.lane.b32.xlu0 %v492, 12
      %v991 = vpop.permute.xlu0 %990
      %992 = vrot.lane.b32.xlu0 %v493, 12
      %v993 = vpop.permute.xlu0 %992
      %994 = vrot.lane.b32.xlu0 %v494, 12
      %v995 = vpop.permute.xlu0 %994
      %996 = vrot.lane.b32.xlu0 %v495, 12
      %v997 = vpop.permute.xlu0 %996
      %998 = vrot.lane.b32.xlu0 %v496, 12
      %v999 = vpop.permute.xlu0 %998
      %1000 = vrot.lane.b32.xlu0 %v497, 12
      %v1001 = vpop.permute.xlu0 %1000
      %1002 = vrot.lane.b32.xlu0 %v498, 12
      %v1003 = vpop.permute.xlu0 %1002
      %1004 = vrot.lane.b32.xlu0 %v499, 12
      %v1005 = vpop.permute.xlu0 %1004
      %1006 = vrot.lane.b32.xlu0 %v500, 12
      %v1007 = vpop.permute.xlu0 %1006
      %1008 = vrot.lane.b32.xlu0 %v501, 12
      %v1009 = vpop.permute.xlu0 %1008
      %1010 = vrot.lane.b32.xlu0 %v502, 12
      %v1011 = vpop.permute.xlu0 %1010
      %1012 = vrot.lane.b32.xlu0 %v503, 12
      %v1013 = vpop.permute.xlu0 %1012
      %1014 = vrot.lane.b32.xlu0 %v504, 12
      %v1015 = vpop.permute.xlu0 %1014
      %1016 = vrot.lane.b32.xlu0 %v505, 12
      %v1017 = vpop.permute.xlu0 %1016
      %1018 = vrot.lane.b32.xlu0 %v506, 12
      %v1019 = vpop.permute.xlu0 %1018
      %1084 = vrot.lane.b32.xlu0 %v507, 16
      %v1085 = vpop.permute.xlu0 %1084
      %1086 = vrot.lane.b32.xlu0 %v508, 16
      %v1087 = vpop.permute.xlu0 %1086
      %1088 = vrot.lane.b32.xlu0 %v509, 16
      %v1089 = vpop.permute.xlu0 %1088
      %1090 = vrot.lane.b32.xlu0 %v510, 16
      %v1091 = vpop.permute.xlu0 %1090
      %1092 = vrot.lane.b32.xlu0 %v511, 16
      %v1093 = vpop.permute.xlu0 %1092
      %1094 = vrot.lane.b32.xlu0 %v512, 16
      %v1095 = vpop.permute.xlu0 %1094
      %1096 = vrot.lane.b32.xlu0 %v513, 16
      %v1097 = vpop.permute.xlu0 %1096
      %1098 = vrot.lane.b32.xlu0 %v514, 16
      %v1099 = vpop.permute.xlu0 %1098
      %1100 = vrot.lane.b32.xlu0 %v515, 16
      %v1101 = vpop.permute.xlu0 %1100
      %1102 = vrot.lane.b32.xlu0 %v516, 16
      %v1103 = vpop.permute.xlu0 %1102
      %1104 = vrot.lane.b32.xlu0 %v517, 16
      %v1105 = vpop.permute.xlu0 %1104
      %1106 = vrot.lane.b32.xlu0 %v518, 16
      %v1107 = vpop.permute.xlu0 %1106
      %1108 = vrot.lane.b32.xlu0 %v519, 16
      %v1109 = vpop.permute.xlu0 %1108
      %1110 = vrot.lane.b32.xlu0 %v520, 16
      %v1111 = vpop.permute.xlu0 %1110
      %1112 = vrot.lane.b32.xlu0 %v521, 16
      %v1113 = vpop.permute.xlu0 %1112
      %1114 = vrot.lane.b32.xlu0 %v522, 16
      %v1115 = vpop.permute.xlu0 %1114
      %1116 = vrot.lane.b32.xlu0 %v523, 16
      %v1117 = vpop.permute.xlu0 %1116
      %1118 = vrot.lane.b32.xlu0 %v524, 16
      %v1119 = vpop.permute.xlu0 %1118
      %1120 = vrot.lane.b32.xlu0 %v525, 16
      %v1121 = vpop.permute.xlu0 %1120
      %1122 = vrot.lane.b32.xlu0 %v526, 16
      %v1123 = vpop.permute.xlu0 %1122
      %1124 = vrot.lane.b32.xlu0 %v527, 16
      %v1125 = vpop.permute.xlu0 %1124
      %1126 = vrot.lane.b32.xlu0 %v528, 16
      %v1127 = vpop.permute.xlu0 %1126
      %1128 = vrot.lane.b32.xlu0 %v529, 16
      %v1129 = vpop.permute.xlu0 %1128
      %1130 = vrot.lane.b32.xlu0 %v530, 16
      %v1131 = vpop.permute.xlu0 %1130
      %1132 = vrot.lane.b32.xlu0 %v531, 16
      %v1133 = vpop.permute.xlu0 %1132
      %1134 = vrot.lane.b32.xlu0 %v532, 16
      %v1135 = vpop.permute.xlu0 %1134
      %1136 = vrot.lane.b32.xlu0 %v533, 16
      %v1137 = vpop.permute.xlu0 %1136
      %1138 = vrot.lane.b32.xlu0 %v534, 16
      %v1139 = vpop.permute.xlu0 %1138
      %1140 = vrot.lane.b32.xlu0 %v535, 16
      %v1141 = vpop.permute.xlu0 %1140
      %1142 = vrot.lane.b32.xlu0 %v536, 16
      %v1143 = vpop.permute.xlu0 %1142
      %1144 = vrot.lane.b32.xlu0 %v537, 16
      %v1145 = vpop.permute.xlu0 %1144
      %1146 = vrot.lane.b32.xlu0 %v538, 16
      %v1147 = vpop.permute.xlu0 %1146
      %1212 = vrot.lane.b32.xlu0 %v539, 20
      %v1213 = vpop.permute.xlu0 %1212
      %1214 = vrot.lane.b32.xlu0 %v540, 20
      %v1215 = vpop.permute.xlu0 %1214
      %1216 = vrot.lane.b32.xlu0 %v541, 20
      %v1217 = vpop.permute.xlu0 %1216
      %1218 = vrot.lane.b32.xlu0 %v542, 20
      %v1219 = vpop.permute.xlu0 %1218
      %1220 = vrot.lane.b32.xlu0 %v543, 20
      %v1221 = vpop.permute.xlu0 %1220
      %1222 = vrot.lane.b32.xlu0 %v544, 20
      %v1223 = vpop.permute.xlu0 %1222
      %1224 = vrot.lane.b32.xlu0 %v545, 20
      %v1225 = vpop.permute.xlu0 %1224
      %1226 = vrot.lane.b32.xlu0 %v546, 20
      %v1227 = vpop.permute.xlu0 %1226
      %1228 = vrot.lane.b32.xlu0 %v547, 20
      %v1229 = vpop.permute.xlu0 %1228
      %1230 = vrot.lane.b32.xlu0 %v548, 20
      %v1231 = vpop.permute.xlu0 %1230
      %1232 = vrot.lane.b32.xlu0 %v549, 20
      %v1233 = vpop.permute.xlu0 %1232
      %1234 = vrot.lane.b32.xlu0 %v550, 20
      %v1235 = vpop.permute.xlu0 %1234
      %1236 = vrot.lane.b32.xlu0 %v551, 20
      %v1237 = vpop.permute.xlu0 %1236
      %1238 = vrot.lane.b32.xlu0 %v552, 20
      %v1239 = vpop.permute.xlu0 %1238
      %1240 = vrot.lane.b32.xlu0 %v553, 20
      %v1241 = vpop.permute.xlu0 %1240
      %1242 = vrot.lane.b32.xlu0 %v554, 20
      %v1243 = vpop.permute.xlu0 %1242
      %1244 = vrot.lane.b32.xlu0 %v555, 20
      %v1245 = vpop.permute.xlu0 %1244
      %1246 = vrot.lane.b32.xlu0 %v556, 20
      %v1247 = vpop.permute.xlu0 %1246
      %1248 = vrot.lane.b32.xlu0 %v557, 20
      %v1249 = vpop.permute.xlu0 %1248
      %1250 = vrot.lane.b32.xlu0 %v558, 20
      %v1251 = vpop.permute.xlu0 %1250
      %1252 = vrot.lane.b32.xlu0 %v559, 20
      %v1253 = vpop.permute.xlu0 %1252
      %1254 = vrot.lane.b32.xlu0 %v560, 20
      %v1255 = vpop.permute.xlu0 %1254
      %1256 = vrot.lane.b32.xlu0 %v561, 20
      %v1257 = vpop.permute.xlu0 %1256
      %1258 = vrot.lane.b32.xlu0 %v562, 20
      %v1259 = vpop.permute.xlu0 %1258
      %1260 = vrot.lane.b32.xlu0 %v563, 20
      %v1261 = vpop.permute.xlu0 %1260
      %1262 = vrot.lane.b32.xlu0 %v564, 20
      %v1263 = vpop.permute.xlu0 %1262
      %1264 = vrot.lane.b32.xlu0 %v565, 20
      %v1265 = vpop.permute.xlu0 %1264
      %1266 = vrot.lane.b32.xlu0 %v566, 20
      %v1267 = vpop.permute.xlu0 %1266
      %1268 = vrot.lane.b32.xlu0 %v567, 20
      %v1269 = vpop.permute.xlu0 %1268
      %1270 = vrot.lane.b32.xlu0 %v568, 20
      %v1271 = vpop.permute.xlu0 %1270
      %1272 = vrot.lane.b32.xlu0 %v569, 20
      %v1273 = vpop.permute.xlu0 %1272
      %1274 = vrot.lane.b32.xlu0 %v570, 20
      %v1275 = vpop.permute.xlu0 %1274
      %1340 = vrot.lane.b32.xlu0 %v572, 24
      %v1341 = vpop.permute.xlu0 %1340
      %1342 = vrot.lane.b32.xlu0 %v573, 24
      %v1343 = vpop.permute.xlu0 %1342
      %1344 = vrot.lane.b32.xlu0 %v574, 24
      %v1345 = vpop.permute.xlu0 %1344
      %1346 = vrot.lane.b32.xlu0 %v575, 24
      %v1347 = vpop.permute.xlu0 %1346
      %1348 = vrot.lane.b32.xlu0 %v576, 24
      %v1349 = vpop.permute.xlu0 %1348
      %1350 = vrot.lane.b32.xlu0 %v577, 24
      %v1351 = vpop.permute.xlu0 %1350
      %1352 = vrot.lane.b32.xlu0 %v578, 24
      %v1353 = vpop.permute.xlu0 %1352
      %1354 = vrot.lane.b32.xlu0 %v579, 24
      %v1355 = vpop.permute.xlu0 %1354
      %1356 = vrot.lane.b32.xlu0 %v580, 24
      %v1357 = vpop.permute.xlu0 %1356
      %1358 = vrot.lane.b32.xlu0 %v581, 24
      %v1359 = vpop.permute.xlu0 %1358
      %1360 = vrot.lane.b32.xlu0 %v582, 24
      %v1361 = vpop.permute.xlu0 %1360
      %1362 = vrot.lane.b32.xlu0 %v583, 24
      %v1363 = vpop.permute.xlu0 %1362
      %1364 = vrot.lane.b32.xlu0 %v584, 24
      %v1365 = vpop.permute.xlu0 %1364
      %1366 = vrot.lane.b32.xlu0 %v585, 24
      %v1367 = vpop.permute.xlu0 %1366
      %1368 = vrot.lane.b32.xlu0 %v586, 24
      %v1369 = vpop.permute.xlu0 %1368
      %1370 = vrot.lane.b32.xlu0 %v587, 24
      %v1371 = vpop.permute.xlu0 %1370
      %1372 = vrot.lane.b32.xlu0 %v588, 24
      %v1373 = vpop.permute.xlu0 %1372
      %1374 = vrot.lane.b32.xlu0 %v589, 24
      %v1375 = vpop.permute.xlu0 %1374
      %1376 = vrot.lane.b32.xlu0 %v590, 24
      %v1377 = vpop.permute.xlu0 %1376
      %1378 = vrot.lane.b32.xlu0 %v591, 24
      %v1379 = vpop.permute.xlu0 %1378
      %1380 = vrot.lane.b32.xlu0 %v592, 24
      %v1381 = vpop.permute.xlu0 %1380
      %1382 = vrot.lane.b32.xlu0 %v593, 24
      %v1383 = vpop.permute.xlu0 %1382
      %1384 = vrot.lane.b32.xlu0 %v594, 24
      %v1385 = vpop.permute.xlu0 %1384
      %1386 = vrot.lane.b32.xlu0 %v595, 24
      %v1387 = vpop.permute.xlu0 %1386
      %1388 = vrot.lane.b32.xlu0 %v596, 24
      %v1389 = vpop.permute.xlu0 %1388
      %1390 = vrot.lane.b32.xlu0 %v597, 24
      %v1391 = vpop.permute.xlu0 %1390
      %1392 = vrot.lane.b32.xlu0 %v598, 24
      %v1393 = vpop.permute.xlu0 %1392
      %1394 = vrot.lane.b32.xlu0 %v599, 24
      %v1395 = vpop.permute.xlu0 %1394
      %1396 = vrot.lane.b32.xlu0 %v600, 24
      %v1397 = vpop.permute.xlu0 %1396
      %1398 = vrot.lane.b32.xlu0 %v601, 24
      %v1399 = vpop.permute.xlu0 %1398
      %1400 = vrot.lane.b32.xlu0 %v602, 24
      %v1401 = vpop.permute.xlu0 %1400
      %1402 = vrot.lane.b32.xlu0 %v603, 24
      %v1403 = vpop.permute.xlu0 %1402
      %1468 = vrot.lane.b32.xlu0 %v604, 28
      %v1469 = vpop.permute.xlu0 %1468
      %1470 = vrot.lane.b32.xlu0 %v605, 28
      %v1471 = vpop.permute.xlu0 %1470
      %1472 = vrot.lane.b32.xlu0 %v606, 28
      %v1473 = vpop.permute.xlu0 %1472
      %1474 = vrot.lane.b32.xlu0 %v607, 28
      %v1475 = vpop.permute.xlu0 %1474
      %1476 = vrot.lane.b32.xlu0 %v608, 28
      %v1477 = vpop.permute.xlu0 %1476
      %1478 = vrot.lane.b32.xlu0 %v609, 28
      %v1479 = vpop.permute.xlu0 %1478
      %1480 = vrot.lane.b32.xlu0 %v610, 28
      %v1481 = vpop.permute.xlu0 %1480
      %1482 = vrot.lane.b32.xlu0 %v611, 28
      %v1483 = vpop.permute.xlu0 %1482
      %1484 = vrot.lane.b32.xlu0 %v612, 28
      %v1485 = vpop.permute.xlu0 %1484
      %1486 = vrot.lane.b32.xlu0 %v613, 28
      %v1487 = vpop.permute.xlu0 %1486
      %1488 = vrot.lane.b32.xlu0 %v614, 28
      %v1489 = vpop.permute.xlu0 %1488
      %1490 = vrot.lane.b32.xlu0 %v615, 28
      %v1491 = vpop.permute.xlu0 %1490
      %1492 = vrot.lane.b32.xlu0 %v616, 28
      %v1493 = vpop.permute.xlu0 %1492
      %1494 = vrot.lane.b32.xlu0 %v617, 28
      %v1495 = vpop.permute.xlu0 %1494
      %1496 = vrot.lane.b32.xlu0 %v618, 28
      %v1497 = vpop.permute.xlu0 %1496
      %1498 = vrot.lane.b32.xlu0 %v619, 28
      %v1499 = vpop.permute.xlu0 %1498
      %1500 = vrot.lane.b32.xlu0 %v620, 28
      %v1501 = vpop.permute.xlu0 %1500
      %1502 = vrot.lane.b32.xlu0 %v621, 28
      %v1503 = vpop.permute.xlu0 %1502
      %1504 = vrot.lane.b32.xlu0 %v622, 28
      %v1505 = vpop.permute.xlu0 %1504
      %1506 = vrot.lane.b32.xlu0 %v623, 28
      %v1507 = vpop.permute.xlu0 %1506
      %1508 = vrot.lane.b32.xlu0 %v624, 28
      %v1509 = vpop.permute.xlu0 %1508
      %1510 = vrot.lane.b32.xlu0 %v625, 28
      %v1511 = vpop.permute.xlu0 %1510
      %1512 = vrot.lane.b32.xlu0 %v626, 28
      %v1513 = vpop.permute.xlu0 %1512
      %1514 = vrot.lane.b32.xlu0 %v627, 28
      %v1515 = vpop.permute.xlu0 %1514
      %1516 = vrot.lane.b32.xlu0 %v628, 28
      %v1517 = vpop.permute.xlu0 %1516
      %1518 = vrot.lane.b32.xlu0 %v629, 28
      %v1519 = vpop.permute.xlu0 %1518
      %1520 = vrot.lane.b32.xlu0 %v630, 28
      %v1521 = vpop.permute.xlu0 %1520
      %1522 = vrot.lane.b32.xlu0 %v631, 28
      %v1523 = vpop.permute.xlu0 %1522
      %1524 = vrot.lane.b32.xlu0 %v632, 28
      %v1525 = vpop.permute.xlu0 %1524
      %1526 = vrot.lane.b32.xlu0 %v633, 28
      %v1527 = vpop.permute.xlu0 %1526
      %1528 = vrot.lane.b32.xlu0 %v634, 28
      %v1529 = vpop.permute.xlu0 %1528
      %1530 = vrot.lane.b32.xlu0 %v635, 28
      %v1531 = vpop.permute.xlu0 %1530
      %1596 = vrot.lane.b32.xlu0 %v636, 32
      %v1597 = vpop.permute.xlu0 %1596
      %1598 = vrot.lane.b32.xlu0 %v637, 32
      %v1599 = vpop.permute.xlu0 %1598
      %1600 = vrot.lane.b32.xlu0 %v638, 32
      %v1601 = vpop.permute.xlu0 %1600
      %1602 = vrot.lane.b32.xlu0 %v639, 32
      %v1603 = vpop.permute.xlu0 %1602
      %1604 = vrot.lane.b32.xlu0 %v640, 32
      %v1605 = vpop.permute.xlu0 %1604
      %1606 = vrot.lane.b32.xlu0 %v641, 32
      %v1607 = vpop.permute.xlu0 %1606
      %1608 = vrot.lane.b32.xlu0 %v642, 32
      %v1609 = vpop.permute.xlu0 %1608
      %1610 = vrot.lane.b32.xlu0 %v643, 32
      %v1611 = vpop.permute.xlu0 %1610
      %1612 = vrot.lane.b32.xlu0 %v644, 32
      %v1613 = vpop.permute.xlu0 %1612
      %1614 = vrot.lane.b32.xlu0 %v645, 32
      %v1615 = vpop.permute.xlu0 %1614
      %1616 = vrot.lane.b32.xlu0 %v646, 32
      %v1617 = vpop.permute.xlu0 %1616
      %1618 = vrot.lane.b32.xlu0 %v647, 32
      %v1619 = vpop.permute.xlu0 %1618
      %1620 = vrot.lane.b32.xlu0 %v648, 32
      %v1621 = vpop.permute.xlu0 %1620
      %1622 = vrot.lane.b32.xlu0 %v649, 32
      %v1623 = vpop.permute.xlu0 %1622
      %1624 = vrot.lane.b32.xlu0 %v650, 32
      %v1625 = vpop.permute.xlu0 %1624
      %1626 = vrot.lane.b32.xlu0 %v651, 32
      %v1627 = vpop.permute.xlu0 %1626
      %1628 = vrot.lane.b32.xlu0 %v652, 32
      %v1629 = vpop.permute.xlu0 %1628
      %1630 = vrot.lane.b32.xlu0 %v653, 32
      %v1631 = vpop.permute.xlu0 %1630
      %1632 = vrot.lane.b32.xlu0 %v654, 32
      %v1633 = vpop.permute.xlu0 %1632
      %1634 = vrot.lane.b32.xlu0 %v655, 32
      %v1635 = vpop.permute.xlu0 %1634
      %1636 = vrot.lane.b32.xlu0 %v656, 32
      %v1637 = vpop.permute.xlu0 %1636
      %1638 = vrot.lane.b32.xlu0 %v657, 32
      %v1639 = vpop.permute.xlu0 %1638
      %1640 = vrot.lane.b32.xlu0 %v658, 32
      %v1641 = vpop.permute.xlu0 %1640
      %1642 = vrot.lane.b32.xlu0 %v659, 32
      %v1643 = vpop.permute.xlu0 %1642
      %1644 = vrot.lane.b32.xlu0 %v660, 32
      %v1645 = vpop.permute.xlu0 %1644
      %1646 = vrot.lane.b32.xlu0 %v661, 32
      %v1647 = vpop.permute.xlu0 %1646
      %1648 = vrot.lane.b32.xlu0 %v662, 32
      %v1649 = vpop.permute.xlu0 %1648
      %1650 = vrot.lane.b32.xlu0 %v663, 32
      %v1651 = vpop.permute.xlu0 %1650
      %1652 = vrot.lane.b32.xlu0 %v664, 32
      %v1653 = vpop.permute.xlu0 %1652
      %1654 = vrot.lane.b32.xlu0 %v665, 32
      %v1655 = vpop.permute.xlu0 %1654
      %1656 = vrot.lane.b32.xlu0 %v666, 32
      %v1657 = vpop.permute.xlu0 %1656
      %1658 = vrot.lane.b32.xlu0 %v667, 32
      %v1659 = vpop.permute.xlu0 %1658
      %v1692 = vsel %vm225, %v379, %v701
      %v1693 = vsel %vm225, %v380, %v703
      %v1694 = vsel %vm225, %v381, %v705
      %v1695 = vsel %vm225, %v382, %v707
      %v1696 = vsel %vm225, %v383, %v709
      %v1697 = vsel %vm225, %v384, %v711
      %v1698 = vsel %vm225, %v385, %v713
      %v1699 = vsel %vm225, %v386, %v715
      %v1700 = vsel %vm225, %v387, %v717
      %v1701 = vsel %vm225, %v388, %v719
      %v1702 = vsel %vm225, %v389, %v721
      %v1703 = vsel %vm225, %v390, %v723
      %v1704 = vsel %vm225, %v391, %v725
      %v1705 = vsel %vm225, %v392, %v727
      %v1706 = vsel %vm225, %v393, %v729
      %v1707 = vsel %vm225, %v394, %v731
      %v1708 = vsel %vm225, %v395, %v733
      %v1709 = vsel %vm225, %v396, %v735
      %v1710 = vsel %vm225, %v397, %v737
      %v1711 = vsel %vm225, %v398, %v739
      %v1712 = vsel %vm225, %v399, %v741
      %v1713 = vsel %vm225, %v400, %v743
      %v1714 = vsel %vm225, %v401, %v745
      %v1715 = vsel %vm225, %v402, %v747
      %v1716 = vsel %vm225, %v403, %v749
      %v1717 = vsel %vm225, %v404, %v751
      %v1718 = vsel %vm225, %v405, %v753
      %v1719 = vsel %vm225, %v406, %v755
      %v1720 = vsel %vm225, %v407, %v757
      %v1721 = vsel %vm225, %v408, %v759
      %v1722 = vsel %vm225, %v409, %v761
      %v1723 = vsel %vm225, %v410, %v763
      %vm1724 = vcmask 64512
      %v1725 = vsel %vm1724, %v1692, %v829
      %v1726 = vsel %vm1724, %v1693, %v831
      %v1727 = vsel %vm1724, %v1694, %v833
      %v1728 = vsel %vm1724, %v1695, %v835
      %v1729 = vsel %vm1724, %v1696, %v837
      %v1730 = vsel %vm1724, %v1697, %v839
      %v1731 = vsel %vm1724, %v1698, %v841
      %v1732 = vsel %vm1724, %v1699, %v843
      %v1733 = vsel %vm1724, %v1700, %v845
      %v1734 = vsel %vm1724, %v1701, %v847
      %v1735 = vsel %vm1724, %v1702, %v849
      %v1736 = vsel %vm1724, %v1703, %v851
      %v1737 = vsel %vm1724, %v1704, %v853
      %v1738 = vsel %vm1724, %v1705, %v855
      %v1739 = vsel %vm1724, %v1706, %v857
      %v1740 = vsel %vm1724, %v1707, %v859
      %v1741 = vsel %vm1724, %v1708, %v861
      %v1742 = vsel %vm1724, %v1709, %v863
      %v1743 = vsel %vm1724, %v1710, %v865
      %v1744 = vsel %vm1724, %v1711, %v867
      %v1745 = vsel %vm1724, %v1712, %v869
      %v1746 = vsel %vm1724, %v1713, %v871
      %v1747 = vsel %vm1724, %v1714, %v873
      %v1748 = vsel %vm1724, %v1715, %v875
      %v1749 = vsel %vm1724, %v1716, %v877
      %v1750 = vsel %vm1724, %v1717, %v879
      %v1751 = vsel %vm1724, %v1718, %v881
      %v1752 = vsel %vm1724, %v1719, %v883
      %v1753 = vsel %vm1724, %v1720, %v885
      %v1754 = vsel %vm1724, %v1721, %v887
      %v1755 = vsel %vm1724, %v1722, %v889
      %v1756 = vsel %vm1724, %v1723, %v891
      %vm1757 = vcmask 97280
      %v1758 = vsel %vm1757, %v1725, %v957
      %v1759 = vsel %vm1757, %v1726, %v959
      %v1760 = vsel %vm1757, %v1727, %v961
      %v1761 = vsel %vm1757, %v1728, %v963
      %v1762 = vsel %vm1757, %v1729, %v965
      %v1763 = vsel %vm1757, %v1730, %v967
      %v1764 = vsel %vm1757, %v1731, %v969
      %v1765 = vsel %vm1757, %v1732, %v971
      %v1766 = vsel %vm1757, %v1733, %v973
      %v1767 = vsel %vm1757, %v1734, %v975
      %v1768 = vsel %vm1757, %v1735, %v977
      %v1769 = vsel %vm1757, %v1736, %v979
      %v1770 = vsel %vm1757, %v1737, %v981
      %v1771 = vsel %vm1757, %v1738, %v983
      %v1772 = vsel %vm1757, %v1739, %v985
      %v1773 = vsel %vm1757, %v1740, %v987
      %v1774 = vsel %vm1757, %v1741, %v989
      %v1775 = vsel %vm1757, %v1742, %v991
      %v1776 = vsel %vm1757, %v1743, %v993
      %v1777 = vsel %vm1757, %v1744, %v995
      %v1778 = vsel %vm1757, %v1745, %v997
      %v1779 = vsel %vm1757, %v1746, %v999
      %v1780 = vsel %vm1757, %v1747, %v1001
      %v1781 = vsel %vm1757, %v1748, %v1003
      %v1782 = vsel %vm1757, %v1749, %v1005
      %v1783 = vsel %vm1757, %v1750, %v1007
      %v1784 = vsel %vm1757, %v1751, %v1009
      %v1785 = vsel %vm1757, %v1752, %v1011
      %v1786 = vsel %vm1757, %v1753, %v1013
      %v1787 = vsel %vm1757, %v1754, %v1015
      %v1788 = vsel %vm1757, %v1755, %v1017
      %v1789 = vsel %vm1757, %v1756, %v1019
      %vm1790 = vcmask 130048
      %v1791 = vsel %vm1790, %v1758, %v1085
      %v1792 = vsel %vm1790, %v1759, %v1087
      %v1793 = vsel %vm1790, %v1760, %v1089
      %v1794 = vsel %vm1790, %v1761, %v1091
      %v1795 = vsel %vm1790, %v1762, %v1093
      %v1796 = vsel %vm1790, %v1763, %v1095
      %v1797 = vsel %vm1790, %v1764, %v1097
      %v1798 = vsel %vm1790, %v1765, %v1099
      %v1799 = vsel %vm1790, %v1766, %v1101
      %v1800 = vsel %vm1790, %v1767, %v1103
      %v1801 = vsel %vm1790, %v1768, %v1105
      %v1802 = vsel %vm1790, %v1769, %v1107
      %v1803 = vsel %vm1790, %v1770, %v1109
      %v1804 = vsel %vm1790, %v1771, %v1111
      %v1805 = vsel %vm1790, %v1772, %v1113
      %v1806 = vsel %vm1790, %v1773, %v1115
      %v1807 = vsel %vm1790, %v1774, %v1117
      %v1808 = vsel %vm1790, %v1775, %v1119
      %v1809 = vsel %vm1790, %v1776, %v1121
      %v1810 = vsel %vm1790, %v1777, %v1123
      %v1811 = vsel %vm1790, %v1778, %v1125
      %v1812 = vsel %vm1790, %v1779, %v1127
      %v1813 = vsel %vm1790, %v1780, %v1129
      %v1814 = vsel %vm1790, %v1781, %v1131
      %v1815 = vsel %vm1790, %v1782, %v1133
      %v1816 = vsel %vm1790, %v1783, %v1135
      %v1817 = vsel %vm1790, %v1784, %v1137
      %v1818 = vsel %vm1790, %v1785, %v1139
      %v1819 = vsel %vm1790, %v1786, %v1141
      %v1820 = vsel %vm1790, %v1787, %v1143
      %v1821 = vsel %vm1790, %v1788, %v1145
      %v1822 = vsel %vm1790, %v1789, %v1147
      %vm1823 = vcmask 162816
      %v1824 = vsel %vm1823, %v1791, %v1213
      %v1825 = vsel %vm1823, %v1792, %v1215
      %v1826 = vsel %vm1823, %v1793, %v1217
      %v1827 = vsel %vm1823, %v1794, %v1219
      %v1828 = vsel %vm1823, %v1795, %v1221
      %v1829 = vsel %vm1823, %v1796, %v1223
      %v1830 = vsel %vm1823, %v1797, %v1225
      %v1831 = vsel %vm1823, %v1798, %v1227
      %v1832 = vsel %vm1823, %v1799, %v1229
      %v1833 = vsel %vm1823, %v1800, %v1231
      %v1834 = vsel %vm1823, %v1801, %v1233
      %v1835 = vsel %vm1823, %v1802, %v1235
      %v1836 = vsel %vm1823, %v1803, %v1237
      %v1837 = vsel %vm1823, %v1804, %v1239
      %v1838 = vsel %vm1823, %v1805, %v1241
      %v1839 = vsel %vm1823, %v1806, %v1243
      %v1840 = vsel %vm1823, %v1807, %v1245
      %v1841 = vsel %vm1823, %v1808, %v1247
      %v1842 = vsel %vm1823, %v1809, %v1249
      %v1843 = vsel %vm1823, %v1810, %v1251
      %v1844 = vsel %vm1823, %v1811, %v1253
      %v1845 = vsel %vm1823, %v1812, %v1255
      %v1846 = vsel %vm1823, %v1813, %v1257
      %v1847 = vsel %vm1823, %v1814, %v1259
      %v1848 = vsel %vm1823, %v1815, %v1261
      %v1849 = vsel %vm1823, %v1816, %v1263
      %v1850 = vsel %vm1823, %v1817, %v1265
      %v1851 = vsel %vm1823, %v1818, %v1267
      %v1852 = vsel %vm1823, %v1819, %v1269
      %v1853 = vsel %vm1823, %v1820, %v1271
      %v1854 = vsel %vm1823, %v1821, %v1273
      %v1855 = vsel %vm1823, %v1822, %v1275
      %vm1856 = vcmask 195584
      %v1857 = vsel %vm1856, %v1824, %v1341
      %v1858 = vsel %vm1856, %v1825, %v1343
      %v1859 = vsel %vm1856, %v1826, %v1345
      %v1860 = vsel %vm1856, %v1827, %v1347
      %v1861 = vsel %vm1856, %v1828, %v1349
      %v1862 = vsel %vm1856, %v1829, %v1351
      %v1863 = vsel %vm1856, %v1830, %v1353
      %v1864 = vsel %vm1856, %v1831, %v1355
      %v1865 = vsel %vm1856, %v1832, %v1357
      %v1866 = vsel %vm1856, %v1833, %v1359
      %v1867 = vsel %vm1856, %v1834, %v1361
      %v1868 = vsel %vm1856, %v1835, %v1363
      %v1869 = vsel %vm1856, %v1836, %v1365
      %v1870 = vsel %vm1856, %v1837, %v1367
      %v1871 = vsel %vm1856, %v1838, %v1369
      %v1872 = vsel %vm1856, %v1839, %v1371
      %v1873 = vsel %vm1856, %v1840, %v1373
      %v1874 = vsel %vm1856, %v1841, %v1375
      %v1875 = vsel %vm1856, %v1842, %v1377
      %v1876 = vsel %vm1856, %v1843, %v1379
      %v1877 = vsel %vm1856, %v1844, %v1381
      %v1878 = vsel %vm1856, %v1845, %v1383
      %v1879 = vsel %vm1856, %v1846, %v1385
      %v1880 = vsel %vm1856, %v1847, %v1387
      %v1881 = vsel %vm1856, %v1848, %v1389
      %v1882 = vsel %vm1856, %v1849, %v1391
      %v1883 = vsel %vm1856, %v1850, %v1393
      %v1884 = vsel %vm1856, %v1851, %v1395
      %v1885 = vsel %vm1856, %v1852, %v1397
      %v1886 = vsel %vm1856, %v1853, %v1399
      %v1887 = vsel %vm1856, %v1854, %v1401
      %v1888 = vsel %vm1856, %v1855, %v1403
      %vm1889 = vcmask 228352
      %v1890 = vsel %vm1889, %v1857, %v1469
      %v1891 = vsel %vm1889, %v1858, %v1471
      %v1892 = vsel %vm1889, %v1859, %v1473
      %v1893 = vsel %vm1889, %v1860, %v1475
      %v1894 = vsel %vm1889, %v1861, %v1477
      %v1895 = vsel %vm1889, %v1862, %v1479
      %v1896 = vsel %vm1889, %v1863, %v1481
      %v1897 = vsel %vm1889, %v1864, %v1483
      %v1898 = vsel %vm1889, %v1865, %v1485
      %v1899 = vsel %vm1889, %v1866, %v1487
      %v1900 = vsel %vm1889, %v1867, %v1489
      %v1901 = vsel %vm1889, %v1868, %v1491
      %v1902 = vsel %vm1889, %v1869, %v1493
      %v1903 = vsel %vm1889, %v1870, %v1495
      %v1904 = vsel %vm1889, %v1871, %v1497
      %v1905 = vsel %vm1889, %v1872, %v1499
      %v1906 = vsel %vm1889, %v1873, %v1501
      %v1907 = vsel %vm1889, %v1874, %v1503
      %v1908 = vsel %vm1889, %v1875, %v1505
      %v1909 = vsel %vm1889, %v1876, %v1507
      %v1910 = vsel %vm1889, %v1877, %v1509
      %v1911 = vsel %vm1889, %v1878, %v1511
      %v1912 = vsel %vm1889, %v1879, %v1513
      %v1913 = vsel %vm1889, %v1880, %v1515
      %v1914 = vsel %vm1889, %v1881, %v1517
      %v1915 = vsel %vm1889, %v1882, %v1519
      %v1916 = vsel %vm1889, %v1883, %v1521
      %v1917 = vsel %vm1889, %v1884, %v1523
      %v1918 = vsel %vm1889, %v1885, %v1525
      %v1919 = vsel %vm1889, %v1886, %v1527
      %v1920 = vsel %vm1889, %v1887, %v1529
      %v1921 = vsel %vm1889, %v1888, %v1531
      %vm1922 = vcmask 261120
      %v1923 = vsel %vm1922, %v1890, %v1597
      %v1924 = vsel %vm1922, %v1891, %v1599
      %v1925 = vsel %vm1922, %v1892, %v1601
      %v1926 = vsel %vm1922, %v1893, %v1603
      %v1927 = vsel %vm1922, %v1894, %v1605
      %v1928 = vsel %vm1922, %v1895, %v1607
      %v1929 = vsel %vm1922, %v1896, %v1609
      %v1930 = vsel %vm1922, %v1897, %v1611
      %v1931 = vsel %vm1922, %v1898, %v1613
      %v1932 = vsel %vm1922, %v1899, %v1615
      %v1933 = vsel %vm1922, %v1900, %v1617
      %v1934 = vsel %vm1922, %v1901, %v1619
      %v1935 = vsel %vm1922, %v1902, %v1621
      %v1936 = vsel %vm1922, %v1903, %v1623
      %v1937 = vsel %vm1922, %v1904, %v1625
      %v1938 = vsel %vm1922, %v1905, %v1627
      %v1939 = vsel %vm1922, %v1906, %v1629
      %v1940 = vsel %vm1922, %v1907, %v1631
      %v1941 = vsel %vm1922, %v1908, %v1633
      %v1942 = vsel %vm1922, %v1909, %v1635
      %v1943 = vsel %vm1922, %v1910, %v1637
      %v1944 = vsel %vm1922, %v1911, %v1639
      %v1945 = vsel %vm1922, %v1912, %v1641
      %v1946 = vsel %vm1922, %v1913, %v1643
      %v1947 = vsel %vm1922, %v1914, %v1645
      %v1948 = vsel %vm1922, %v1915, %v1647
      %v1949 = vsel %vm1922, %v1916, %v1649
      %v1950 = vsel %vm1922, %v1917, %v1651
      %v1951 = vsel %vm1922, %v1918, %v1653
      %v1952 = vsel %vm1922, %v1919, %v1655
      %v1953 = vsel %vm1922, %v1920, %v1657
      %v1954 = vsel %vm1922, %v1921, %v1659
      %v1955 = vld [vmem:[%s1] sm:$0xff]
      %v1956 = vld [vmem:[%s1 + $0x8] sm:$0xff]
      %v1957 = vld [vmem:[%s1 + $0x10] sm:$0xff]
      %v1958 = vld [vmem:[%s1 + $0x18] sm:$0xff]
      %v1959 = vld [vmem:[%s1 + $0x20] sm:$0xf]
      %v1960 = vld [vmem:[%s2] sm:$0x1]
      %v1962 = vlaneseq
      %v1963 = vshrl.u32 %v1962, 7
      %v1964 = vsub.s32 0, %v1963
      %v1965 = vrot.slane %v1960, %v1964
      %vm1967 = vcmask 293888
      %v1969 = vsel %vm1967, %v1923, 0
      %v1972 = vsel %vm1967, %v1924, 0
      %v1975 = vsel %vm1967, %v1925, 0
      %v1978 = vsel %vm1967, %v1926, 0
      %v1981 = vsel %vm1967, %v1927, 0
      %v1984 = vsel %vm1967, %v1928, 0
      %v1987 = vsel %vm1967, %v1929, 0
      %v1990 = vsel %vm1967, %v1930, 0
      %v1993 = vsel %vm1967, %v1931, 0
      %v1996 = vsel %vm1967, %v1932, 0
      %v1999 = vsel %vm1967, %v1933, 0
      %v2002 = vsel %vm1967, %v1934, 0
      %v2005 = vsel %vm1967, %v1935, 0
      %v2008 = vsel %vm1967, %v1936, 0
      %v2011 = vsel %vm1967, %v1937, 0
      %v2014 = vsel %vm1967, %v1938, 0
      %v2017 = vsel %vm1967, %v1939, 0
      %v2020 = vsel %vm1967, %v1940, 0
      %v2023 = vsel %vm1967, %v1941, 0
      %v2026 = vsel %vm1967, %v1942, 0
      %v2029 = vsel %vm1967, %v1943, 0
      %v2032 = vsel %vm1967, %v1944, 0
      %v2035 = vsel %vm1967, %v1945, 0
      %v2038 = vsel %vm1967, %v1946, 0
      %v2041 = vsel %vm1967, %v1947, 0
      %v2044 = vsel %vm1967, %v1948, 0
      %v2047 = vsel %vm1967, %v1949, 0
      %v2050 = vsel %vm1967, %v1950, 0
      %v2053 = vsel %vm1967, %v1951, 0
      %v2056 = vsel %vm1967, %v1952, 0
      %v2059 = vsel %vm1967, %v1953, 0
      %v2062 = vsel %vm1967, %v1954, 0
      %vm2064 = vcmask 1043456
      %v2066 = vsel %vm2064, %v1959, 0
      %2068 = vmatprep.subr.mxu0 0.0
      %2069 = vmatpush1.msra.mxu0 0.0
      %2070 = vmatprep.subr.mxu0 0.0
      %2071 = vmatpush1.msra.mxu0 0.0
      %2072 = vmatprep.subr.mxu0 0.0
      %2073 = vmatpush1.msra.mxu0 0.0
      %2074 = vmatprep.subr.mxu0 0.0
      %2075 = vmatpush1.msra.mxu0 0.0
      %2076 = vmatprep.subr.mxu0 0.0
      %2077 = vmatpush1.msra.mxu0 0.0
      %2078 = vmatprep.subr.mxu0 0.0
      %2079 = vmatpush1.msra.mxu0 0.0
      %2080 = vmatprep.subr.mxu0 0.0
      %2081 = vmatpush1.msra.mxu0 0.0
      %2082 = vmatprep.subr.mxu0 0.0
      %2083 = vmatpush1.msra.mxu0 0.0
      %2084 = vmatprep.subr.mxu0 0.0
      %2085 = vmatpush1.msra.mxu0 0.0
      %2086 = vmatprep.subr.mxu0 0.0
      %2087 = vmatpush1.msra.mxu0 0.0
      %2088 = vmatprep.subr.mxu0 0.0
      %2089 = vmatpush1.msra.mxu0 0.0
      %2090 = vmatprep.subr.mxu0 0.0
      %2091 = vmatpush1.msra.mxu0 %v2066
      %2092 = vmatprep.subr.mxu0 0.0
      %2093 = vmatpush1.msra.mxu0 %v1958
      %2094 = vmatprep.subr.mxu0 0.0
      %2095 = vmatpush1.msra.mxu0 %v1957
      %2096 = vmatprep.subr.mxu0 0.0
      %2097 = vmatpush1.msra.mxu0 %v1956
      %2098 = vmatprep.subr.mxu0 0.0
      %2099 = vmatpush1.msra.mxu0 %v1955
      %2100 = vmatprep.subr.mxu0 0.0
      %2101 = vmatpush2.msra.mxu0 0.0
      %2102 = vmatprep.subr.mxu0 0.0
      %2103 = vmatpush2.msra.mxu0 0.0
      %2104 = vmatprep.subr.mxu0 0.0
      %2105 = vmatpush2.msra.mxu0 0.0
      %2106 = vmatprep.subr.mxu0 0.0
      %2107 = vmatpush2.msra.mxu0 0.0
      %2108 = vmatprep.subr.mxu0 0.0
      %2109 = vmatpush2.msra.mxu0 0.0
      %2110 = vmatprep.subr.mxu0 0.0
      %2111 = vmatpush2.msra.mxu0 0.0
      %2112 = vmatprep.subr.mxu0 0.0
      %2113 = vmatpush2.msra.mxu0 0.0
      %2114 = vmatprep.subr.mxu0 0.0
      %2115 = vmatpush2.msra.mxu0 0.0
      %2116 = vmatprep.subr.mxu0 0.0
      %2117 = vmatpush2.msra.mxu0 0.0
      %2118 = vmatprep.subr.mxu0 0.0
      %2119 = vmatpush2.msra.mxu0 0.0
      %2120 = vmatprep.subr.mxu0 0.0
      %2121 = vmatpush2.msra.mxu0 0.0
      %2122 = vmatprep.subr.mxu0 0.0
      %2123 = vmatpush2.msra.mxu0 0.0
      %2124 = vmatprep.subr.mxu0 0.0
      %2125 = vmatpush2.msra.mxu0 0.0
      %2126 = vmatprep.subr.mxu0 0.0
      %2127 = vmatpush2.msra.mxu0 0.0
      %2128 = vmatprep.subr.mxu0 0.0
      %2129 = vmatpush2.msra.mxu0 0.0
      %2130 = vmatprep.subr.mxu0 0.0
      %2131 = vmatpush2.msra.mxu0 0.0
      %2132 = vmatprep.mubr.f32.mxu0 0.0
      %2133 = vmatmul.mubr.f32.gmra.mxu0 %v1969
      %v2134 = vpop.f32.mrf.mxu0
      %v2135 = vadd.f32 %v1965, %v2134
      %v2136 = vpop.f32.mrf.mxu0
      %2137 = vmatprep.mubr.f32.mxu0 0.0
      %2138 = vmatmul.mubr.f32.gmra.mxu0 %v1972
      %v2139 = vpop.f32.mrf.mxu0
      %v2140 = vadd.f32 %v1965, %v2139
      %v2141 = vpop.f32.mrf.mxu0
      %2142 = vmatprep.mubr.f32.mxu0 0.0
      %2143 = vmatmul.mubr.f32.gmra.mxu0 %v1975
      %v2144 = vpop.f32.mrf.mxu0
      %v2145 = vadd.f32 %v1965, %v2144
      %v2146 = vpop.f32.mrf.mxu0
      %2147 = vmatprep.mubr.f32.mxu0 0.0
      %2148 = vmatmul.mubr.f32.gmra.mxu0 %v1978
      %v2149 = vpop.f32.mrf.mxu0
      %v2150 = vadd.f32 %v1965, %v2149
      %v2151 = vpop.f32.mrf.mxu0
      %2152 = vmatprep.mubr.f32.mxu0 0.0
      %2153 = vmatmul.mubr.f32.gmra.mxu0 %v1981
      %v2154 = vpop.f32.mrf.mxu0
      %v2155 = vadd.f32 %v1965, %v2154
      %v2156 = vpop.f32.mrf.mxu0
      %2157 = vmatprep.mubr.f32.mxu0 0.0
      %2158 = vmatmul.mubr.f32.gmra.mxu0 %v1984
      %v2159 = vpop.f32.mrf.mxu0
      %v2160 = vadd.f32 %v1965, %v2159
      %v2161 = vpop.f32.mrf.mxu0
      %2162 = vmatprep.mubr.f32.mxu0 0.0
      %2163 = vmatmul.mubr.f32.gmra.mxu0 %v1987
      %v2164 = vpop.f32.mrf.mxu0
      %v2165 = vadd.f32 %v1965, %v2164
      %v2166 = vpop.f32.mrf.mxu0
      %2167 = vmatprep.mubr.f32.mxu0 0.0
      %2168 = vmatmul.mubr.f32.gmra.mxu0 %v1990
      %v2169 = vpop.f32.mrf.mxu0
      %v2170 = vadd.f32 %v1965, %v2169
      %v2171 = vpop.f32.mrf.mxu0
      %2172 = vmatprep.mubr.f32.mxu0 0.0
      %2173 = vmatmul.mubr.f32.gmra.mxu0 %v1993
      %v2174 = vpop.f32.mrf.mxu0
      %v2175 = vadd.f32 %v1965, %v2174
      %v2176 = vpop.f32.mrf.mxu0
      %2177 = vmatprep.mubr.f32.mxu0 0.0
      %2178 = vmatmul.mubr.f32.gmra.mxu0 %v1996
      %v2179 = vpop.f32.mrf.mxu0
      %v2180 = vadd.f32 %v1965, %v2179
      %v2181 = vpop.f32.mrf.mxu0
      %2182 = vmatprep.mubr.f32.mxu0 0.0
      %2183 = vmatmul.mubr.f32.gmra.mxu0 %v1999
      %v2184 = vpop.f32.mrf.mxu0
      %v2185 = vadd.f32 %v1965, %v2184
      %v2186 = vpop.f32.mrf.mxu0
      %2187 = vmatprep.mubr.f32.mxu0 0.0
      %2188 = vmatmul.mubr.f32.gmra.mxu0 %v2002
      %v2189 = vpop.f32.mrf.mxu0
      %v2190 = vadd.f32 %v1965, %v2189
      %v2191 = vpop.f32.mrf.mxu0
      %2192 = vmatprep.mubr.f32.mxu0 0.0
      %2193 = vmatmul.mubr.f32.gmra.mxu0 %v2005
      %v2194 = vpop.f32.mrf.mxu0
      %v2195 = vadd.f32 %v1965, %v2194
      %v2196 = vpop.f32.mrf.mxu0
      %2197 = vmatprep.mubr.f32.mxu0 0.0
      %2198 = vmatmul.mubr.f32.gmra.mxu0 %v2008
      %v2199 = vpop.f32.mrf.mxu0
      %v2200 = vadd.f32 %v1965, %v2199
      %v2201 = vpop.f32.mrf.mxu0
      %2202 = vmatprep.mubr.f32.mxu0 0.0
      %2203 = vmatmul.mubr.f32.gmra.mxu0 %v2011
      %v2204 = vpop.f32.mrf.mxu0
      %v2205 = vadd.f32 %v1965, %v2204
      %v2206 = vpop.f32.mrf.mxu0
      %2207 = vmatprep.mubr.f32.mxu0 0.0
      %2208 = vmatmul.mubr.f32.gmra.mxu0 %v2014
      %v2209 = vpop.f32.mrf.mxu0
      %v2210 = vadd.f32 %v1965, %v2209
      %v2211 = vpop.f32.mrf.mxu0
      %2212 = vmatprep.mubr.f32.mxu0 0.0
      %2213 = vmatmul.mubr.f32.gmra.mxu0 %v2017
      %v2214 = vpop.f32.mrf.mxu0
      %v2215 = vadd.f32 %v1965, %v2214
      %v2216 = vpop.f32.mrf.mxu0
      %2217 = vmatprep.mubr.f32.mxu0 0.0
      %2218 = vmatmul.mubr.f32.gmra.mxu0 %v2020
      %v2219 = vpop.f32.mrf.mxu0
      %v2220 = vadd.f32 %v1965, %v2219
      %v2221 = vpop.f32.mrf.mxu0
      %2222 = vmatprep.mubr.f32.mxu0 0.0
      %2223 = vmatmul.mubr.f32.gmra.mxu0 %v2023
      %v2224 = vpop.f32.mrf.mxu0
      %v2225 = vadd.f32 %v1965, %v2224
      %v2226 = vpop.f32.mrf.mxu0
      %2227 = vmatprep.mubr.f32.mxu0 0.0
      %2228 = vmatmul.mubr.f32.gmra.mxu0 %v2026
      %v2229 = vpop.f32.mrf.mxu0
      %v2230 = vadd.f32 %v1965, %v2229
      %v2231 = vpop.f32.mrf.mxu0
      %2232 = vmatprep.mubr.f32.mxu0 0.0
      %2233 = vmatmul.mubr.f32.gmra.mxu0 %v2029
      %v2234 = vpop.f32.mrf.mxu0
      %v2235 = vadd.f32 %v1965, %v2234
      %v2236 = vpop.f32.mrf.mxu0
      %2237 = vmatprep.mubr.f32.mxu0 0.0
      %2238 = vmatmul.mubr.f32.gmra.mxu0 %v2032
      %v2239 = vpop.f32.mrf.mxu0
      %v2240 = vadd.f32 %v1965, %v2239
      %v2241 = vpop.f32.mrf.mxu0
      %2242 = vmatprep.mubr.f32.mxu0 0.0
      %2243 = vmatmul.mubr.f32.gmra.mxu0 %v2035
      %v2244 = vpop.f32.mrf.mxu0
      %v2245 = vadd.f32 %v1965, %v2244
      %v2246 = vpop.f32.mrf.mxu0
      %2247 = vmatprep.mubr.f32.mxu0 0.0
      %2248 = vmatmul.mubr.f32.gmra.mxu0 %v2038
      %v2249 = vpop.f32.mrf.mxu0
      %v2250 = vadd.f32 %v1965, %v2249
      %v2251 = vpop.f32.mrf.mxu0
      %2252 = vmatprep.mubr.f32.mxu0 0.0
      %2253 = vmatmul.mubr.f32.gmra.mxu0 %v2041
      %v2254 = vpop.f32.mrf.mxu0
      %v2255 = vadd.f32 %v1965, %v2254
      %v2256 = vpop.f32.mrf.mxu0
      %2257 = vmatprep.mubr.f32.mxu0 0.0
      %2258 = vmatmul.mubr.f32.gmra.mxu0 %v2044
      %v2259 = vpop.f32.mrf.mxu0
      %v2260 = vadd.f32 %v1965, %v2259
      %v2261 = vpop.f32.mrf.mxu0
      %2262 = vmatprep.mubr.f32.mxu0 0.0
      %2263 = vmatmul.mubr.f32.gmra.mxu0 %v2047
      %v2264 = vpop.f32.mrf.mxu0
      %v2265 = vadd.f32 %v1965, %v2264
      %v2266 = vpop.f32.mrf.mxu0
      %2267 = vmatprep.mubr.f32.mxu0 0.0
      %2268 = vmatmul.mubr.f32.gmra.mxu0 %v2050
      %v2269 = vpop.f32.mrf.mxu0
      %v2270 = vadd.f32 %v1965, %v2269
      %v2271 = vpop.f32.mrf.mxu0
      %2272 = vmatprep.mubr.f32.mxu0 0.0
      %2273 = vmatmul.mubr.f32.gmra.mxu0 %v2053
      %v2274 = vpop.f32.mrf.mxu0
      %v2275 = vadd.f32 %v1965, %v2274
      %v2276 = vpop.f32.mrf.mxu0
      %2277 = vmatprep.mubr.f32.mxu0 0.0
      %2278 = vmatmul.mubr.f32.gmra.mxu0 %v2056
      %v2279 = vpop.f32.mrf.mxu0
      %v2280 = vadd.f32 %v1965, %v2279
      %v2281 = vpop.f32.mrf.mxu0
      %2282 = vmatprep.mubr.f32.mxu0 0.0
      %2283 = vmatmul.mubr.f32.gmra.mxu0 %v2059
      %v2284 = vpop.f32.mrf.mxu0
      %v2285 = vadd.f32 %v1965, %v2284
      %v2286 = vpop.f32.mrf.mxu0
      %2287 = vmatprep.mubr.f32.mxu0 0.0
      %2288 = vmatmul.mubr.f32.gmra.mxu0 %v2062
      %v2289 = vpop.f32.mrf.mxu0
      %v2290 = vadd.f32 %v1965, %v2289
      %v2291 = vpop.f32.mrf.mxu0
      %2292 = vdwg.mxu0
      %v2293 = vmin.f32 %v2135, 20.0
      %v2294 = vmin.f32 %v2140, 20.0
      %v2295 = vmin.f32 %v2145, 20.0
      %v2296 = vmin.f32 %v2150, 20.0
      %v2297 = vmin.f32 %v2155, 20.0
      %v2298 = vmin.f32 %v2160, 20.0
      %v2299 = vmin.f32 %v2165, 20.0
      %v2300 = vmin.f32 %v2170, 20.0
      %v2301 = vmin.f32 %v2175, 20.0
      %v2302 = vmin.f32 %v2180, 20.0
      %v2303 = vmin.f32 %v2185, 20.0
      %v2304 = vmin.f32 %v2190, 20.0
      %v2305 = vmin.f32 %v2195, 20.0
      %v2306 = vmin.f32 %v2200, 20.0
      %v2307 = vmin.f32 %v2205, 20.0
      %v2308 = vmin.f32 %v2210, 20.0
      %v2309 = vmin.f32 %v2215, 20.0
      %v2310 = vmin.f32 %v2220, 20.0
      %v2311 = vmin.f32 %v2225, 20.0
      %v2312 = vmin.f32 %v2230, 20.0
      %v2313 = vmin.f32 %v2235, 20.0
      %v2314 = vmin.f32 %v2240, 20.0
      %v2315 = vmin.f32 %v2245, 20.0
      %v2316 = vmin.f32 %v2250, 20.0
      %v2317 = vmin.f32 %v2255, 20.0
      %v2318 = vmin.f32 %v2260, 20.0
      %v2319 = vmin.f32 %v2265, 20.0
      %v2320 = vmin.f32 %v2270, 20.0
      %v2321 = vmin.f32 %v2275, 20.0
      %v2322 = vmin.f32 %v2280, 20.0
      %v2323 = vmin.f32 %v2285, 20.0
      %v2324 = vmin.f32 %v2290, 20.0
      %v2325 = vmul.f32 %v2293, 1.442695
      %v2326 = vpow.pop %v2325
      %v2327 = vmul.f32 %v2294, 1.442695
      %v2328 = vpow.pop %v2327
      %v2329 = vmul.f32 %v2295, 1.442695
      %v2330 = vpow.pop %v2329
      %v2331 = vmul.f32 %v2296, 1.442695
      %v2332 = vpow.pop %v2331
      %v2333 = vmul.f32 %v2297, 1.442695
      %v2334 = vpow.pop %v2333
      %v2335 = vmul.f32 %v2298, 1.442695
      %v2336 = vpow.pop %v2335
      %v2337 = vmul.f32 %v2299, 1.442695
      %v2338 = vpow.pop %v2337
      %v2339 = vmul.f32 %v2300, 1.442695
      %v2340 = vpow.pop %v2339
      %v2341 = vmul.f32 %v2301, 1.442695
      %v2342 = vpow.pop %v2341
      %v2343 = vmul.f32 %v2302, 1.442695
      %v2344 = vpow.pop %v2343
      %v2345 = vmul.f32 %v2303, 1.442695
      %v2346 = vpow.pop %v2345
      %v2347 = vmul.f32 %v2304, 1.442695
      %v2348 = vpow.pop %v2347
      %v2349 = vmul.f32 %v2305, 1.442695
      %v2350 = vpow.pop %v2349
      %v2351 = vmul.f32 %v2306, 1.442695
      %v2352 = vpow.pop %v2351
      %v2353 = vmul.f32 %v2307, 1.442695
      %v2354 = vpow.pop %v2353
      %v2355 = vmul.f32 %v2308, 1.442695
      %v2356 = vpow.pop %v2355
      %v2357 = vmul.f32 %v2309, 1.442695
      %v2358 = vpow.pop %v2357
      %v2359 = vmul.f32 %v2310, 1.442695
      %v2360 = vpow.pop %v2359
      %v2361 = vmul.f32 %v2311, 1.442695
      %v2362 = vpow.pop %v2361
      %v2363 = vmul.f32 %v2312, 1.442695
      %v2364 = vpow.pop %v2363
      %v2365 = vmul.f32 %v2313, 1.442695
      %v2366 = vpow.pop %v2365
      %v2367 = vmul.f32 %v2314, 1.442695
      %v2368 = vpow.pop %v2367
      %v2369 = vmul.f32 %v2315, 1.442695
      %v2370 = vpow.pop %v2369
      %v2371 = vmul.f32 %v2316, 1.442695
      %v2372 = vpow.pop %v2371
      %v2373 = vmul.f32 %v2317, 1.442695
      %v2374 = vpow.pop %v2373
      %v2375 = vmul.f32 %v2318, 1.442695
      %v2376 = vpow.pop %v2375
      %v2377 = vmul.f32 %v2319, 1.442695
      %v2378 = vpow.pop %v2377
      %v2379 = vmul.f32 %v2320, 1.442695
      %v2380 = vpow.pop %v2379
      %v2381 = vmul.f32 %v2321, 1.442695
      %v2382 = vpow.pop %v2381
      %v2383 = vmul.f32 %v2322, 1.442695
      %v2384 = vpow.pop %v2383
      %v2385 = vmul.f32 %v2323, 1.442695
      %v2386 = vpow.pop %v2385
      %v2387 = vmul.f32 %v2324, 1.442695
      %v2388 = vpow.pop %v2387
      %v2389 = vadd.f32 %v2326, 1.0
      %v2390 = vadd.f32 %v2328, 1.0
      %v2391 = vadd.f32 %v2330, 1.0
      %v2392 = vadd.f32 %v2332, 1.0
      %v2393 = vadd.f32 %v2334, 1.0
      %v2394 = vadd.f32 %v2336, 1.0
      %v2395 = vadd.f32 %v2338, 1.0
      %v2396 = vadd.f32 %v2340, 1.0
      %v2397 = vadd.f32 %v2342, 1.0
      %v2398 = vadd.f32 %v2344, 1.0
      %v2399 = vadd.f32 %v2346, 1.0
      %v2400 = vadd.f32 %v2348, 1.0
      %v2401 = vadd.f32 %v2350, 1.0
      %v2402 = vadd.f32 %v2352, 1.0
      %v2403 = vadd.f32 %v2354, 1.0
      %v2404 = vadd.f32 %v2356, 1.0
      %v2405 = vadd.f32 %v2358, 1.0
      %v2406 = vadd.f32 %v2360, 1.0
      %v2407 = vadd.f32 %v2362, 1.0
      %v2408 = vadd.f32 %v2364, 1.0
      %v2409 = vadd.f32 %v2366, 1.0
      %v2410 = vadd.f32 %v2368, 1.0
      %v2411 = vadd.f32 %v2370, 1.0
      %v2412 = vadd.f32 %v2372, 1.0
      %v2413 = vadd.f32 %v2374, 1.0
      %v2414 = vadd.f32 %v2376, 1.0
      %v2415 = vadd.f32 %v2378, 1.0
      %v2416 = vadd.f32 %v2380, 1.0
      %v2417 = vadd.f32 %v2382, 1.0
      %v2418 = vadd.f32 %v2384, 1.0
      %v2419 = vadd.f32 %v2386, 1.0
      %v2420 = vadd.f32 %v2388, 1.0
      %v2421 = vmul.f32 %v2389, %v2389
      %v2422 = vmul.f32 %v2390, %v2390
      %v2423 = vmul.f32 %v2391, %v2391
      %v2424 = vmul.f32 %v2392, %v2392
      %v2425 = vmul.f32 %v2393, %v2393
      %v2426 = vmul.f32 %v2394, %v2394
      %v2427 = vmul.f32 %v2395, %v2395
      %v2428 = vmul.f32 %v2396, %v2396
      %v2429 = vmul.f32 %v2397, %v2397
      %v2430 = vmul.f32 %v2398, %v2398
      %v2431 = vmul.f32 %v2399, %v2399
      %v2432 = vmul.f32 %v2400, %v2400
      %v2433 = vmul.f32 %v2401, %v2401
      %v2434 = vmul.f32 %v2402, %v2402
      %v2435 = vmul.f32 %v2403, %v2403
      %v2436 = vmul.f32 %v2404, %v2404
      %v2437 = vmul.f32 %v2405, %v2405
      %v2438 = vmul.f32 %v2406, %v2406
      %v2439 = vmul.f32 %v2407, %v2407
      %v2440 = vmul.f32 %v2408, %v2408
      %v2441 = vmul.f32 %v2409, %v2409
      %v2442 = vmul.f32 %v2410, %v2410
      %v2443 = vmul.f32 %v2411, %v2411
      %v2444 = vmul.f32 %v2412, %v2412
      %v2445 = vmul.f32 %v2413, %v2413
      %v2446 = vmul.f32 %v2414, %v2414
      %v2447 = vmul.f32 %v2415, %v2415
      %v2448 = vmul.f32 %v2416, %v2416
      %v2449 = vmul.f32 %v2417, %v2417
      %v2450 = vmul.f32 %v2418, %v2418
      %v2451 = vmul.f32 %v2419, %v2419
      %v2452 = vmul.f32 %v2420, %v2420
      %v2453 = vsub.f32 %v2421, 1.0
      %v2454 = vsub.f32 %v2422, 1.0
      %v2455 = vsub.f32 %v2423, 1.0
      %v2456 = vsub.f32 %v2424, 1.0
      %v2457 = vsub.f32 %v2425, 1.0
      %v2458 = vsub.f32 %v2426, 1.0
      %v2459 = vsub.f32 %v2427, 1.0
      %v2460 = vsub.f32 %v2428, 1.0
      %v2461 = vsub.f32 %v2429, 1.0
      %v2462 = vsub.f32 %v2430, 1.0
      %v2463 = vsub.f32 %v2431, 1.0
      %v2464 = vsub.f32 %v2432, 1.0
      %v2465 = vsub.f32 %v2433, 1.0
      %v2466 = vsub.f32 %v2434, 1.0
      %v2467 = vsub.f32 %v2435, 1.0
      %v2468 = vsub.f32 %v2436, 1.0
      %v2469 = vsub.f32 %v2437, 1.0
      %v2470 = vsub.f32 %v2438, 1.0
      %v2471 = vsub.f32 %v2439, 1.0
      %v2472 = vsub.f32 %v2440, 1.0
      %v2473 = vsub.f32 %v2441, 1.0
      %v2474 = vsub.f32 %v2442, 1.0
      %v2475 = vsub.f32 %v2443, 1.0
      %v2476 = vsub.f32 %v2444, 1.0
      %v2477 = vsub.f32 %v2445, 1.0
      %v2478 = vsub.f32 %v2446, 1.0
      %v2479 = vsub.f32 %v2447, 1.0
      %v2480 = vsub.f32 %v2448, 1.0
      %v2481 = vsub.f32 %v2449, 1.0
      %v2482 = vsub.f32 %v2450, 1.0
      %v2483 = vsub.f32 %v2451, 1.0
      %v2484 = vsub.f32 %v2452, 1.0
      %v2485 = vadd.f32 %v2421, 1.0
      %v2486 = vadd.f32 %v2422, 1.0
      %v2487 = vadd.f32 %v2423, 1.0
      %v2488 = vadd.f32 %v2424, 1.0
      %v2489 = vadd.f32 %v2425, 1.0
      %v2490 = vadd.f32 %v2426, 1.0
      %v2491 = vadd.f32 %v2427, 1.0
      %v2492 = vadd.f32 %v2428, 1.0
      %v2493 = vadd.f32 %v2429, 1.0
      %v2494 = vadd.f32 %v2430, 1.0
      %v2495 = vadd.f32 %v2431, 1.0
      %v2496 = vadd.f32 %v2432, 1.0
      %v2497 = vadd.f32 %v2433, 1.0
      %v2498 = vadd.f32 %v2434, 1.0
      %v2499 = vadd.f32 %v2435, 1.0
      %v2500 = vadd.f32 %v2436, 1.0
      %v2501 = vadd.f32 %v2437, 1.0
      %v2502 = vadd.f32 %v2438, 1.0
      %v2503 = vadd.f32 %v2439, 1.0
      %v2504 = vadd.f32 %v2440, 1.0
      %v2505 = vadd.f32 %v2441, 1.0
      %v2506 = vadd.f32 %v2442, 1.0
      %v2507 = vadd.f32 %v2443, 1.0
      %v2508 = vadd.f32 %v2444, 1.0
      %v2509 = vadd.f32 %v2445, 1.0
      %v2510 = vadd.f32 %v2446, 1.0
      %v2511 = vadd.f32 %v2447, 1.0
      %v2512 = vadd.f32 %v2448, 1.0
      %v2513 = vadd.f32 %v2449, 1.0
      %v2514 = vadd.f32 %v2450, 1.0
      %v2515 = vadd.f32 %v2451, 1.0
      %v2516 = vadd.f32 %v2452, 1.0
      %v2517 = vrcp.pop %v2485
      %v2518 = vmul.f32 %v2453, %v2517
      %v2519 = vrcp.pop %v2486
      %v2520 = vmul.f32 %v2454, %v2519
      %v2521 = vrcp.pop %v2487
      %v2522 = vmul.f32 %v2455, %v2521
      %v2523 = vrcp.pop %v2488
      %v2524 = vmul.f32 %v2456, %v2523
      %v2525 = vrcp.pop %v2489
      %v2526 = vmul.f32 %v2457, %v2525
      %v2527 = vrcp.pop %v2490
      %v2528 = vmul.f32 %v2458, %v2527
      %v2529 = vrcp.pop %v2491
      %v2530 = vmul.f32 %v2459, %v2529
      %v2531 = vrcp.pop %v2492
      %v2532 = vmul.f32 %v2460, %v2531
      %v2533 = vrcp.pop %v2493
      %v2534 = vmul.f32 %v2461, %v2533
      %v2535 = vrcp.pop %v2494
      %v2536 = vmul.f32 %v2462, %v2535
      %v2537 = vrcp.pop %v2495
      %v2538 = vmul.f32 %v2463, %v2537
      %v2539 = vrcp.pop %v2496
      %v2540 = vmul.f32 %v2464, %v2539
      %v2541 = vrcp.pop %v2497
      %v2542 = vmul.f32 %v2465, %v2541
      %v2543 = vrcp.pop %v2498
      %v2544 = vmul.f32 %v2466, %v2543
      %v2545 = vrcp.pop %v2499
      %v2546 = vmul.f32 %v2467, %v2545
      %v2547 = vrcp.pop %v2500
      %v2548 = vmul.f32 %v2468, %v2547
      %v2549 = vrcp.pop %v2501
      %v2550 = vmul.f32 %v2469, %v2549
      %v2551 = vrcp.pop %v2502
      %v2552 = vmul.f32 %v2470, %v2551
      %v2553 = vrcp.pop %v2503
      %v2554 = vmul.f32 %v2471, %v2553
      %v2555 = vrcp.pop %v2504
      %v2556 = vmul.f32 %v2472, %v2555
      %v2557 = vrcp.pop %v2505
      %v2558 = vmul.f32 %v2473, %v2557
      %v2559 = vrcp.pop %v2506
      %v2560 = vmul.f32 %v2474, %v2559
      %v2561 = vrcp.pop %v2507
      %v2562 = vmul.f32 %v2475, %v2561
      %v2563 = vrcp.pop %v2508
      %v2564 = vmul.f32 %v2476, %v2563
      %v2565 = vrcp.pop %v2509
      %v2566 = vmul.f32 %v2477, %v2565
      %v2567 = vrcp.pop %v2510
      %v2568 = vmul.f32 %v2478, %v2567
      %v2569 = vrcp.pop %v2511
      %v2570 = vmul.f32 %v2479, %v2569
      %v2571 = vrcp.pop %v2512
      %v2572 = vmul.f32 %v2480, %v2571
      %v2573 = vrcp.pop %v2513
      %v2574 = vmul.f32 %v2481, %v2573
      %v2575 = vrcp.pop %v2514
      %v2576 = vmul.f32 %v2482, %v2575
      %v2577 = vrcp.pop %v2515
      %v2578 = vmul.f32 %v2483, %v2577
      %v2579 = vrcp.pop %v2516
      %v2580 = vmul.f32 %v2484, %v2579
      %v2581 = vmul.f32 %v2135, %v2518
      %v2582 = vmul.f32 %v2140, %v2520
      %v2583 = vmul.f32 %v2145, %v2522
      %v2584 = vmul.f32 %v2150, %v2524
      %v2585 = vmul.f32 %v2155, %v2526
      %v2586 = vmul.f32 %v2160, %v2528
      %v2587 = vmul.f32 %v2165, %v2530
      %v2588 = vmul.f32 %v2170, %v2532
      %v2589 = vmul.f32 %v2175, %v2534
      %v2590 = vmul.f32 %v2180, %v2536
      %v2591 = vmul.f32 %v2185, %v2538
      %v2592 = vmul.f32 %v2190, %v2540
      %v2593 = vmul.f32 %v2195, %v2542
      %v2594 = vmul.f32 %v2200, %v2544
      %v2595 = vmul.f32 %v2205, %v2546
      %v2596 = vmul.f32 %v2210, %v2548
      %v2597 = vmul.f32 %v2215, %v2550
      %v2598 = vmul.f32 %v2220, %v2552
      %v2599 = vmul.f32 %v2225, %v2554
      %v2600 = vmul.f32 %v2230, %v2556
      %v2601 = vmul.f32 %v2235, %v2558
      %v2602 = vmul.f32 %v2240, %v2560
      %v2603 = vmul.f32 %v2245, %v2562
      %v2604 = vmul.f32 %v2250, %v2564
      %v2605 = vmul.f32 %v2255, %v2566
      %v2606 = vmul.f32 %v2260, %v2568
      %v2607 = vmul.f32 %v2265, %v2570
      %v2608 = vmul.f32 %v2270, %v2572
      %v2609 = vmul.f32 %v2275, %v2574
      %v2610 = vmul.f32 %v2280, %v2576
      %v2611 = vmul.f32 %v2285, %v2578
      %v2612 = vmul.f32 %v2290, %v2580
      %s2613 = scalar_lea.vmem [#allocation3], 24
      %2614 = vst.msk [vmem:[%s2613 + $0x1] sm:$0xff] %vm225, %v2581
      %2615 = vst.msk [vmem:[%s2613 + $0x9] sm:$0xff] %vm225, %v2582
      %2616 = vst.msk [vmem:[%s2613 + $0x19] sm:$0xff] %vm225, %v2583
      %2617 = vst.msk [vmem:[%s2613 + $0x21] sm:$0xff] %vm225, %v2584
      %2618 = vst.msk [vmem:[%s2613 + $0x31] sm:$0xff] %vm225, %v2585
      %2619 = vst.msk [vmem:[%s2613 + $0x39] sm:$0xff] %vm225, %v2586
      %2620 = vst.msk [vmem:[%s2613 + $0x49] sm:$0xff] %vm225, %v2587
      %2621 = vst.msk [vmem:[%s2613 + $0x51] sm:$0xff] %vm225, %v2588
      %2622 = vst.msk [vmem:[%s2613 + $0x61] sm:$0xff] %vm225, %v2589
      %2623 = vst.msk [vmem:[%s2613 + $0x69] sm:$0xff] %vm225, %v2590
      %2624 = vst.msk [vmem:[%s2613 + $0x79] sm:$0xff] %vm225, %v2591
      %2625 = vst.msk [vmem:[%s2613 + $0x81] sm:$0xff] %vm225, %v2592
      %2626 = vst.msk [vmem:[%s2613 + $0x91] sm:$0xff] %vm225, %v2593
      %2627 = vst.msk [vmem:[%s2613 + $0x99] sm:$0xff] %vm225, %v2594
      %2628 = vst.msk [vmem:[%s2613 + $0xa9] sm:$0xff] %vm225, %v2595
      %2629 = vst.msk [vmem:[%s2613 + $0xb1] sm:$0xff] %vm225, %v2596
      %2630 = vst.msk [vmem:[%s2613 + $0xc1] sm:$0xff] %vm225, %v2597
      %2631 = vst.msk [vmem:[%s2613 + $0xc9] sm:$0xff] %vm225, %v2598
      %2632 = vst.msk [vmem:[%s2613 + $0xd9] sm:$0xff] %vm225, %v2599
      %2633 = vst.msk [vmem:[%s2613 + $0xe1] sm:$0xff] %vm225, %v2600
      %2634 = vst.msk [vmem:[%s2613 + $0xf1] sm:$0xff] %vm225, %v2601
      %2635 = vst.msk [vmem:[%s2613 + $0xf9] sm:$0xff] %vm225, %v2602
      %2636 = vst.msk [vmem:[%s2613 + $0x109] sm:$0xff] %vm225, %v2603
      %2637 = vst.msk [vmem:[%s2613 + $0x111] sm:$0xff] %vm225, %v2604
      %2638 = vst.msk [vmem:[%s2613 + $0x121] sm:$0xff] %vm225, %v2605
      %2639 = vst.msk [vmem:[%s2613 + $0x129] sm:$0xff] %vm225, %v2606
      %2640 = vst.msk [vmem:[%s2613 + $0x139] sm:$0xff] %vm225, %v2607
      %2641 = vst.msk [vmem:[%s2613 + $0x141] sm:$0xff] %vm225, %v2608
      %2642 = vst.msk [vmem:[%s2613 + $0x151] sm:$0xff] %vm225, %v2609
      %2643 = vst.msk [vmem:[%s2613 + $0x159] sm:$0xff] %vm225, %v2610
      %2644 = vst.msk [vmem:[%s2613 + $0x169] sm:$0xff] %vm225, %v2611
      %2645 = vst.msk [vmem:[%s2613 + $0x171] sm:$0xff] %vm225, %v2612
      %v2646 = vld [vmem:[#allocation3] sm:$0xff]
      %v2647 = vld [vmem:[#allocation3 + $0x8] sm:$0xff]
      %v2648 = vld [vmem:[#allocation3 + $0x18] sm:$0xff]
      %v2649 = vld [vmem:[#allocation3 + $0x20] sm:$0xff]
      %v2650 = vld [vmem:[#allocation3 + $0x30] sm:$0xff]
      %v2651 = vld [vmem:[#allocation3 + $0x38] sm:$0xff]
      %v2652 = vld [vmem:[#allocation3 + $0x48] sm:$0xff]
      %v2653 = vld [vmem:[#allocation3 + $0x50] sm:$0xff]
      %v2654 = vld [vmem:[#allocation3 + $0x60] sm:$0xff]
      %v2655 = vld [vmem:[#allocation3 + $0x68] sm:$0xff]
      %v2656 = vld [vmem:[#allocation3 + $0x78] sm:$0xff]
      %v2657 = vld [vmem:[#allocation3 + $0x80] sm:$0xff]
      %v2658 = vld [vmem:[#allocation3 + $0x90] sm:$0xff]
      %v2659 = vld [vmem:[#allocation3 + $0x98] sm:$0xff]
      %v2660 = vld [vmem:[#allocation3 + $0xa8] sm:$0xff]
      %v2661 = vld [vmem:[#allocation3 + $0xb0] sm:$0xff]
      %v2662 = vld [vmem:[#allocation3 + $0xc0] sm:$0xff]
      %v2663 = vld [vmem:[#allocation3 + $0xc8] sm:$0xff]
      %v2664 = vld [vmem:[#allocation3 + $0xd8] sm:$0xff]
      %v2665 = vld [vmem:[#allocation3 + $0xe0] sm:$0xff]
      %v2666 = vld [vmem:[#allocation3 + $0xf0] sm:$0xff]
      %v2667 = vld [vmem:[#allocation3 + $0xf8] sm:$0xff]
      %v2668 = vld [vmem:[#allocation3 + $0x108] sm:$0xff]
      %v2669 = vld [vmem:[#allocation3 + $0x110] sm:$0xff]
      %v2670 = vld [vmem:[#allocation3 + $0x120] sm:$0xff]
      %v2671 = vld [vmem:[#allocation3 + $0x128] sm:$0xff]
      %v2672 = vld [vmem:[#allocation3 + $0x138] sm:$0xff]
      %v2673 = vld [vmem:[#allocation3 + $0x140] sm:$0xff]
      %v2674 = vld [vmem:[#allocation3 + $0x150] sm:$0xff]
      %v2675 = vld [vmem:[#allocation3 + $0x158] sm:$0xff]
      %v2676 = vld [vmem:[#allocation3 + $0x168] sm:$0xff]
      %v2677 = vld [vmem:[#allocation3 + $0x170] sm:$0xff]
      %v2678 = vld [vmem:[#allocation3 + $0x1] sm:$0xff]
      %v2679 = vld [vmem:[#allocation3 + $0x9] sm:$0xff]
      %v2680 = vld [vmem:[#allocation3 + $0x19] sm:$0xff]
      %v2681 = vld [vmem:[#allocation3 + $0x21] sm:$0xff]
      %v2682 = vld [vmem:[#allocation3 + $0x31] sm:$0xff]
      %v2683 = vld [vmem:[#allocation3 + $0x39] sm:$0xff]
      %v2684 = vld [vmem:[#allocation3 + $0x49] sm:$0xff]
      %v2685 = vld [vmem:[#allocation3 + $0x51] sm:$0xff]
      %v2686 = vld [vmem:[#allocation3 + $0x61] sm:$0xff]
      %v2687 = vld [vmem:[#allocation3 + $0x69] sm:$0xff]
      %v2688 = vld [vmem:[#allocation3 + $0x79] sm:$0xff]
      %v2689 = vld [vmem:[#allocation3 + $0x81] sm:$0xff]
      %v2690 = vld [vmem:[#allocation3 + $0x91] sm:$0xff]
      %v2691 = vld [vmem:[#allocation3 + $0x99] sm:$0xff]
      %v2692 = vld [vmem:[#allocation3 + $0xa9] sm:$0xff]
      %v2693 = vld [vmem:[#allocation3 + $0xb1] sm:$0xff]
      %v2694 = vld [vmem:[#allocation3 + $0xc1] sm:$0xff]
      %v2695 = vld [vmem:[#allocation3 + $0xc9] sm:$0xff]
      %v2696 = vld [vmem:[#allocation3 + $0xd9] sm:$0xff]
      %v2697 = vld [vmem:[#allocation3 + $0xe1] sm:$0xff]
      %v2698 = vld [vmem:[#allocation3 + $0xf1] sm:$0xff]
      %v2699 = vld [vmem:[#allocation3 + $0xf9] sm:$0xff]
      %v2700 = vld [vmem:[#allocation3 + $0x109] sm:$0xff]
      %v2701 = vld [vmem:[#allocation3 + $0x111] sm:$0xff]
      %v2702 = vld [vmem:[#allocation3 + $0x121] sm:$0xff]
      %v2703 = vld [vmem:[#allocation3 + $0x129] sm:$0xff]
      %v2704 = vld [vmem:[#allocation3 + $0x139] sm:$0xff]
      %v2705 = vld [vmem:[#allocation3 + $0x141] sm:$0xff]
      %v2706 = vld [vmem:[#allocation3 + $0x151] sm:$0xff]
      %v2707 = vld [vmem:[#allocation3 + $0x159] sm:$0xff]
      %v2708 = vld [vmem:[#allocation3 + $0x169] sm:$0xff]
      %v2709 = vld [vmem:[#allocation3 + $0x171] sm:$0xff]
      %v2710 = vld [vmem:[#allocation3 + $0x2] sm:$0xff]
      %v2711 = vld [vmem:[#allocation3 + $0xa] sm:$0xff]
      %v2712 = vld [vmem:[#allocation3 + $0x1a] sm:$0xff]
      %v2713 = vld [vmem:[#allocation3 + $0x22] sm:$0xff]
      %v2714 = vld [vmem:[#allocation3 + $0x32] sm:$0xff]
      %v2715 = vld [vmem:[#allocation3 + $0x3a] sm:$0xff]
      %v2716 = vld [vmem:[#allocation3 + $0x4a] sm:$0xff]
      %v2717 = vld [vmem:[#allocation3 + $0x52] sm:$0xff]
      %v2718 = vld [vmem:[#allocation3 + $0x62] sm:$0xff]
      %v2719 = vld [vmem:[#allocation3 + $0x6a] sm:$0xff]
      %v2720 = vld [vmem:[#allocation3 + $0x7a] sm:$0xff]
      %v2721 = vld [vmem:[#allocation3 + $0x82] sm:$0xff]
      %v2722 = vld [vmem:[#allocation3 + $0x92] sm:$0xff]
      %v2723 = vld [vmem:[#allocation3 + $0x9a] sm:$0xff]
      %v2724 = vld [vmem:[#allocation3 + $0xaa] sm:$0xff]
      %v2725 = vld [vmem:[#allocation3 + $0xb2] sm:$0xff]
      %v2726 = vld [vmem:[#allocation3 + $0xc2] sm:$0xff]
      %v2727 = vld [vmem:[#allocation3 + $0xca] sm:$0xff]
      %v2728 = vld [vmem:[#allocation3 + $0xda] sm:$0xff]
      %v2729 = vld [vmem:[#allocation3 + $0xe2] sm:$0xff]
      %v2730 = vld [vmem:[#allocation3 + $0xf2] sm:$0xff]
      %v2731 = vld [vmem:[#allocation3 + $0xfa] sm:$0xff]
      %v2732 = vld [vmem:[#allocation3 + $0x10a] sm:$0xff]
      %v2733 = vld [vmem:[#allocation3 + $0x112] sm:$0xff]
      %v2734 = vld [vmem:[#allocation3 + $0x122] sm:$0xff]
      %v2735 = vld [vmem:[#allocation3 + $0x12a] sm:$0xff]
      %v2736 = vld [vmem:[#allocation3 + $0x13a] sm:$0xff]
      %v2737 = vld [vmem:[#allocation3 + $0x142] sm:$0xff]
      %v2738 = vld [vmem:[#allocation3 + $0x152] sm:$0xff]
      %v2739 = vld [vmem:[#allocation3 + $0x15a] sm:$0xff]
      %v2740 = vld [vmem:[#allocation3 + $0x16a] sm:$0xff]
      %v2741 = vld [vmem:[#allocation3 + $0x172] sm:$0xff]
      %v2742 = vld [vmem:[%s2613] sm:$0xff]
      %v2743 = vld [vmem:[%s2613 + $0x8] sm:$0xff]
      %v2744 = vld [vmem:[%s2613 + $0x18] sm:$0xff]
      %v2745 = vld [vmem:[%s2613 + $0x20] sm:$0xff]
      %v2746 = vld [vmem:[%s2613 + $0x30] sm:$0xff]
      %v2747 = vld [vmem:[%s2613 + $0x38] sm:$0xff]
      %v2748 = vld [vmem:[%s2613 + $0x48] sm:$0xff]
      %v2749 = vld [vmem:[%s2613 + $0x50] sm:$0xff]
      %v2750 = vld [vmem:[%s2613 + $0x60] sm:$0xff]
      %v2751 = vld [vmem:[%s2613 + $0x68] sm:$0xff]
      %v2752 = vld [vmem:[%s2613 + $0x78] sm:$0xff]
      %v2753 = vld [vmem:[%s2613 + $0x80] sm:$0xff]
      %v2754 = vld [vmem:[%s2613 + $0x90] sm:$0xff]
      %v2755 = vld [vmem:[%s2613 + $0x98] sm:$0xff]
      %v2756 = vld [vmem:[%s2613 + $0xa8] sm:$0xff]
      %v2757 = vld [vmem:[%s2613 + $0xb0] sm:$0xff]
      %v2758 = vld [vmem:[%s2613 + $0xc0] sm:$0xff]
      %v2759 = vld [vmem:[%s2613 + $0xc8] sm:$0xff]
      %v2760 = vld [vmem:[%s2613 + $0xd8] sm:$0xff]
      %v2761 = vld [vmem:[%s2613 + $0xe0] sm:$0xff]
      %v2762 = vld [vmem:[%s2613 + $0xf0] sm:$0xff]
      %v2763 = vld [vmem:[%s2613 + $0xf8] sm:$0xff]
      %v2764 = vld [vmem:[%s2613 + $0x108] sm:$0xff]
      %v2765 = vld [vmem:[%s2613 + $0x110] sm:$0xff]
      %v2766 = vld [vmem:[%s2613 + $0x120] sm:$0xff]
      %v2767 = vld [vmem:[%s2613 + $0x128] sm:$0xff]
      %v2768 = vld [vmem:[%s2613 + $0x138] sm:$0xff]
      %v2769 = vld [vmem:[%s2613 + $0x140] sm:$0xff]
      %v2770 = vld [vmem:[%s2613 + $0x150] sm:$0xff]
      %v2771 = vld [vmem:[%s2613 + $0x158] sm:$0xff]
      %v2772 = vld [vmem:[%s2613 + $0x168] sm:$0xff]
      %v2773 = vld [vmem:[%s2613 + $0x170] sm:$0xff]
      %v2774 = vld [vmem:[%s2613 + $0x1] sm:$0xff]
      %v2775 = vld [vmem:[%s2613 + $0x9] sm:$0xff]
      %v2776 = vld [vmem:[%s2613 + $0x19] sm:$0xff]
      %v2777 = vld [vmem:[%s2613 + $0x21] sm:$0xff]
      %v2778 = vld [vmem:[%s2613 + $0x31] sm:$0xff]
      %v2779 = vld [vmem:[%s2613 + $0x39] sm:$0xff]
      %v2780 = vld [vmem:[%s2613 + $0x49] sm:$0xff]
      %v2781 = vld [vmem:[%s2613 + $0x51] sm:$0xff]
      %v2782 = vld [vmem:[%s2613 + $0x61] sm:$0xff]
      %v2783 = vld [vmem:[%s2613 + $0x69] sm:$0xff]
      %v2784 = vld [vmem:[%s2613 + $0x79] sm:$0xff]
      %v2785 = vld [vmem:[%s2613 + $0x81] sm:$0xff]
      %v2786 = vld [vmem:[%s2613 + $0x91] sm:$0xff]
      %v2787 = vld [vmem:[%s2613 + $0x99] sm:$0xff]
      %v2788 = vld [vmem:[%s2613 + $0xa9] sm:$0xff]
      %v2789 = vld [vmem:[%s2613 + $0xb1] sm:$0xff]
      %v2790 = vld [vmem:[%s2613 + $0xc1] sm:$0xff]
      %v2791 = vld [vmem:[%s2613 + $0xc9] sm:$0xff]
      %v2792 = vld [vmem:[%s2613 + $0xd9] sm:$0xff]
      %v2793 = vld [vmem:[%s2613 + $0xe1] sm:$0xff]
      %v2794 = vld [vmem:[%s2613 + $0xf1] sm:$0xff]
      %v2795 = vld [vmem:[%s2613 + $0xf9] sm:$0xff]
      %v2796 = vld [vmem:[%s2613 + $0x109] sm:$0xff]
      %v2797 = vld [vmem:[%s2613 + $0x111] sm:$0xff]
      %v2798 = vld [vmem:[%s2613 + $0x121] sm:$0xff]
      %v2799 = vld [vmem:[%s2613 + $0x129] sm:$0xff]
      %v2800 = vld [vmem:[%s2613 + $0x139] sm:$0xff]
      %v2801 = vld [vmem:[%s2613 + $0x141] sm:$0xff]
      %v2802 = vld [vmem:[%s2613 + $0x151] sm:$0xff]
      %v2803 = vld [vmem:[%s2613 + $0x159] sm:$0xff]
      %v2804 = vld [vmem:[%s2613 + $0x169] sm:$0xff]
      %v2805 = vld [vmem:[%s2613 + $0x171] sm:$0xff]
      %v2806 = vld [vmem:[%s2613 + $0x2] sm:$0xff]
      %v2807 = vld [vmem:[%s2613 + $0xa] sm:$0xff]
      %v2808 = vld [vmem:[%s2613 + $0x1a] sm:$0xff]
      %v2809 = vld [vmem:[%s2613 + $0x22] sm:$0xff]
      %v2810 = vld [vmem:[%s2613 + $0x32] sm:$0xff]
      %v2811 = vld [vmem:[%s2613 + $0x3a] sm:$0xff]
      %v2812 = vld [vmem:[%s2613 + $0x4a] sm:$0xff]
      %v2813 = vld [vmem:[%s2613 + $0x52] sm:$0xff]
      %v2814 = vld [vmem:[%s2613 + $0x62] sm:$0xff]
      %v2815 = vld [vmem:[%s2613 + $0x6a] sm:$0xff]
      %v2816 = vld [vmem:[%s2613 + $0x7a] sm:$0xff]
      %v2817 = vld [vmem:[%s2613 + $0x82] sm:$0xff]
      %v2818 = vld [vmem:[%s2613 + $0x92] sm:$0xff]
      %v2819 = vld [vmem:[%s2613 + $0x9a] sm:$0xff]
      %v2820 = vld [vmem:[%s2613 + $0xaa] sm:$0xff]
      %v2821 = vld [vmem:[%s2613 + $0xb2] sm:$0xff]
      %v2822 = vld [vmem:[%s2613 + $0xc2] sm:$0xff]
      %v2823 = vld [vmem:[%s2613 + $0xca] sm:$0xff]
      %v2824 = vld [vmem:[%s2613 + $0xda] sm:$0xff]
      %v2825 = vld [vmem:[%s2613 + $0xe2] sm:$0xff]
      %v2826 = vld [vmem:[%s2613 + $0xf2] sm:$0xff]
      %v2827 = vld [vmem:[%s2613 + $0xfa] sm:$0xff]
      %v2828 = vld [vmem:[%s2613 + $0x10a] sm:$0xff]
      %v2829 = vld [vmem:[%s2613 + $0x112] sm:$0xff]
      %v2830 = vld [vmem:[%s2613 + $0x122] sm:$0xff]
      %v2831 = vld [vmem:[%s2613 + $0x12a] sm:$0xff]
      %v2832 = vld [vmem:[%s2613 + $0x13a] sm:$0xff]
      %v2833 = vld [vmem:[%s2613 + $0x142] sm:$0xff]
      %v2834 = vld [vmem:[%s2613 + $0x152] sm:$0xff]
      %v2835 = vld [vmem:[%s2613 + $0x15a] sm:$0xff]
      %v2836 = vld [vmem:[%s2613 + $0x16a] sm:$0xff]
      %v2837 = vld [vmem:[%s2613 + $0x172] sm:$0xff]
      %s2838 = scalar_lea.vmem [#allocation3], 48
      %v2839 = vld [vmem:[%s2838] sm:$0xff]
      %v2840 = vld [vmem:[%s2838 + $0x8] sm:$0xff]
      %v2841 = vld [vmem:[%s2838 + $0x18] sm:$0xff]
      %v2842 = vld [vmem:[%s2838 + $0x20] sm:$0xff]
      %v2843 = vld [vmem:[%s2838 + $0x30] sm:$0xff]
      %v2844 = vld [vmem:[%s2838 + $0x38] sm:$0xff]
      %v2845 = vld [vmem:[%s2838 + $0x48] sm:$0xff]
      %v2846 = vld [vmem:[%s2838 + $0x50] sm:$0xff]
      %v2847 = vld [vmem:[%s2838 + $0x60] sm:$0xff]
      %v2848 = vld [vmem:[%s2838 + $0x68] sm:$0xff]
      %v2849 = vld [vmem:[%s2838 + $0x78] sm:$0xff]
      %v2850 = vld [vmem:[%s2838 + $0x80] sm:$0xff]
      %v2851 = vld [vmem:[%s2838 + $0x90] sm:$0xff]
      %v2852 = vld [vmem:[%s2838 + $0x98] sm:$0xff]
      %v2853 = vld [vmem:[%s2838 + $0xa8] sm:$0xff]
      %v2854 = vld [vmem:[%s2838 + $0xb0] sm:$0xff]
      %v2855 = vld [vmem:[%s2838 + $0xc0] sm:$0xff]
      %v2856 = vld [vmem:[%s2838 + $0xc8] sm:$0xff]
      %v2857 = vld [vmem:[%s2838 + $0xd8] sm:$0xff]
      %v2858 = vld [vmem:[%s2838 + $0xe0] sm:$0xff]
      %v2859 = vld [vmem:[%s2838 + $0xf0] sm:$0xff]
      %v2860 = vld [vmem:[%s2838 + $0xf8] sm:$0xff]
      %v2861 = vld [vmem:[%s2838 + $0x108] sm:$0xff]
      %v2862 = vld [vmem:[%s2838 + $0x110] sm:$0xff]
      %v2863 = vld [vmem:[%s2838 + $0x120] sm:$0xff]
      %v2864 = vld [vmem:[%s2838 + $0x128] sm:$0xff]
      %v2865 = vld [vmem:[%s2838 + $0x138] sm:$0xff]
      %v2866 = vld [vmem:[%s2838 + $0x140] sm:$0xff]
      %v2867 = vld [vmem:[%s2838 + $0x150] sm:$0xff]
      %v2868 = vld [vmem:[%s2838 + $0x158] sm:$0xff]
      %v2869 = vld [vmem:[%s2838 + $0x168] sm:$0xff]
      %v2870 = vld [vmem:[%s2838 + $0x170] sm:$0xff]
      %v2871 = vld [vmem:[%s2838 + $0x1] sm:$0xff]
      %v2872 = vld [vmem:[%s2838 + $0x9] sm:$0xff]
      %v2873 = vld [vmem:[%s2838 + $0x19] sm:$0xff]
      %v2874 = vld [vmem:[%s2838 + $0x21] sm:$0xff]
      %v2875 = vld [vmem:[%s2838 + $0x31] sm:$0xff]
      %v2876 = vld [vmem:[%s2838 + $0x39] sm:$0xff]
      %v2877 = vld [vmem:[%s2838 + $0x49] sm:$0xff]
      %v2878 = vld [vmem:[%s2838 + $0x51] sm:$0xff]
      %v2879 = vld [vmem:[%s2838 + $0x61] sm:$0xff]
      %v2880 = vld [vmem:[%s2838 + $0x69] sm:$0xff]
      %v2881 = vld [vmem:[%s2838 + $0x79] sm:$0xff]
      %v2882 = vld [vmem:[%s2838 + $0x81] sm:$0xff]
      %v2883 = vld [vmem:[%s2838 + $0x91] sm:$0xff]
      %v2884 = vld [vmem:[%s2838 + $0x99] sm:$0xff]
      %v2885 = vld [vmem:[%s2838 + $0xa9] sm:$0xff]
      %v2886 = vld [vmem:[%s2838 + $0xb1] sm:$0xff]
      %v2887 = vld [vmem:[%s2838 + $0xc1] sm:$0xff]
      %v2888 = vld [vmem:[%s2838 + $0xc9] sm:$0xff]
      %v2889 = vld [vmem:[%s2838 + $0xd9] sm:$0xff]
      %v2890 = vld [vmem:[%s2838 + $0xe1] sm:$0xff]
      %v2891 = vld [vmem:[%s2838 + $0xf1] sm:$0xff]
      %v2892 = vld [vmem:[%s2838 + $0xf9] sm:$0xff]
      %v2893 = vld [vmem:[%s2838 + $0x109] sm:$0xff]
      %v2894 = vld [vmem:[%s2838 + $0x111] sm:$0xff]
      %v2895 = vld [vmem:[%s2838 + $0x121] sm:$0xff]
      %v2896 = vld [vmem:[%s2838 + $0x129] sm:$0xff]
      %v2897 = vld [vmem:[%s2838 + $0x139] sm:$0xff]
      %v2898 = vld [vmem:[%s2838 + $0x141] sm:$0xff]
      %v2899 = vld [vmem:[%s2838 + $0x151] sm:$0xff]
      %v2900 = vld [vmem:[%s2838 + $0x159] sm:$0xff]
      %v2901 = vld [vmem:[%s2838 + $0x169] sm:$0xff]
      %v2902 = vld [vmem:[%s2838 + $0x171] sm:$0xff]
      %v2903 = vld [vmem:[%s2838 + $0x2] sm:$0xff]
      %v2904 = vld [vmem:[%s2838 + $0xa] sm:$0xff]
      %v2905 = vld [vmem:[%s2838 + $0x1a] sm:$0xff]
      %v2906 = vld [vmem:[%s2838 + $0x22] sm:$0xff]
      %v2907 = vld [vmem:[%s2838 + $0x32] sm:$0xff]
      %v2908 = vld [vmem:[%s2838 + $0x3a] sm:$0xff]
      %v2909 = vld [vmem:[%s2838 + $0x4a] sm:$0xff]
      %v2910 = vld [vmem:[%s2838 + $0x52] sm:$0xff]
      %v2911 = vld [vmem:[%s2838 + $0x62] sm:$0xff]
      %v2912 = vld [vmem:[%s2838 + $0x6a] sm:$0xff]
      %v2913 = vld [vmem:[%s2838 + $0x7a] sm:$0xff]
      %v2914 = vld [vmem:[%s2838 + $0x82] sm:$0xff]
      %v2915 = vld [vmem:[%s2838 + $0x92] sm:$0xff]
      %v2916 = vld [vmem:[%s2838 + $0x9a] sm:$0xff]
      %v2917 = vld [vmem:[%s2838 + $0xaa] sm:$0xff]
      %v2918 = vld [vmem:[%s2838 + $0xb2] sm:$0xff]
      %v2919 = vld [vmem:[%s2838 + $0xc2] sm:$0xff]
      %v2920 = vld [vmem:[%s2838 + $0xca] sm:$0xff]
      %v2921 = vld [vmem:[%s2838 + $0xda] sm:$0xff]
      %v2922 = vld [vmem:[%s2838 + $0xe2] sm:$0xff]
      %v2923 = vld [vmem:[%s2838 + $0xf2] sm:$0xff]
      %v2924 = vld [vmem:[%s2838 + $0xfa] sm:$0xff]
      %v2925 = vld [vmem:[%s2838 + $0x10a] sm:$0xff]
      %v2926 = vld [vmem:[%s2838 + $0x112] sm:$0xff]
      %v2927 = vld [vmem:[%s2838 + $0x122] sm:$0xff]
      %v2928 = vld [vmem:[%s2838 + $0x12a] sm:$0xff]
      %v2929 = vld [vmem:[%s2838 + $0x13a] sm:$0xff]
      %v2930 = vld [vmem:[%s2838 + $0x142] sm:$0xff]
      %v2931 = vld [vmem:[%s2838 + $0x152] sm:$0xff]
      %v2932 = vld [vmem:[%s2838 + $0x15a] sm:$0xff]
      %v2933 = vld [vmem:[%s2838 + $0x16a] sm:$0xff]
      %v2934 = vld [vmem:[%s2838 + $0x172] sm:$0xff]
      %2967 = vrot.lane.b32.xlu0 %v2678, 4
      %v2968 = vpop.permute.xlu0 %2967
      %2969 = vrot.lane.b32.xlu0 %v2679, 4
      %v2970 = vpop.permute.xlu0 %2969
      %2971 = vrot.lane.b32.xlu0 %v2680, 4
      %v2972 = vpop.permute.xlu0 %2971
      %2973 = vrot.lane.b32.xlu0 %v2681, 4
      %v2974 = vpop.permute.xlu0 %2973
      %2975 = vrot.lane.b32.xlu0 %v2682, 4
      %v2976 = vpop.permute.xlu0 %2975
      %2977 = vrot.lane.b32.xlu0 %v2683, 4
      %v2978 = vpop.permute.xlu0 %2977
      %2979 = vrot.lane.b32.xlu0 %v2684, 4
      %v2980 = vpop.permute.xlu0 %2979
      %2981 = vrot.lane.b32.xlu0 %v2685, 4
      %v2982 = vpop.permute.xlu0 %2981
      %2983 = vrot.lane.b32.xlu0 %v2686, 4
      %v2984 = vpop.permute.xlu0 %2983
      %2985 = vrot.lane.b32.xlu0 %v2687, 4
      %v2986 = vpop.permute.xlu0 %2985
      %2987 = vrot.lane.b32.xlu0 %v2688, 4
      %v2988 = vpop.permute.xlu0 %2987
      %2989 = vrot.lane.b32.xlu0 %v2689, 4
      %v2990 = vpop.permute.xlu0 %2989
      %2991 = vrot.lane.b32.xlu0 %v2690, 4
      %v2992 = vpop.permute.xlu0 %2991
      %2993 = vrot.lane.b32.xlu0 %v2691, 4
      %v2994 = vpop.permute.xlu0 %2993
      %2995 = vrot.lane.b32.xlu0 %v2692, 4
      %v2996 = vpop.permute.xlu0 %2995
      %2997 = vrot.lane.b32.xlu0 %v2693, 4
      %v2998 = vpop.permute.xlu0 %2997
      %2999 = vrot.lane.b32.xlu0 %v2694, 4
      %v3000 = vpop.permute.xlu0 %2999
      %3001 = vrot.lane.b32.xlu0 %v2695, 4
      %v3002 = vpop.permute.xlu0 %3001
      %3003 = vrot.lane.b32.xlu0 %v2696, 4
      %v3004 = vpop.permute.xlu0 %3003
      %3005 = vrot.lane.b32.xlu0 %v2697, 4
      %v3006 = vpop.permute.xlu0 %3005
      %3007 = vrot.lane.b32.xlu0 %v2698, 4
      %v3008 = vpop.permute.xlu0 %3007
      %3009 = vrot.lane.b32.xlu0 %v2699, 4
      %v3010 = vpop.permute.xlu0 %3009
      %3011 = vrot.lane.b32.xlu0 %v2700, 4
      %v3012 = vpop.permute.xlu0 %3011
      %3013 = vrot.lane.b32.xlu0 %v2701, 4
      %v3014 = vpop.permute.xlu0 %3013
      %3015 = vrot.lane.b32.xlu0 %v2702, 4
      %v3016 = vpop.permute.xlu0 %3015
      %3017 = vrot.lane.b32.xlu0 %v2703, 4
      %v3018 = vpop.permute.xlu0 %3017
      %3019 = vrot.lane.b32.xlu0 %v2704, 4
      %v3020 = vpop.permute.xlu0 %3019
      %3021 = vrot.lane.b32.xlu0 %v2705, 4
      %v3022 = vpop.permute.xlu0 %3021
      %3023 = vrot.lane.b32.xlu0 %v2706, 4
      %v3024 = vpop.permute.xlu0 %3023
      %3025 = vrot.lane.b32.xlu0 %v2707, 4
      %v3026 = vpop.permute.xlu0 %3025
      %3027 = vrot.lane.b32.xlu0 %v2708, 4
      %v3028 = vpop.permute.xlu0 %3027
      %3029 = vrot.lane.b32.xlu0 %v2709, 4
      %v3030 = vpop.permute.xlu0 %3029
      %3095 = vrot.lane.b32.xlu0 %v2710, 8
      %v3096 = vpop.permute.xlu0 %3095
      %3097 = vrot.lane.b32.xlu0 %v2711, 8
      %v3098 = vpop.permute.xlu0 %3097
      %3099 = vrot.lane.b32.xlu0 %v2712, 8
      %v3100 = vpop.permute.xlu0 %3099
      %3101 = vrot.lane.b32.xlu0 %v2713, 8
      %v3102 = vpop.permute.xlu0 %3101
      %3103 = vrot.lane.b32.xlu0 %v2714, 8
      %v3104 = vpop.permute.xlu0 %3103
      %3105 = vrot.lane.b32.xlu0 %v2715, 8
      %v3106 = vpop.permute.xlu0 %3105
      %3107 = vrot.lane.b32.xlu0 %v2716, 8
      %v3108 = vpop.permute.xlu0 %3107
      %3109 = vrot.lane.b32.xlu0 %v2717, 8
      %v3110 = vpop.permute.xlu0 %3109
      %3111 = vrot.lane.b32.xlu0 %v2718, 8
      %v3112 = vpop.permute.xlu0 %3111
      %3113 = vrot.lane.b32.xlu0 %v2719, 8
      %v3114 = vpop.permute.xlu0 %3113
      %3115 = vrot.lane.b32.xlu0 %v2720, 8
      %v3116 = vpop.permute.xlu0 %3115
      %3117 = vrot.lane.b32.xlu0 %v2721, 8
      %v3118 = vpop.permute.xlu0 %3117
      %3119 = vrot.lane.b32.xlu0 %v2722, 8
      %v3120 = vpop.permute.xlu0 %3119
      %3121 = vrot.lane.b32.xlu0 %v2723, 8
      %v3122 = vpop.permute.xlu0 %3121
      %3123 = vrot.lane.b32.xlu0 %v2724, 8
      %v3124 = vpop.permute.xlu0 %3123
      %3125 = vrot.lane.b32.xlu0 %v2725, 8
      %v3126 = vpop.permute.xlu0 %3125
      %3127 = vrot.lane.b32.xlu0 %v2726, 8
      %v3128 = vpop.permute.xlu0 %3127
      %3129 = vrot.lane.b32.xlu0 %v2727, 8
      %v3130 = vpop.permute.xlu0 %3129
      %3131 = vrot.lane.b32.xlu0 %v2728, 8
      %v3132 = vpop.permute.xlu0 %3131
      %3133 = vrot.lane.b32.xlu0 %v2729, 8
      %v3134 = vpop.permute.xlu0 %3133
      %3135 = vrot.lane.b32.xlu0 %v2730, 8
      %v3136 = vpop.permute.xlu0 %3135
      %3137 = vrot.lane.b32.xlu0 %v2731, 8
      %v3138 = vpop.permute.xlu0 %3137
      %3139 = vrot.lane.b32.xlu0 %v2732, 8
      %v3140 = vpop.permute.xlu0 %3139
      %3141 = vrot.lane.b32.xlu0 %v2733, 8
      %v3142 = vpop.permute.xlu0 %3141
      %3143 = vrot.lane.b32.xlu0 %v2734, 8
      %v3144 = vpop.permute.xlu0 %3143
      %3145 = vrot.lane.b32.xlu0 %v2735, 8
      %v3146 = vpop.permute.xlu0 %3145
      %3147 = vrot.lane.b32.xlu0 %v2736, 8
      %v3148 = vpop.permute.xlu0 %3147
      %3149 = vrot.lane.b32.xlu0 %v2737, 8
      %v3150 = vpop.permute.xlu0 %3149
      %3151 = vrot.lane.b32.xlu0 %v2738, 8
      %v3152 = vpop.permute.xlu0 %3151
      %3153 = vrot.lane.b32.xlu0 %v2739, 8
      %v3154 = vpop.permute.xlu0 %3153
      %3155 = vrot.lane.b32.xlu0 %v2740, 8
      %v3156 = vpop.permute.xlu0 %3155
      %3157 = vrot.lane.b32.xlu0 %v2741, 8
      %v3158 = vpop.permute.xlu0 %3157
      %3223 = vrot.lane.b32.xlu0 %v2742, 12
      %v3224 = vpop.permute.xlu0 %3223
      %3225 = vrot.lane.b32.xlu0 %v2743, 12
      %v3226 = vpop.permute.xlu0 %3225
      %3227 = vrot.lane.b32.xlu0 %v2744, 12
      %v3228 = vpop.permute.xlu0 %3227
      %3229 = vrot.lane.b32.xlu0 %v2745, 12
      %v3230 = vpop.permute.xlu0 %3229
      %3231 = vrot.lane.b32.xlu0 %v2746, 12
      %v3232 = vpop.permute.xlu0 %3231
      %3233 = vrot.lane.b32.xlu0 %v2747, 12
      %v3234 = vpop.permute.xlu0 %3233
      %3235 = vrot.lane.b32.xlu0 %v2748, 12
      %v3236 = vpop.permute.xlu0 %3235
      %3237 = vrot.lane.b32.xlu0 %v2749, 12
      %v3238 = vpop.permute.xlu0 %3237
      %3239 = vrot.lane.b32.xlu0 %v2750, 12
      %v3240 = vpop.permute.xlu0 %3239
      %3241 = vrot.lane.b32.xlu0 %v2751, 12
      %v3242 = vpop.permute.xlu0 %3241
      %3243 = vrot.lane.b32.xlu0 %v2752, 12
      %v3244 = vpop.permute.xlu0 %3243
      %3245 = vrot.lane.b32.xlu0 %v2753, 12
      %v3246 = vpop.permute.xlu0 %3245
      %3247 = vrot.lane.b32.xlu0 %v2754, 12
      %v3248 = vpop.permute.xlu0 %3247
      %3249 = vrot.lane.b32.xlu0 %v2755, 12
      %v3250 = vpop.permute.xlu0 %3249
      %3251 = vrot.lane.b32.xlu0 %v2756, 12
      %v3252 = vpop.permute.xlu0 %3251
      %3253 = vrot.lane.b32.xlu0 %v2757, 12
      %v3254 = vpop.permute.xlu0 %3253
      %3255 = vrot.lane.b32.xlu0 %v2758, 12
      %v3256 = vpop.permute.xlu0 %3255
      %3257 = vrot.lane.b32.xlu0 %v2759, 12
      %v3258 = vpop.permute.xlu0 %3257
      %3259 = vrot.lane.b32.xlu0 %v2760, 12
      %v3260 = vpop.permute.xlu0 %3259
      %3261 = vrot.lane.b32.xlu0 %v2761, 12
      %v3262 = vpop.permute.xlu0 %3261
      %3263 = vrot.lane.b32.xlu0 %v2762, 12
      %v3264 = vpop.permute.xlu0 %3263
      %3265 = vrot.lane.b32.xlu0 %v2763, 12
      %v3266 = vpop.permute.xlu0 %3265
      %3267 = vrot.lane.b32.xlu0 %v2764, 12
      %v3268 = vpop.permute.xlu0 %3267
      %3269 = vrot.lane.b32.xlu0 %v2765, 12
      %v3270 = vpop.permute.xlu0 %3269
      %3271 = vrot.lane.b32.xlu0 %v2766, 12
      %v3272 = vpop.permute.xlu0 %3271
      %3273 = vrot.lane.b32.xlu0 %v2767, 12
      %v3274 = vpop.permute.xlu0 %3273
      %3275 = vrot.lane.b32.xlu0 %v2768, 12
      %v3276 = vpop.permute.xlu0 %3275
      %3277 = vrot.lane.b32.xlu0 %v2769, 12
      %v3278 = vpop.permute.xlu0 %3277
      %3279 = vrot.lane.b32.xlu0 %v2770, 12
      %v3280 = vpop.permute.xlu0 %3279
      %3281 = vrot.lane.b32.xlu0 %v2771, 12
      %v3282 = vpop.permute.xlu0 %3281
      %3283 = vrot.lane.b32.xlu0 %v2772, 12
      %v3284 = vpop.permute.xlu0 %3283
      %3285 = vrot.lane.b32.xlu0 %v2773, 12
      %v3286 = vpop.permute.xlu0 %3285
      %3351 = vrot.lane.b32.xlu0 %v2774, 16
      %v3352 = vpop.permute.xlu0 %3351
      %3353 = vrot.lane.b32.xlu0 %v2775, 16
      %v3354 = vpop.permute.xlu0 %3353
      %3355 = vrot.lane.b32.xlu0 %v2776, 16
      %v3356 = vpop.permute.xlu0 %3355
      %3357 = vrot.lane.b32.xlu0 %v2777, 16
      %v3358 = vpop.permute.xlu0 %3357
      %3359 = vrot.lane.b32.xlu0 %v2778, 16
      %v3360 = vpop.permute.xlu0 %3359
      %3361 = vrot.lane.b32.xlu0 %v2779, 16
      %v3362 = vpop.permute.xlu0 %3361
      %3363 = vrot.lane.b32.xlu0 %v2780, 16
      %v3364 = vpop.permute.xlu0 %3363
      %3365 = vrot.lane.b32.xlu0 %v2781, 16
      %v3366 = vpop.permute.xlu0 %3365
      %3367 = vrot.lane.b32.xlu0 %v2782, 16
      %v3368 = vpop.permute.xlu0 %3367
      %3369 = vrot.lane.b32.xlu0 %v2783, 16
      %v3370 = vpop.permute.xlu0 %3369
      %3371 = vrot.lane.b32.xlu0 %v2784, 16
      %v3372 = vpop.permute.xlu0 %3371
      %3373 = vrot.lane.b32.xlu0 %v2785, 16
      %v3374 = vpop.permute.xlu0 %3373
      %3375 = vrot.lane.b32.xlu0 %v2786, 16
      %v3376 = vpop.permute.xlu0 %3375
      %3377 = vrot.lane.b32.xlu0 %v2787, 16
      %v3378 = vpop.permute.xlu0 %3377
      %3379 = vrot.lane.b32.xlu0 %v2788, 16
      %v3380 = vpop.permute.xlu0 %3379
      %3381 = vrot.lane.b32.xlu0 %v2789, 16
      %v3382 = vpop.permute.xlu0 %3381
      %3383 = vrot.lane.b32.xlu0 %v2790, 16
      %v3384 = vpop.permute.xlu0 %3383
      %3385 = vrot.lane.b32.xlu0 %v2791, 16
      %v3386 = vpop.permute.xlu0 %3385
      %3387 = vrot.lane.b32.xlu0 %v2792, 16
      %v3388 = vpop.permute.xlu0 %3387
      %3389 = vrot.lane.b32.xlu0 %v2793, 16
      %v3390 = vpop.permute.xlu0 %3389
      %3391 = vrot.lane.b32.xlu0 %v2794, 16
      %v3392 = vpop.permute.xlu0 %3391
      %3393 = vrot.lane.b32.xlu0 %v2795, 16
      %v3394 = vpop.permute.xlu0 %3393
      %3395 = vrot.lane.b32.xlu0 %v2796, 16
      %v3396 = vpop.permute.xlu0 %3395
      %3397 = vrot.lane.b32.xlu0 %v2797, 16
      %v3398 = vpop.permute.xlu0 %3397
      %3399 = vrot.lane.b32.xlu0 %v2798, 16
      %v3400 = vpop.permute.xlu0 %3399
      %3401 = vrot.lane.b32.xlu0 %v2799, 16
      %v3402 = vpop.permute.xlu0 %3401
      %3403 = vrot.lane.b32.xlu0 %v2800, 16
      %v3404 = vpop.permute.xlu0 %3403
      %3405 = vrot.lane.b32.xlu0 %v2801, 16
      %v3406 = vpop.permute.xlu0 %3405
      %3407 = vrot.lane.b32.xlu0 %v2802, 16
      %v3408 = vpop.permute.xlu0 %3407
      %3409 = vrot.lane.b32.xlu0 %v2803, 16
      %v3410 = vpop.permute.xlu0 %3409
      %3411 = vrot.lane.b32.xlu0 %v2804, 16
      %v3412 = vpop.permute.xlu0 %3411
      %3413 = vrot.lane.b32.xlu0 %v2805, 16
      %v3414 = vpop.permute.xlu0 %3413
      %3479 = vrot.lane.b32.xlu0 %v2806, 20
      %v3480 = vpop.permute.xlu0 %3479
      %3481 = vrot.lane.b32.xlu0 %v2807, 20
      %v3482 = vpop.permute.xlu0 %3481
      %3483 = vrot.lane.b32.xlu0 %v2808, 20
      %v3484 = vpop.permute.xlu0 %3483
      %3485 = vrot.lane.b32.xlu0 %v2809, 20
      %v3486 = vpop.permute.xlu0 %3485
      %3487 = vrot.lane.b32.xlu0 %v2810, 20
      %v3488 = vpop.permute.xlu0 %3487
      %3489 = vrot.lane.b32.xlu0 %v2811, 20
      %v3490 = vpop.permute.xlu0 %3489
      %3491 = vrot.lane.b32.xlu0 %v2812, 20
      %v3492 = vpop.permute.xlu0 %3491
      %3493 = vrot.lane.b32.xlu0 %v2813, 20
      %v3494 = vpop.permute.xlu0 %3493
      %3495 = vrot.lane.b32.xlu0 %v2814, 20
      %v3496 = vpop.permute.xlu0 %3495
      %3497 = vrot.lane.b32.xlu0 %v2815, 20
      %v3498 = vpop.permute.xlu0 %3497
      %3499 = vrot.lane.b32.xlu0 %v2816, 20
      %v3500 = vpop.permute.xlu0 %3499
      %3501 = vrot.lane.b32.xlu0 %v2817, 20
      %v3502 = vpop.permute.xlu0 %3501
      %3503 = vrot.lane.b32.xlu0 %v2818, 20
      %v3504 = vpop.permute.xlu0 %3503
      %3505 = vrot.lane.b32.xlu0 %v2819, 20
      %v3506 = vpop.permute.xlu0 %3505
      %3507 = vrot.lane.b32.xlu0 %v2820, 20
      %v3508 = vpop.permute.xlu0 %3507
      %3509 = vrot.lane.b32.xlu0 %v2821, 20
      %v3510 = vpop.permute.xlu0 %3509
      %3511 = vrot.lane.b32.xlu0 %v2822, 20
      %v3512 = vpop.permute.xlu0 %3511
      %3513 = vrot.lane.b32.xlu0 %v2823, 20
      %v3514 = vpop.permute.xlu0 %3513
      %3515 = vrot.lane.b32.xlu0 %v2824, 20
      %v3516 = vpop.permute.xlu0 %3515
      %3517 = vrot.lane.b32.xlu0 %v2825, 20
      %v3518 = vpop.permute.xlu0 %3517
      %3519 = vrot.lane.b32.xlu0 %v2826, 20
      %v3520 = vpop.permute.xlu0 %3519
      %3521 = vrot.lane.b32.xlu0 %v2827, 20
      %v3522 = vpop.permute.xlu0 %3521
      %3523 = vrot.lane.b32.xlu0 %v2828, 20
      %v3524 = vpop.permute.xlu0 %3523
      %3525 = vrot.lane.b32.xlu0 %v2829, 20
      %v3526 = vpop.permute.xlu0 %3525
      %3527 = vrot.lane.b32.xlu0 %v2830, 20
      %v3528 = vpop.permute.xlu0 %3527
      %3529 = vrot.lane.b32.xlu0 %v2831, 20
      %v3530 = vpop.permute.xlu0 %3529
      %3531 = vrot.lane.b32.xlu0 %v2832, 20
      %v3532 = vpop.permute.xlu0 %3531
      %3533 = vrot.lane.b32.xlu0 %v2833, 20
      %v3534 = vpop.permute.xlu0 %3533
      %3535 = vrot.lane.b32.xlu0 %v2834, 20
      %v3536 = vpop.permute.xlu0 %3535
      %3537 = vrot.lane.b32.xlu0 %v2835, 20
      %v3538 = vpop.permute.xlu0 %3537
      %3539 = vrot.lane.b32.xlu0 %v2836, 20
      %v3540 = vpop.permute.xlu0 %3539
      %3541 = vrot.lane.b32.xlu0 %v2837, 20
      %v3542 = vpop.permute.xlu0 %3541
      %3607 = vrot.lane.b32.xlu0 %v2839, 24
      %v3608 = vpop.permute.xlu0 %3607
      %3609 = vrot.lane.b32.xlu0 %v2840, 24
      %v3610 = vpop.permute.xlu0 %3609
      %3611 = vrot.lane.b32.xlu0 %v2841, 24
      %v3612 = vpop.permute.xlu0 %3611
      %3613 = vrot.lane.b32.xlu0 %v2842, 24
      %v3614 = vpop.permute.xlu0 %3613
      %3615 = vrot.lane.b32.xlu0 %v2843, 24
      %v3616 = vpop.permute.xlu0 %3615
      %3617 = vrot.lane.b32.xlu0 %v2844, 24
      %v3618 = vpop.permute.xlu0 %3617
      %3619 = vrot.lane.b32.xlu0 %v2845, 24
      %v3620 = vpop.permute.xlu0 %3619
      %3621 = vrot.lane.b32.xlu0 %v2846, 24
      %v3622 = vpop.permute.xlu0 %3621
      %3623 = vrot.lane.b32.xlu0 %v2847, 24
      %v3624 = vpop.permute.xlu0 %3623
      %3625 = vrot.lane.b32.xlu0 %v2848, 24
      %v3626 = vpop.permute.xlu0 %3625
      %3627 = vrot.lane.b32.xlu0 %v2849, 24
      %v3628 = vpop.permute.xlu0 %3627
      %3629 = vrot.lane.b32.xlu0 %v2850, 24
      %v3630 = vpop.permute.xlu0 %3629
      %3631 = vrot.lane.b32.xlu0 %v2851, 24
      %v3632 = vpop.permute.xlu0 %3631
      %3633 = vrot.lane.b32.xlu0 %v2852, 24
      %v3634 = vpop.permute.xlu0 %3633
      %3635 = vrot.lane.b32.xlu0 %v2853, 24
      %v3636 = vpop.permute.xlu0 %3635
      %3637 = vrot.lane.b32.xlu0 %v2854, 24
      %v3638 = vpop.permute.xlu0 %3637
      %3639 = vrot.lane.b32.xlu0 %v2855, 24
      %v3640 = vpop.permute.xlu0 %3639
      %3641 = vrot.lane.b32.xlu0 %v2856, 24
      %v3642 = vpop.permute.xlu0 %3641
      %3643 = vrot.lane.b32.xlu0 %v2857, 24
      %v3644 = vpop.permute.xlu0 %3643
      %3645 = vrot.lane.b32.xlu0 %v2858, 24
      %v3646 = vpop.permute.xlu0 %3645
      %3647 = vrot.lane.b32.xlu0 %v2859, 24
      %v3648 = vpop.permute.xlu0 %3647
      %3649 = vrot.lane.b32.xlu0 %v2860, 24
      %v3650 = vpop.permute.xlu0 %3649
      %3651 = vrot.lane.b32.xlu0 %v2861, 24
      %v3652 = vpop.permute.xlu0 %3651
      %3653 = vrot.lane.b32.xlu0 %v2862, 24
      %v3654 = vpop.permute.xlu0 %3653
      %3655 = vrot.lane.b32.xlu0 %v2863, 24
      %v3656 = vpop.permute.xlu0 %3655
      %3657 = vrot.lane.b32.xlu0 %v2864, 24
      %v3658 = vpop.permute.xlu0 %3657
      %3659 = vrot.lane.b32.xlu0 %v2865, 24
      %v3660 = vpop.permute.xlu0 %3659
      %3661 = vrot.lane.b32.xlu0 %v2866, 24
      %v3662 = vpop.permute.xlu0 %3661
      %3663 = vrot.lane.b32.xlu0 %v2867, 24
      %v3664 = vpop.permute.xlu0 %3663
      %3665 = vrot.lane.b32.xlu0 %v2868, 24
      %v3666 = vpop.permute.xlu0 %3665
      %3667 = vrot.lane.b32.xlu0 %v2869, 24
      %v3668 = vpop.permute.xlu0 %3667
      %3669 = vrot.lane.b32.xlu0 %v2870, 24
      %v3670 = vpop.permute.xlu0 %3669
      %3735 = vrot.lane.b32.xlu0 %v2871, 28
      %v3736 = vpop.permute.xlu0 %3735
      %3737 = vrot.lane.b32.xlu0 %v2872, 28
      %v3738 = vpop.permute.xlu0 %3737
      %3739 = vrot.lane.b32.xlu0 %v2873, 28
      %v3740 = vpop.permute.xlu0 %3739
      %3741 = vrot.lane.b32.xlu0 %v2874, 28
      %v3742 = vpop.permute.xlu0 %3741
      %3743 = vrot.lane.b32.xlu0 %v2875, 28
      %v3744 = vpop.permute.xlu0 %3743
      %3745 = vrot.lane.b32.xlu0 %v2876, 28
      %v3746 = vpop.permute.xlu0 %3745
      %3747 = vrot.lane.b32.xlu0 %v2877, 28
      %v3748 = vpop.permute.xlu0 %3747
      %3749 = vrot.lane.b32.xlu0 %v2878, 28
      %v3750 = vpop.permute.xlu0 %3749
      %3751 = vrot.lane.b32.xlu0 %v2879, 28
      %v3752 = vpop.permute.xlu0 %3751
      %3753 = vrot.lane.b32.xlu0 %v2880, 28
      %v3754 = vpop.permute.xlu0 %3753
      %3755 = vrot.lane.b32.xlu0 %v2881, 28
      %v3756 = vpop.permute.xlu0 %3755
      %3757 = vrot.lane.b32.xlu0 %v2882, 28
      %v3758 = vpop.permute.xlu0 %3757
      %3759 = vrot.lane.b32.xlu0 %v2883, 28
      %v3760 = vpop.permute.xlu0 %3759
      %3761 = vrot.lane.b32.xlu0 %v2884, 28
      %v3762 = vpop.permute.xlu0 %3761
      %3763 = vrot.lane.b32.xlu0 %v2885, 28
      %v3764 = vpop.permute.xlu0 %3763
      %3765 = vrot.lane.b32.xlu0 %v2886, 28
      %v3766 = vpop.permute.xlu0 %3765
      %3767 = vrot.lane.b32.xlu0 %v2887, 28
      %v3768 = vpop.permute.xlu0 %3767
      %3769 = vrot.lane.b32.xlu0 %v2888, 28
      %v3770 = vpop.permute.xlu0 %3769
      %3771 = vrot.lane.b32.xlu0 %v2889, 28
      %v3772 = vpop.permute.xlu0 %3771
      %3773 = vrot.lane.b32.xlu0 %v2890, 28
      %v3774 = vpop.permute.xlu0 %3773
      %3775 = vrot.lane.b32.xlu0 %v2891, 28
      %v3776 = vpop.permute.xlu0 %3775
      %3777 = vrot.lane.b32.xlu0 %v2892, 28
      %v3778 = vpop.permute.xlu0 %3777
      %3779 = vrot.lane.b32.xlu0 %v2893, 28
      %v3780 = vpop.permute.xlu0 %3779
      %3781 = vrot.lane.b32.xlu0 %v2894, 28
      %v3782 = vpop.permute.xlu0 %3781
      %3783 = vrot.lane.b32.xlu0 %v2895, 28
      %v3784 = vpop.permute.xlu0 %3783
      %3785 = vrot.lane.b32.xlu0 %v2896, 28
      %v3786 = vpop.permute.xlu0 %3785
      %3787 = vrot.lane.b32.xlu0 %v2897, 28
      %v3788 = vpop.permute.xlu0 %3787
      %3789 = vrot.lane.b32.xlu0 %v2898, 28
      %v3790 = vpop.permute.xlu0 %3789
      %3791 = vrot.lane.b32.xlu0 %v2899, 28
      %v3792 = vpop.permute.xlu0 %3791
      %3793 = vrot.lane.b32.xlu0 %v2900, 28
      %v3794 = vpop.permute.xlu0 %3793
      %3795 = vrot.lane.b32.xlu0 %v2901, 28
      %v3796 = vpop.permute.xlu0 %3795
      %3797 = vrot.lane.b32.xlu0 %v2902, 28
      %v3798 = vpop.permute.xlu0 %3797
      %3863 = vrot.lane.b32.xlu0 %v2903, 32
      %v3864 = vpop.permute.xlu0 %3863
      %3865 = vrot.lane.b32.xlu0 %v2904, 32
      %v3866 = vpop.permute.xlu0 %3865
      %3867 = vrot.lane.b32.xlu0 %v2905, 32
      %v3868 = vpop.permute.xlu0 %3867
      %3869 = vrot.lane.b32.xlu0 %v2906, 32
      %v3870 = vpop.permute.xlu0 %3869
      %3871 = vrot.lane.b32.xlu0 %v2907, 32
      %v3872 = vpop.permute.xlu0 %3871
      %3873 = vrot.lane.b32.xlu0 %v2908, 32
      %v3874 = vpop.permute.xlu0 %3873
      %3875 = vrot.lane.b32.xlu0 %v2909, 32
      %v3876 = vpop.permute.xlu0 %3875
      %3877 = vrot.lane.b32.xlu0 %v2910, 32
      %v3878 = vpop.permute.xlu0 %3877
      %3879 = vrot.lane.b32.xlu0 %v2911, 32
      %v3880 = vpop.permute.xlu0 %3879
      %3881 = vrot.lane.b32.xlu0 %v2912, 32
      %v3882 = vpop.permute.xlu0 %3881
      %3883 = vrot.lane.b32.xlu0 %v2913, 32
      %v3884 = vpop.permute.xlu0 %3883
      %3885 = vrot.lane.b32.xlu0 %v2914, 32
      %v3886 = vpop.permute.xlu0 %3885
      %3887 = vrot.lane.b32.xlu0 %v2915, 32
      %v3888 = vpop.permute.xlu0 %3887
      %3889 = vrot.lane.b32.xlu0 %v2916, 32
      %v3890 = vpop.permute.xlu0 %3889
      %3891 = vrot.lane.b32.xlu0 %v2917, 32
      %v3892 = vpop.permute.xlu0 %3891
      %3893 = vrot.lane.b32.xlu0 %v2918, 32
      %v3894 = vpop.permute.xlu0 %3893
      %3895 = vrot.lane.b32.xlu0 %v2919, 32
      %v3896 = vpop.permute.xlu0 %3895
      %3897 = vrot.lane.b32.xlu0 %v2920, 32
      %v3898 = vpop.permute.xlu0 %3897
      %3899 = vrot.lane.b32.xlu0 %v2921, 32
      %v3900 = vpop.permute.xlu0 %3899
      %3901 = vrot.lane.b32.xlu0 %v2922, 32
      %v3902 = vpop.permute.xlu0 %3901
      %3903 = vrot.lane.b32.xlu0 %v2923, 32
      %v3904 = vpop.permute.xlu0 %3903
      %3905 = vrot.lane.b32.xlu0 %v2924, 32
      %v3906 = vpop.permute.xlu0 %3905
      %3907 = vrot.lane.b32.xlu0 %v2925, 32
      %v3908 = vpop.permute.xlu0 %3907
      %3909 = vrot.lane.b32.xlu0 %v2926, 32
      %v3910 = vpop.permute.xlu0 %3909
      %3911 = vrot.lane.b32.xlu0 %v2927, 32
      %v3912 = vpop.permute.xlu0 %3911
      %3913 = vrot.lane.b32.xlu0 %v2928, 32
      %v3914 = vpop.permute.xlu0 %3913
      %3915 = vrot.lane.b32.xlu0 %v2929, 32
      %v3916 = vpop.permute.xlu0 %3915
      %3917 = vrot.lane.b32.xlu0 %v2930, 32
      %v3918 = vpop.permute.xlu0 %3917
      %3919 = vrot.lane.b32.xlu0 %v2931, 32
      %v3920 = vpop.permute.xlu0 %3919
      %3921 = vrot.lane.b32.xlu0 %v2932, 32
      %v3922 = vpop.permute.xlu0 %3921
      %3923 = vrot.lane.b32.xlu0 %v2933, 32
      %v3924 = vpop.permute.xlu0 %3923
      %3925 = vrot.lane.b32.xlu0 %v2934, 32
      %v3926 = vpop.permute.xlu0 %3925
      %v3959 = vsel %vm225, %v2646, %v2968
      %v3960 = vsel %vm225, %v2647, %v2970
      %v3961 = vsel %vm225, %v2648, %v2972
      %v3962 = vsel %vm225, %v2649, %v2974
      %v3963 = vsel %vm225, %v2650, %v2976
      %v3964 = vsel %vm225, %v2651, %v2978
      %v3965 = vsel %vm225, %v2652, %v2980
      %v3966 = vsel %vm225, %v2653, %v2982
      %v3967 = vsel %vm225, %v2654, %v2984
      %v3968 = vsel %vm225, %v2655, %v2986
      %v3969 = vsel %vm225, %v2656, %v2988
      %v3970 = vsel %vm225, %v2657, %v2990
      %v3971 = vsel %vm225, %v2658, %v2992
      %v3972 = vsel %vm225, %v2659, %v2994
      %v3973 = vsel %vm225, %v2660, %v2996
      %v3974 = vsel %vm225, %v2661, %v2998
      %v3975 = vsel %vm225, %v2662, %v3000
      %v3976 = vsel %vm225, %v2663, %v3002
      %v3977 = vsel %vm225, %v2664, %v3004
      %v3978 = vsel %vm225, %v2665, %v3006
      %v3979 = vsel %vm225, %v2666, %v3008
      %v3980 = vsel %vm225, %v2667, %v3010
      %v3981 = vsel %vm225, %v2668, %v3012
      %v3982 = vsel %vm225, %v2669, %v3014
      %v3983 = vsel %vm225, %v2670, %v3016
      %v3984 = vsel %vm225, %v2671, %v3018
      %v3985 = vsel %vm225, %v2672, %v3020
      %v3986 = vsel %vm225, %v2673, %v3022
      %v3987 = vsel %vm225, %v2674, %v3024
      %v3988 = vsel %vm225, %v2675, %v3026
      %v3989 = vsel %vm225, %v2676, %v3028
      %v3990 = vsel %vm225, %v2677, %v3030
      %v3991 = vsel %vm1724, %v3959, %v3096
      %v3992 = vsel %vm1724, %v3960, %v3098
      %v3993 = vsel %vm1724, %v3961, %v3100
      %v3994 = vsel %vm1724, %v3962, %v3102
      %v3995 = vsel %vm1724, %v3963, %v3104
      %v3996 = vsel %vm1724, %v3964, %v3106
      %v3997 = vsel %vm1724, %v3965, %v3108
      %v3998 = vsel %vm1724, %v3966, %v3110
      %v3999 = vsel %vm1724, %v3967, %v3112
      %v4000 = vsel %vm1724, %v3968, %v3114
      %v4001 = vsel %vm1724, %v3969, %v3116
      %v4002 = vsel %vm1724, %v3970, %v3118
      %v4003 = vsel %vm1724, %v3971, %v3120
      %v4004 = vsel %vm1724, %v3972, %v3122
      %v4005 = vsel %vm1724, %v3973, %v3124
      %v4006 = vsel %vm1724, %v3974, %v3126
      %v4007 = vsel %vm1724, %v3975, %v3128
      %v4008 = vsel %vm1724, %v3976, %v3130
      %v4009 = vsel %vm1724, %v3977, %v3132
      %v4010 = vsel %vm1724, %v3978, %v3134
      %v4011 = vsel %vm1724, %v3979, %v3136
      %v4012 = vsel %vm1724, %v3980, %v3138
      %v4013 = vsel %vm1724, %v3981, %v3140
      %v4014 = vsel %vm1724, %v3982, %v3142
      %v4015 = vsel %vm1724, %v3983, %v3144
      %v4016 = vsel %vm1724, %v3984, %v3146
      %v4017 = vsel %vm1724, %v3985, %v3148
      %v4018 = vsel %vm1724, %v3986, %v3150
      %v4019 = vsel %vm1724, %v3987, %v3152
      %v4020 = vsel %vm1724, %v3988, %v3154
      %v4021 = vsel %vm1724, %v3989, %v3156
      %v4022 = vsel %vm1724, %v3990, %v3158
      %v4023 = vsel %vm1757, %v3991, %v3224
      %v4024 = vsel %vm1757, %v3992, %v3226
      %v4025 = vsel %vm1757, %v3993, %v3228
      %v4026 = vsel %vm1757, %v3994, %v3230
      %v4027 = vsel %vm1757, %v3995, %v3232
      %v4028 = vsel %vm1757, %v3996, %v3234
      %v4029 = vsel %vm1757, %v3997, %v3236
      %v4030 = vsel %vm1757, %v3998, %v3238
      %v4031 = vsel %vm1757, %v3999, %v3240
      %v4032 = vsel %vm1757, %v4000, %v3242
      %v4033 = vsel %vm1757, %v4001, %v3244
      %v4034 = vsel %vm1757, %v4002, %v3246
      %v4035 = vsel %vm1757, %v4003, %v3248
      %v4036 = vsel %vm1757, %v4004, %v3250
      %v4037 = vsel %vm1757, %v4005, %v3252
      %v4038 = vsel %vm1757, %v4006, %v3254
      %v4039 = vsel %vm1757, %v4007, %v3256
      %v4040 = vsel %vm1757, %v4008, %v3258
      %v4041 = vsel %vm1757, %v4009, %v3260
      %v4042 = vsel %vm1757, %v4010, %v3262
      %v4043 = vsel %vm1757, %v4011, %v3264
      %v4044 = vsel %vm1757, %v4012, %v3266
      %v4045 = vsel %vm1757, %v4013, %v3268
      %v4046 = vsel %vm1757, %v4014, %v3270
      %v4047 = vsel %vm1757, %v4015, %v3272
      %v4048 = vsel %vm1757, %v4016, %v3274
      %v4049 = vsel %vm1757, %v4017, %v3276
      %v4050 = vsel %vm1757, %v4018, %v3278
      %v4051 = vsel %vm1757, %v4019, %v3280
      %v4052 = vsel %vm1757, %v4020, %v3282
      %v4053 = vsel %vm1757, %v4021, %v3284
      %v4054 = vsel %vm1757, %v4022, %v3286
      %v4055 = vsel %vm1790, %v4023, %v3352
      %v4056 = vsel %vm1790, %v4024, %v3354
      %v4057 = vsel %vm1790, %v4025, %v3356
      %v4058 = vsel %vm1790, %v4026, %v3358
      %v4059 = vsel %vm1790, %v4027, %v3360
      %v4060 = vsel %vm1790, %v4028, %v3362
      %v4061 = vsel %vm1790, %v4029, %v3364
      %v4062 = vsel %vm1790, %v4030, %v3366
      %v4063 = vsel %vm1790, %v4031, %v3368
      %v4064 = vsel %vm1790, %v4032, %v3370
      %v4065 = vsel %vm1790, %v4033, %v3372
      %v4066 = vsel %vm1790, %v4034, %v3374
      %v4067 = vsel %vm1790, %v4035, %v3376
      %v4068 = vsel %vm1790, %v4036, %v3378
      %v4069 = vsel %vm1790, %v4037, %v3380
      %v4070 = vsel %vm1790, %v4038, %v3382
      %v4071 = vsel %vm1790, %v4039, %v3384
      %v4072 = vsel %vm1790, %v4040, %v3386
      %v4073 = vsel %vm1790, %v4041, %v3388
      %v4074 = vsel %vm1790, %v4042, %v3390
      %v4075 = vsel %vm1790, %v4043, %v3392
      %v4076 = vsel %vm1790, %v4044, %v3394
      %v4077 = vsel %vm1790, %v4045, %v3396
      %v4078 = vsel %vm1790, %v4046, %v3398
      %v4079 = vsel %vm1790, %v4047, %v3400
      %v4080 = vsel %vm1790, %v4048, %v3402
      %v4081 = vsel %vm1790, %v4049, %v3404
      %v4082 = vsel %vm1790, %v4050, %v3406
      %v4083 = vsel %vm1790, %v4051, %v3408
      %v4084 = vsel %vm1790, %v4052, %v3410
      %v4085 = vsel %vm1790, %v4053, %v3412
      %v4086 = vsel %vm1790, %v4054, %v3414
      %v4087 = vsel %vm1823, %v4055, %v3480
      %v4088 = vsel %vm1823, %v4056, %v3482
      %v4089 = vsel %vm1823, %v4057, %v3484
      %v4090 = vsel %vm1823, %v4058, %v3486
      %v4091 = vsel %vm1823, %v4059, %v3488
      %v4092 = vsel %vm1823, %v4060, %v3490
      %v4093 = vsel %vm1823, %v4061, %v3492
      %v4094 = vsel %vm1823, %v4062, %v3494
      %v4095 = vsel %vm1823, %v4063, %v3496
      %v4096 = vsel %vm1823, %v4064, %v3498
      %v4097 = vsel %vm1823, %v4065, %v3500
      %v4098 = vsel %vm1823, %v4066, %v3502
      %v4099 = vsel %vm1823, %v4067, %v3504
      %v4100 = vsel %vm1823, %v4068, %v3506
      %v4101 = vsel %vm1823, %v4069, %v3508
      %v4102 = vsel %vm1823, %v4070, %v3510
      %v4103 = vsel %vm1823, %v4071, %v3512
      %v4104 = vsel %vm1823, %v4072, %v3514
      %v4105 = vsel %vm1823, %v4073, %v3516
      %v4106 = vsel %vm1823, %v4074, %v3518
      %v4107 = vsel %vm1823, %v4075, %v3520
      %v4108 = vsel %vm1823, %v4076, %v3522
      %v4109 = vsel %vm1823, %v4077, %v3524
      %v4110 = vsel %vm1823, %v4078, %v3526
      %v4111 = vsel %vm1823, %v4079, %v3528
      %v4112 = vsel %vm1823, %v4080, %v3530
      %v4113 = vsel %vm1823, %v4081, %v3532
      %v4114 = vsel %vm1823, %v4082, %v3534
      %v4115 = vsel %vm1823, %v4083, %v3536
      %v4116 = vsel %vm1823, %v4084, %v3538
      %v4117 = vsel %vm1823, %v4085, %v3540
      %v4118 = vsel %vm1823, %v4086, %v3542
      %v4119 = vsel %vm1856, %v4087, %v3608
      %v4120 = vsel %vm1856, %v4088, %v3610
      %v4121 = vsel %vm1856, %v4089, %v3612
      %v4122 = vsel %vm1856, %v4090, %v3614
      %v4123 = vsel %vm1856, %v4091, %v3616
      %v4124 = vsel %vm1856, %v4092, %v3618
      %v4125 = vsel %vm1856, %v4093, %v3620
      %v4126 = vsel %vm1856, %v4094, %v3622
      %v4127 = vsel %vm1856, %v4095, %v3624
      %v4128 = vsel %vm1856, %v4096, %v3626
      %v4129 = vsel %vm1856, %v4097, %v3628
      %v4130 = vsel %vm1856, %v4098, %v3630
      %v4131 = vsel %vm1856, %v4099, %v3632
      %v4132 = vsel %vm1856, %v4100, %v3634
      %v4133 = vsel %vm1856, %v4101, %v3636
      %v4134 = vsel %vm1856, %v4102, %v3638
      %v4135 = vsel %vm1856, %v4103, %v3640
      %v4136 = vsel %vm1856, %v4104, %v3642
      %v4137 = vsel %vm1856, %v4105, %v3644
      %v4138 = vsel %vm1856, %v4106, %v3646
      %v4139 = vsel %vm1856, %v4107, %v3648
      %v4140 = vsel %vm1856, %v4108, %v3650
      %v4141 = vsel %vm1856, %v4109, %v3652
      %v4142 = vsel %vm1856, %v4110, %v3654
      %v4143 = vsel %vm1856, %v4111, %v3656
      %v4144 = vsel %vm1856, %v4112, %v3658
      %v4145 = vsel %vm1856, %v4113, %v3660
      %v4146 = vsel %vm1856, %v4114, %v3662
      %v4147 = vsel %vm1856, %v4115, %v3664
      %v4148 = vsel %vm1856, %v4116, %v3666
      %v4149 = vsel %vm1856, %v4117, %v3668
      %v4150 = vsel %vm1856, %v4118, %v3670
      %v4151 = vsel %vm1889, %v4119, %v3736
      %v4152 = vsel %vm1889, %v4120, %v3738
      %v4153 = vsel %vm1889, %v4121, %v3740
      %v4154 = vsel %vm1889, %v4122, %v3742
      %v4155 = vsel %vm1889, %v4123, %v3744
      %v4156 = vsel %vm1889, %v4124, %v3746
      %v4157 = vsel %vm1889, %v4125, %v3748
      %v4158 = vsel %vm1889, %v4126, %v3750
      %v4159 = vsel %vm1889, %v4127, %v3752
      %v4160 = vsel %vm1889, %v4128, %v3754
      %v4161 = vsel %vm1889, %v4129, %v3756
      %v4162 = vsel %vm1889, %v4130, %v3758
      %v4163 = vsel %vm1889, %v4131, %v3760
      %v4164 = vsel %vm1889, %v4132, %v3762
      %v4165 = vsel %vm1889, %v4133, %v3764
      %v4166 = vsel %vm1889, %v4134, %v3766
      %v4167 = vsel %vm1889, %v4135, %v3768
      %v4168 = vsel %vm1889, %v4136, %v3770
      %v4169 = vsel %vm1889, %v4137, %v3772
      %v4170 = vsel %vm1889, %v4138, %v3774
      %v4171 = vsel %vm1889, %v4139, %v3776
      %v4172 = vsel %vm1889, %v4140, %v3778
      %v4173 = vsel %vm1889, %v4141, %v3780
      %v4174 = vsel %vm1889, %v4142, %v3782
      %v4175 = vsel %vm1889, %v4143, %v3784
      %v4176 = vsel %vm1889, %v4144, %v3786
      %v4177 = vsel %vm1889, %v4145, %v3788
      %v4178 = vsel %vm1889, %v4146, %v3790
      %v4179 = vsel %vm1889, %v4147, %v3792
      %v4180 = vsel %vm1889, %v4148, %v3794
      %v4181 = vsel %vm1889, %v4149, %v3796
      %v4182 = vsel %vm1889, %v4150, %v3798
      %v4183 = vsel %vm1922, %v4151, %v3864
      %v4184 = vsel %vm1922, %v4152, %v3866
      %v4185 = vsel %vm1922, %v4153, %v3868
      %v4186 = vsel %vm1922, %v4154, %v3870
      %v4187 = vsel %vm1922, %v4155, %v3872
      %v4188 = vsel %vm1922, %v4156, %v3874
      %v4189 = vsel %vm1922, %v4157, %v3876
      %v4190 = vsel %vm1922, %v4158, %v3878
      %v4191 = vsel %vm1922, %v4159, %v3880
      %v4192 = vsel %vm1922, %v4160, %v3882
      %v4193 = vsel %vm1922, %v4161, %v3884
      %v4194 = vsel %vm1922, %v4162, %v3886
      %v4195 = vsel %vm1922, %v4163, %v3888
      %v4196 = vsel %vm1922, %v4164, %v3890
      %v4197 = vsel %vm1922, %v4165, %v3892
      %v4198 = vsel %vm1922, %v4166, %v3894
      %v4199 = vsel %vm1922, %v4167, %v3896
      %v4200 = vsel %vm1922, %v4168, %v3898
      %v4201 = vsel %vm1922, %v4169, %v3900
      %v4202 = vsel %vm1922, %v4170, %v3902
      %v4203 = vsel %vm1922, %v4171, %v3904
      %v4204 = vsel %vm1922, %v4172, %v3906
      %v4205 = vsel %vm1922, %v4173, %v3908
      %v4206 = vsel %vm1922, %v4174, %v3910
      %v4207 = vsel %vm1922, %v4175, %v3912
      %v4208 = vsel %vm1922, %v4176, %v3914
      %v4209 = vsel %vm1922, %v4177, %v3916
      %v4210 = vsel %vm1922, %v4178, %v3918
      %v4211 = vsel %vm1922, %v4179, %v3920
      %v4212 = vsel %vm1922, %v4180, %v3922
      %v4213 = vsel %vm1922, %v4181, %v3924
      %v4214 = vsel %vm1922, %v4182, %v3926
      %v4215 = vld [vmem:[%s3] sm:$0xff]
      %v4216 = vld [vmem:[%s3 + $0x8] sm:$0xff]
      %v4217 = vld [vmem:[%s3 + $0x10] sm:$0xff]
      %v4218 = vld [vmem:[%s3 + $0x18] sm:$0xff]
      %v4219 = vld [vmem:[%s3 + $0x20] sm:$0xf]
      %v4220 = vld [vmem:[%s4] sm:$0x1]
      %v4222 = vlaneseq
      %v4223 = vshrl.u32 %v4222, 7
      %v4224 = vsub.s32 0, %v4223
      %v4225 = vrot.slane %v4220, %v4224
      %v4228 = vsel %vm1967, %v4183, 0
      %v4231 = vsel %vm1967, %v4184, 0
      %v4234 = vsel %vm1967, %v4185, 0
      %v4237 = vsel %vm1967, %v4186, 0
      %v4240 = vsel %vm1967, %v4187, 0
      %v4243 = vsel %vm1967, %v4188, 0
      %v4246 = vsel %vm1967, %v4189, 0
      %v4249 = vsel %vm1967, %v4190, 0
      %v4252 = vsel %vm1967, %v4191, 0
      %v4255 = vsel %vm1967, %v4192, 0
      %v4258 = vsel %vm1967, %v4193, 0
      %v4261 = vsel %vm1967, %v4194, 0
      %v4264 = vsel %vm1967, %v4195, 0
      %v4267 = vsel %vm1967, %v4196, 0
      %v4270 = vsel %vm1967, %v4197, 0
      %v4273 = vsel %vm1967, %v4198, 0
      %v4276 = vsel %vm1967, %v4199, 0
      %v4279 = vsel %vm1967, %v4200, 0
      %v4282 = vsel %vm1967, %v4201, 0
      %v4285 = vsel %vm1967, %v4202, 0
      %v4288 = vsel %vm1967, %v4203, 0
      %v4291 = vsel %vm1967, %v4204, 0
      %v4294 = vsel %vm1967, %v4205, 0
      %v4297 = vsel %vm1967, %v4206, 0
      %v4300 = vsel %vm1967, %v4207, 0
      %v4303 = vsel %vm1967, %v4208, 0
      %v4306 = vsel %vm1967, %v4209, 0
      %v4309 = vsel %vm1967, %v4210, 0
      %v4312 = vsel %vm1967, %v4211, 0
      %v4315 = vsel %vm1967, %v4212, 0
      %v4318 = vsel %vm1967, %v4213, 0
      %v4321 = vsel %vm1967, %v4214, 0
      %v4324 = vsel %vm2064, %v4219, 0
      %4326 = vmatprep.subr.mxu0 0.0
      %4327 = vmatpush1.msra.mxu0 0.0
      %4328 = vmatprep.subr.mxu0 0.0
      %4329 = vmatpush1.msra.mxu0 0.0
      %4330 = vmatprep.subr.mxu0 0.0
      %4331 = vmatpush1.msra.mxu0 0.0
      %4332 = vmatprep.subr.mxu0 0.0
      %4333 = vmatpush1.msra.mxu0 0.0
      %4334 = vmatprep.subr.mxu0 0.0
      %4335 = vmatpush1.msra.mxu0 0.0
      %4336 = vmatprep.subr.mxu0 0.0
      %4337 = vmatpush1.msra.mxu0 0.0
      %4338 = vmatprep.subr.mxu0 0.0
      %4339 = vmatpush1.msra.mxu0 0.0
      %4340 = vmatprep.subr.mxu0 0.0
      %4341 = vmatpush1.msra.mxu0 0.0
      %4342 = vmatprep.subr.mxu0 0.0
      %4343 = vmatpush1.msra.mxu0 0.0
      %4344 = vmatprep.subr.mxu0 0.0
      %4345 = vmatpush1.msra.mxu0 0.0
      %4346 = vmatprep.subr.mxu0 0.0
      %4347 = vmatpush1.msra.mxu0 0.0
      %4348 = vmatprep.subr.mxu0 0.0
      %4349 = vmatpush1.msra.mxu0 %v4324
      %4350 = vmatprep.subr.mxu0 0.0
      %4351 = vmatpush1.msra.mxu0 %v4218
      %4352 = vmatprep.subr.mxu0 0.0
      %4353 = vmatpush1.msra.mxu0 %v4217
      %4354 = vmatprep.subr.mxu0 0.0
      %4355 = vmatpush1.msra.mxu0 %v4216
      %4356 = vmatprep.subr.mxu0 0.0
      %4357 = vmatpush1.msra.mxu0 %v4215
      %4358 = vmatprep.subr.mxu0 0.0
      %4359 = vmatpush2.msra.mxu0 0.0
      %4360 = vmatprep.subr.mxu0 0.0
      %4361 = vmatpush2.msra.mxu0 0.0
      %4362 = vmatprep.subr.mxu0 0.0
      %4363 = vmatpush2.msra.mxu0 0.0
      %4364 = vmatprep.subr.mxu0 0.0
      %4365 = vmatpush2.msra.mxu0 0.0
      %4366 = vmatprep.subr.mxu0 0.0
      %4367 = vmatpush2.msra.mxu0 0.0
      %4368 = vmatprep.subr.mxu0 0.0
      %4369 = vmatpush2.msra.mxu0 0.0
      %4370 = vmatprep.subr.mxu0 0.0
      %4371 = vmatpush2.msra.mxu0 0.0
      %4372 = vmatprep.subr.mxu0 0.0
      %4373 = vmatpush2.msra.mxu0 0.0
      %4374 = vmatprep.subr.mxu0 0.0
      %4375 = vmatpush2.msra.mxu0 0.0
      %4376 = vmatprep.subr.mxu0 0.0
      %4377 = vmatpush2.msra.mxu0 0.0
      %4378 = vmatprep.subr.mxu0 0.0
      %4379 = vmatpush2.msra.mxu0 0.0
      %4380 = vmatprep.subr.mxu0 0.0
      %4381 = vmatpush2.msra.mxu0 0.0
      %4382 = vmatprep.subr.mxu0 0.0
      %4383 = vmatpush2.msra.mxu0 0.0
      %4384 = vmatprep.subr.mxu0 0.0
      %4385 = vmatpush2.msra.mxu0 0.0
      %4386 = vmatprep.subr.mxu0 0.0
      %4387 = vmatpush2.msra.mxu0 0.0
      %4388 = vmatprep.subr.mxu0 0.0
      %4389 = vmatpush2.msra.mxu0 0.0
      %4390 = vmatprep.mubr.f32.mxu0 0.0
      %4391 = vmatmul.mubr.f32.gmra.mxu0 %v4228
      %v4392 = vpop.f32.mrf.mxu0
      %v4393 = vadd.f32 %v4225, %v4392
      %v4394 = vpop.f32.mrf.mxu0
      %4395 = vmatprep.mubr.f32.mxu0 0.0
      %4396 = vmatmul.mubr.f32.gmra.mxu0 %v4231
      %v4397 = vpop.f32.mrf.mxu0
      %v4398 = vadd.f32 %v4225, %v4397
      %v4399 = vpop.f32.mrf.mxu0
      %4400 = vmatprep.mubr.f32.mxu0 0.0
      %4401 = vmatmul.mubr.f32.gmra.mxu0 %v4234
      %v4402 = vpop.f32.mrf.mxu0
      %v4403 = vadd.f32 %v4225, %v4402
      %v4404 = vpop.f32.mrf.mxu0
      %4405 = vmatprep.mubr.f32.mxu0 0.0
      %4406 = vmatmul.mubr.f32.gmra.mxu0 %v4237
      %v4407 = vpop.f32.mrf.mxu0
      %v4408 = vadd.f32 %v4225, %v4407
      %v4409 = vpop.f32.mrf.mxu0
      %4410 = vmatprep.mubr.f32.mxu0 0.0
      %4411 = vmatmul.mubr.f32.gmra.mxu0 %v4240
      %v4412 = vpop.f32.mrf.mxu0
      %v4413 = vadd.f32 %v4225, %v4412
      %v4414 = vpop.f32.mrf.mxu0
      %4415 = vmatprep.mubr.f32.mxu0 0.0
      %4416 = vmatmul.mubr.f32.gmra.mxu0 %v4243
      %v4417 = vpop.f32.mrf.mxu0
      %v4418 = vadd.f32 %v4225, %v4417
      %v4419 = vpop.f32.mrf.mxu0
      %4420 = vmatprep.mubr.f32.mxu0 0.0
      %4421 = vmatmul.mubr.f32.gmra.mxu0 %v4246
      %v4422 = vpop.f32.mrf.mxu0
      %v4423 = vadd.f32 %v4225, %v4422
      %v4424 = vpop.f32.mrf.mxu0
      %4425 = vmatprep.mubr.f32.mxu0 0.0
      %4426 = vmatmul.mubr.f32.gmra.mxu0 %v4249
      %v4427 = vpop.f32.mrf.mxu0
      %v4428 = vadd.f32 %v4225, %v4427
      %v4429 = vpop.f32.mrf.mxu0
      %4430 = vmatprep.mubr.f32.mxu0 0.0
      %4431 = vmatmul.mubr.f32.gmra.mxu0 %v4252
      %v4432 = vpop.f32.mrf.mxu0
      %v4433 = vadd.f32 %v4225, %v4432
      %v4434 = vpop.f32.mrf.mxu0
      %4435 = vmatprep.mubr.f32.mxu0 0.0
      %4436 = vmatmul.mubr.f32.gmra.mxu0 %v4255
      %v4437 = vpop.f32.mrf.mxu0
      %v4438 = vadd.f32 %v4225, %v4437
      %v4439 = vpop.f32.mrf.mxu0
      %4440 = vmatprep.mubr.f32.mxu0 0.0
      %4441 = vmatmul.mubr.f32.gmra.mxu0 %v4258
      %v4442 = vpop.f32.mrf.mxu0
      %v4443 = vadd.f32 %v4225, %v4442
      %v4444 = vpop.f32.mrf.mxu0
      %4445 = vmatprep.mubr.f32.mxu0 0.0
      %4446 = vmatmul.mubr.f32.gmra.mxu0 %v4261
      %v4447 = vpop.f32.mrf.mxu0
      %v4448 = vadd.f32 %v4225, %v4447
      %v4449 = vpop.f32.mrf.mxu0
      %4450 = vmatprep.mubr.f32.mxu0 0.0
      %4451 = vmatmul.mubr.f32.gmra.mxu0 %v4264
      %v4452 = vpop.f32.mrf.mxu0
      %v4453 = vadd.f32 %v4225, %v4452
      %v4454 = vpop.f32.mrf.mxu0
      %4455 = vmatprep.mubr.f32.mxu0 0.0
      %4456 = vmatmul.mubr.f32.gmra.mxu0 %v4267
      %v4457 = vpop.f32.mrf.mxu0
      %v4458 = vadd.f32 %v4225, %v4457
      %v4459 = vpop.f32.mrf.mxu0
      %4460 = vmatprep.mubr.f32.mxu0 0.0
      %4461 = vmatmul.mubr.f32.gmra.mxu0 %v4270
      %v4462 = vpop.f32.mrf.mxu0
      %v4463 = vadd.f32 %v4225, %v4462
      %v4464 = vpop.f32.mrf.mxu0
      %4465 = vmatprep.mubr.f32.mxu0 0.0
      %4466 = vmatmul.mubr.f32.gmra.mxu0 %v4273
      %v4467 = vpop.f32.mrf.mxu0
      %v4468 = vadd.f32 %v4225, %v4467
      %v4469 = vpop.f32.mrf.mxu0
      %4470 = vmatprep.mubr.f32.mxu0 0.0
      %4471 = vmatmul.mubr.f32.gmra.mxu0 %v4276
      %v4472 = vpop.f32.mrf.mxu0
      %v4473 = vadd.f32 %v4225, %v4472
      %v4474 = vpop.f32.mrf.mxu0
      %4475 = vmatprep.mubr.f32.mxu0 0.0
      %4476 = vmatmul.mubr.f32.gmra.mxu0 %v4279
      %v4477 = vpop.f32.mrf.mxu0
      %v4478 = vadd.f32 %v4225, %v4477
      %v4479 = vpop.f32.mrf.mxu0
      %4480 = vmatprep.mubr.f32.mxu0 0.0
      %4481 = vmatmul.mubr.f32.gmra.mxu0 %v4282
      %v4482 = vpop.f32.mrf.mxu0
      %v4483 = vadd.f32 %v4225, %v4482
      %v4484 = vpop.f32.mrf.mxu0
      %4485 = vmatprep.mubr.f32.mxu0 0.0
      %4486 = vmatmul.mubr.f32.gmra.mxu0 %v4285
      %v4487 = vpop.f32.mrf.mxu0
      %v4488 = vadd.f32 %v4225, %v4487
      %v4489 = vpop.f32.mrf.mxu0
      %4490 = vmatprep.mubr.f32.mxu0 0.0
      %4491 = vmatmul.mubr.f32.gmra.mxu0 %v4288
      %v4492 = vpop.f32.mrf.mxu0
      %v4493 = vadd.f32 %v4225, %v4492
      %v4494 = vpop.f32.mrf.mxu0
      %4495 = vmatprep.mubr.f32.mxu0 0.0
      %4496 = vmatmul.mubr.f32.gmra.mxu0 %v4291
      %v4497 = vpop.f32.mrf.mxu0
      %v4498 = vadd.f32 %v4225, %v4497
      %v4499 = vpop.f32.mrf.mxu0
      %4500 = vmatprep.mubr.f32.mxu0 0.0
      %4501 = vmatmul.mubr.f32.gmra.mxu0 %v4294
      %v4502 = vpop.f32.mrf.mxu0
      %v4503 = vadd.f32 %v4225, %v4502
      %v4504 = vpop.f32.mrf.mxu0
      %4505 = vmatprep.mubr.f32.mxu0 0.0
      %4506 = vmatmul.mubr.f32.gmra.mxu0 %v4297
      %v4507 = vpop.f32.mrf.mxu0
      %v4508 = vadd.f32 %v4225, %v4507
      %v4509 = vpop.f32.mrf.mxu0
      %4510 = vmatprep.mubr.f32.mxu0 0.0
      %4511 = vmatmul.mubr.f32.gmra.mxu0 %v4300
      %v4512 = vpop.f32.mrf.mxu0
      %v4513 = vadd.f32 %v4225, %v4512
      %v4514 = vpop.f32.mrf.mxu0
      %4515 = vmatprep.mubr.f32.mxu0 0.0
      %4516 = vmatmul.mubr.f32.gmra.mxu0 %v4303
      %v4517 = vpop.f32.mrf.mxu0
      %v4518 = vadd.f32 %v4225, %v4517
      %v4519 = vpop.f32.mrf.mxu0
      %4520 = vmatprep.mubr.f32.mxu0 0.0
      %4521 = vmatmul.mubr.f32.gmra.mxu0 %v4306
      %v4522 = vpop.f32.mrf.mxu0
      %v4523 = vadd.f32 %v4225, %v4522
      %v4524 = vpop.f32.mrf.mxu0
      %4525 = vmatprep.mubr.f32.mxu0 0.0
      %4526 = vmatmul.mubr.f32.gmra.mxu0 %v4309
      %v4527 = vpop.f32.mrf.mxu0
      %v4528 = vadd.f32 %v4225, %v4527
      %v4529 = vpop.f32.mrf.mxu0
      %4530 = vmatprep.mubr.f32.mxu0 0.0
      %4531 = vmatmul.mubr.f32.gmra.mxu0 %v4312
      %v4532 = vpop.f32.mrf.mxu0
      %v4533 = vadd.f32 %v4225, %v4532
      %v4534 = vpop.f32.mrf.mxu0
      %4535 = vmatprep.mubr.f32.mxu0 0.0
      %4536 = vmatmul.mubr.f32.gmra.mxu0 %v4315
      %v4537 = vpop.f32.mrf.mxu0
      %v4538 = vadd.f32 %v4225, %v4537
      %v4539 = vpop.f32.mrf.mxu0
      %4540 = vmatprep.mubr.f32.mxu0 0.0
      %4541 = vmatmul.mubr.f32.gmra.mxu0 %v4318
      %v4542 = vpop.f32.mrf.mxu0
      %v4543 = vadd.f32 %v4225, %v4542
      %v4544 = vpop.f32.mrf.mxu0
      %4545 = vmatprep.mubr.f32.mxu0 0.0
      %4546 = vmatmul.mubr.f32.gmra.mxu0 %v4321
      %v4547 = vpop.f32.mrf.mxu0
      %v4548 = vadd.f32 %v4225, %v4547
      %v4549 = vpop.f32.mrf.mxu0
      %4550 = vdwg.mxu0
      %v4551 = vmul.f32 %v4393, 0.5
      %v4552 = vmul.f32 %v4398, 0.5
      %v4553 = vmul.f32 %v4403, 0.5
      %v4554 = vmul.f32 %v4408, 0.5
      %v4555 = vmul.f32 %v4413, 0.5
      %v4556 = vmul.f32 %v4418, 0.5
      %v4557 = vmul.f32 %v4423, 0.5
      %v4558 = vmul.f32 %v4428, 0.5
      %v4559 = vmul.f32 %v4433, 0.5
      %v4560 = vmul.f32 %v4438, 0.5
      %v4561 = vmul.f32 %v4443, 0.5
      %v4562 = vmul.f32 %v4448, 0.5
      %v4563 = vmul.f32 %v4453, 0.5
      %v4564 = vmul.f32 %v4458, 0.5
      %v4565 = vmul.f32 %v4463, 0.5
      %v4566 = vmul.f32 %v4468, 0.5
      %v4567 = vmul.f32 %v4473, 0.5
      %v4568 = vmul.f32 %v4478, 0.5
      %v4569 = vmul.f32 %v4483, 0.5
      %v4570 = vmul.f32 %v4488, 0.5
      %v4571 = vmul.f32 %v4493, 0.5
      %v4572 = vmul.f32 %v4498, 0.5
      %v4573 = vmul.f32 %v4503, 0.5
      %v4574 = vmul.f32 %v4508, 0.5
      %v4575 = vmul.f32 %v4513, 0.5
      %v4576 = vmul.f32 %v4518, 0.5
      %v4577 = vmul.f32 %v4523, 0.5
      %v4578 = vmul.f32 %v4528, 0.5
      %v4579 = vmul.f32 %v4533, 0.5
      %v4580 = vmul.f32 %v4538, 0.5
      %v4581 = vmul.f32 %v4543, 0.5
      %v4582 = vmul.f32 %v4548, 0.5
      %v4583 = vadd.f32 %v314, %v4551
      %v4584 = vadd.f32 %v315, %v4552
      %v4585 = vadd.f32 %v316, %v4553
      %v4586 = vadd.f32 %v317, %v4554
      %v4587 = vadd.f32 %v318, %v4555
      %v4588 = vadd.f32 %v319, %v4556
      %v4589 = vadd.f32 %v320, %v4557
      %v4590 = vadd.f32 %v321, %v4558
      %v4591 = vadd.f32 %v322, %v4559
      %v4592 = vadd.f32 %v323, %v4560
      %v4593 = vadd.f32 %v324, %v4561
      %v4594 = vadd.f32 %v325, %v4562
      %v4595 = vadd.f32 %v326, %v4563
      %v4596 = vadd.f32 %v327, %v4564
      %v4597 = vadd.f32 %v328, %v4565
      %v4598 = vadd.f32 %v329, %v4566
      %v4599 = vadd.f32 %v330, %v4567
      %v4600 = vadd.f32 %v331, %v4568
      %v4601 = vadd.f32 %v332, %v4569
      %v4602 = vadd.f32 %v333, %v4570
      %v4603 = vadd.f32 %v334, %v4571
      %v4604 = vadd.f32 %v335, %v4572
      %v4605 = vadd.f32 %v336, %v4573
      %v4606 = vadd.f32 %v337, %v4574
      %v4607 = vadd.f32 %v338, %v4575
      %v4608 = vadd.f32 %v339, %v4576
      %v4609 = vadd.f32 %v340, %v4577
      %v4610 = vadd.f32 %v341, %v4578
      %v4611 = vadd.f32 %v342, %v4579
      %v4612 = vadd.f32 %v343, %v4580
      %v4613 = vadd.f32 %v344, %v4581
      %v4614 = vadd.f32 %v345, %v4582
      %4615 = vst.msk [vmem:[%s224] sm:$0xff] %vm225, %v4583
      %4616 = vst.msk [vmem:[%s224 + $0x8] sm:$0xff] %vm225, %v4584
      %4617 = vst.msk [vmem:[%s224 + $0x10] sm:$0xff] %vm225, %v4585
      %4618 = vst.msk [vmem:[%s224 + $0x18] sm:$0xff] %vm225, %v4586
      %4619 = vst.msk [vmem:[%s224 + $0x20] sm:$0xff] %vm225, %v4587
      %4620 = vst.msk [vmem:[%s224 + $0x28] sm:$0xff] %vm225, %v4588
      %4621 = vst.msk [vmem:[%s224 + $0x30] sm:$0xff] %vm225, %v4589
      %4622 = vst.msk [vmem:[%s224 + $0x38] sm:$0xff] %vm225, %v4590
      %4623 = vst.msk [vmem:[%s224 + $0x40] sm:$0xff] %vm225, %v4591
      %4624 = vst.msk [vmem:[%s224 + $0x48] sm:$0xff] %vm225, %v4592
      %4625 = vst.msk [vmem:[%s224 + $0x50] sm:$0xff] %vm225, %v4593
      %4626 = vst.msk [vmem:[%s224 + $0x58] sm:$0xff] %vm225, %v4594
      %4627 = vst.msk [vmem:[%s224 + $0x60] sm:$0xff] %vm225, %v4595
      %4628 = vst.msk [vmem:[%s224 + $0x68] sm:$0xff] %vm225, %v4596
      %4629 = vst.msk [vmem:[%s224 + $0x70] sm:$0xff] %vm225, %v4597
      %4630 = vst.msk [vmem:[%s224 + $0x78] sm:$0xff] %vm225, %v4598
      %4631 = vst.msk [vmem:[%s224 + $0x80] sm:$0xff] %vm225, %v4599
      %4632 = vst.msk [vmem:[%s224 + $0x88] sm:$0xff] %vm225, %v4600
      %4633 = vst.msk [vmem:[%s224 + $0x90] sm:$0xff] %vm225, %v4601
      %4634 = vst.msk [vmem:[%s224 + $0x98] sm:$0xff] %vm225, %v4602
      %4635 = vst.msk [vmem:[%s224 + $0xa0] sm:$0xff] %vm225, %v4603
      %4636 = vst.msk [vmem:[%s224 + $0xa8] sm:$0xff] %vm225, %v4604
      %4637 = vst.msk [vmem:[%s224 + $0xb0] sm:$0xff] %vm225, %v4605
      %4638 = vst.msk [vmem:[%s224 + $0xb8] sm:$0xff] %vm225, %v4606
      %4639 = vst.msk [vmem:[%s224 + $0xc0] sm:$0xff] %vm225, %v4607
      %4640 = vst.msk [vmem:[%s224 + $0xc8] sm:$0xff] %vm225, %v4608
      %4641 = vst.msk [vmem:[%s224 + $0xd0] sm:$0xff] %vm225, %v4609
      %4642 = vst.msk [vmem:[%s224 + $0xd8] sm:$0xff] %vm225, %v4610
      %4643 = vst.msk [vmem:[%s224 + $0xe0] sm:$0xff] %vm225, %v4611
      %4644 = vst.msk [vmem:[%s224 + $0xe8] sm:$0xff] %vm225, %v4612
      %4645 = vst.msk [vmem:[%s224 + $0xf0] sm:$0xff] %vm225, %v4613
      %4646 = vst.msk [vmem:[%s224 + $0xf8] sm:$0xff] %vm225, %v4614
      %p4647 = scmp.lt.s32.totalorder %s16, 1
      %s4648 = scalar_select %p4647, %s16, 1
      %s4649 = smul.addr %s4648, 32
      %s4650 = smul.addr %s4649, 8
      %s4651 = scalar_lea.vmem %s5, %s4650
      // Predicated region
      $region41: #{residual_block_forward.1} parent=39 // pred_check
        %p4652 = pneg %p144
      $region42: #{residual_block_forward.1} parent=39 // pred_check_branch
        %4654 = sbr.rel (%p4652) target = $region44
      $region43: #{residual_block_forward.1} parent=39 // pred_region
        _
      $region44: #{residual_block_forward.1} parent=39 // pred_fallthru
        _
    $region40: #{residual_block_forward.1} parent=5 // pred_fallthru
      _
    %p4655 = scmp.le.s32.totalorder 2, %s11
    // Predicated region
    $region45: #{residual_block_forward.1} parent=5 // pred_check
      %p4656 = pneg %p4655
    $region46: #{residual_block_forward.1} parent=5 // pred_check_branch
      %4658 = sbr.rel (%p4656) target = $region48
    $region47: #{residual_block_forward.1} parent=5 // pred_region
      %s4659 = ssub.s32 %s11, 2
      // Predicated region
      $region49: #{residual_block_forward.1} parent=47 // pred_check
        %p4660 = pneg %p150
      $region50: #{residual_block_forward.1} parent=47 // pred_check_branch
        %4662 = sbr.rel (%p4660) target = $region52
      $region51: #{residual_block_forward.1} parent=47 // pred_region
        %p4663 = scmp.lt.s32.totalorder %s17, 1
        %s4664 = scalar_select %p4663, %s17, 1
        %s4665 = smul.addr %s4664, 32
        %s4666 = smul.addr %s4665, 8
        %s4667 = scalar_lea.vmem %s5, %s4666
      $region52: #{residual_block_forward.1} parent=47 // pred_fallthru
        _
    $region48: #{residual_block_forward.1} parent=5 // pred_fallthru
      _
  $region6: #{residual_block_forward.1} parent=0 // loop_footer
    %s15 = sadd.s32 1, %s11
  $region7: #{residual_block_forward.1} parent=0 // loop_footer_branch
    %10 = sbr.rel target = $region3
  $region8: #{residual_block_forward.1} parent=0 // loop_exit
    _

</llo_original>
